<compile_context>
chip_gen: v6e
topology: v6e:2x2x1
jax: 0.10.0
libtpu: 0.0.40
codegen_flags: <defaults>
</compile_context>

<pallas_src>
import jax
import jax.numpy as jnp
from jax.experimental import pallas as pl
from jax.experimental.pallas import tpu as pltpu


def _round_up(n, m):
    return ((n + m - 1) // m) * m


def _discriminator_kernel(x_ref, w1_ref, b1_ref, w2_ref, b2_ref, w3_ref, b3_ref,
                          o_ref):
    # Layer 1: Linear(input_dim, 256) + LeakyReLU(0.2).
    # x arrives f32; cast to bf16 on the VPU (free slack under the MXU work),
    # accumulate in f32 on the MXU.
    h1 = jnp.dot(x_ref[...].astype(jnp.bfloat16), w1_ref[...],
                 preferred_element_type=jnp.float32)
    h1 = h1 + b1_ref[...]
    h1 = jnp.where(h1 > 0, h1, 0.2 * h1)
    # Dropout(0.3) -> identity (eval mode)

    # Layer 2: Linear(256, 128) + LeakyReLU(0.2).
    h2 = jnp.dot(h1.astype(jnp.bfloat16), w2_ref[...],
                 preferred_element_type=jnp.float32)
    h2 = h2 + b2_ref[...]
    h2 = jnp.where(h2 > 0, h2, 0.2 * h2)
    # Dropout(0.3) -> identity (eval mode)

    # Layer 3: Linear(128, 1) + Sigmoid, lane-dense.
    # N=1 matmul -> VPU multiply + lane reduction; result handled as a
    # (1, tb) row so sigmoid and the store are lane-dense.
    z = jnp.sum(h2 * w3_ref[...], axis=-1)            # (tb,)
    zrow = z[None, :] + b3_ref[...]                    # (1, tb)
    o_ref[...] = jax.nn.sigmoid(zrow).astype(o_ref.dtype)


def prepare_params_for_kernel(params):
    """One-time parameter preparation (bf16 weight copies, f32 biases, w3 row)."""
    w1, b1 = params["w1"], params["b1"]   # (D, 256), (1, 256)
    w2, b2 = params["w2"], params["b2"]   # (256, 128), (1, 128)
    w3, b3 = params["w3"], params["b3"]   # (128, 1), (1, 1)
    return dict(
        w1=w1.astype(jnp.bfloat16),
        w2=w2.astype(jnp.bfloat16),
        b1=b1.astype(jnp.float32),
        b2=b2.astype(jnp.float32),
        w3_row=w3.reshape(1, w3.shape[0]).astype(jnp.float32),
        b3=b3.astype(jnp.float32),
        H1=w1.shape[1], H2=w2.shape[1], D=w1.shape[0],
    )


def _pick_batch_tile(B, D, batch_tile):
    """Largest 128-multiple tile (<= cap) that exactly divides the padded batch.

    Minimizes pad waste (< 128 garbage rows ever) and grid steps.  For large
    input_dim prefer >= 2 grid steps so both v7x TensorCores get work.
    """
    B_pad = _round_up(B, 128)
    cap = max(128, min(_round_up(batch_tile, 128), B_pad))
    divisors = [t for t in range(128, cap + 1, 128) if B_pad % t == 0]
    if D >= 1024 and B_pad >= 256:
        two_step = [t for t in divisors if B_pad // t >= 2]
        if two_step:
            return max(two_step), B_pad
    return max(divisors), B_pad


def discriminator_forward(x, prepared, *, batch_tile=512):
    """x: (B, input_dim) float32; prepared: output of prepare_params_for_kernel."""
    B, D = x.shape
    assert D == prepared["D"]
    H1, H2 = prepared["H1"], prepared["H2"]

    tb, B_pad = _pick_batch_tile(B, D, batch_tile)
    if B_pad != B:
        x = jnp.pad(x, ((0, B_pad - B), (0, 0)))
    grid = (B_pad // tb,)

    w1_bf, w2_bf = prepared["w1"], prepared["w2"]
    b1f, b2f, b3f = prepared["b1"], prepared["b2"], prepared["b3"]
    w3_row = prepared["w3_row"]

    # Honest cost estimate (x is f32, weights bf16, sigmoid ~= exp + recip).
    flops = 2 * B_pad * (D * H1 + H1 * H2 + H2)
    bytes_accessed = (B_pad * D * 4                 # x (f32)
                      + (D * H1 + H1 * H2) * 2      # w1, w2 (bf16)
                      + (H1 + H2 + H2 + 1) * 4      # biases + w3 row (f32)
                      + B_pad * 4)                  # output (f32)
    cost = pl.CostEstimate(flops=flops, transcendentals=2 * B_pad,
                           bytes_accessed=bytes_accessed)

    # Raise the scoped VMEM limit only when the working set needs it
    # (large input_dim); cap at v7x physical VMEM (64 MiB).
    vmem_est = (2 * tb * D * 4                      # double-buffered x tile (f32)
                + 2 * (D * H1 + H1 * H2) * 2        # weights (conservatively x2)
                + 2 * (H1 + 2 * H2 + 1) * 4         # biases / w3 row
                + 2 * tb * 4                        # output row blocks
                + (2 << 20))                        # headroom
    compiler_kwargs = {}
    if vmem_est > 24 * 1024 * 1024:
        compiler_kwargs["vmem_limit_bytes"] = min(
            _round_up(2 * vmem_est, 1 << 20), 64 * 1024 * 1024)

    out = pl.pallas_call(
        _discriminator_kernel,
        out_shape=jax.ShapeDtypeStruct((1, B_pad), jnp.float32),
        grid_spec=pltpu.PrefetchScalarGridSpec(
            num_scalar_prefetch=0,
            grid=grid,
            in_specs=[
                pl.BlockSpec((tb, D), lambda i: (i, 0)),      # x tile (f32)
                # Constant index_maps: weights DMA'd once, stay VMEM-resident.
                pl.BlockSpec((D, H1), lambda i: (0, 0)),      # w1 (bf16)
                pl.BlockSpec((1, H1), lambda i: (0, 0)),      # b1 (f32)
                pl.BlockSpec((H1, H2), lambda i: (0, 0)),     # w2 (bf16)
                pl.BlockSpec((1, H2), lambda i: (0, 0)),      # b2 (f32)
                pl.BlockSpec((1, H2), lambda i: (0, 0)),      # w3 row (f32)
                pl.BlockSpec((1, 1), lambda i: (0, 0)),       # b3 (f32)
            ],
            # Lane-dense output: each grid step writes a (1, tb) row chunk.
            out_specs=pl.BlockSpec((1, tb), lambda i: (0, i)),
        ),
        compiler_params=pltpu.CompilerParams(
            dimension_semantics=("parallel",), **compiler_kwargs),
        cost_estimate=cost,
    )(x, w1_bf, b1f, w2_bf, b2f, w3_row, b3f)

    return out[0, :B].reshape(B, 1)


def init_discriminator_params(key, input_dim):
    """Deterministic init mimicking PyTorch Linear default (uniform +-1/sqrt(fan_in))."""
    dims = [(input_dim, 256), (256, 128), (128, 1)]
    params = {}
    for idx, (fan_in, fan_out) in enumerate(dims, start=1):
        key, kw, kb = jax.random.split(key, 3)
        bound = 1.0 / (fan_in ** 0.5)
        params[f"w{idx}"] = jax.random.uniform(
            kw, (fan_in, fan_out), jnp.float32, -bound, bound)
        params[f"b{idx}"] = jax.random.uniform(
            kb, (1, fan_out), jnp.float32, -bound, bound)
    return params


if __name__ == "__main__":
    key = jax.random.PRNGKey(0)
    k_x, k_p = jax.random.split(key)

    batch = 300          # not a 128-multiple -> exercises padding + tile choice
    input_dim = 32       # small synthetic input_dim

    x = jax.random.normal(k_x, (batch, input_dim), dtype=jnp.float32)
    params = init_discriminator_params(k_p, input_dim)
    prepared = prepare_params_for_kernel(params)   # one-time bf16 weight copies

    out = discriminator_forward(x, prepared)
    out = jax.block_until_ready(out)

    # Pure-JAX f32 reference (eval-mode dropout = identity) for sanity.
    def ref(x, p):
        h = x @ p["w1"] + p["b1"]
        h = jnp.where(h > 0, h, 0.2 * h)
        h = h @ p["w2"] + p["b2"]
        h = jnp.where(h > 0, h, 0.2 * h)
        return jax.nn.sigmoid(h @ p["w3"] + p["b3"])

    expected = ref(x, params)
    assert out.shape == (batch, 1)
    # bf16 matmul operands with f32 accumulation -> relaxed tolerance vs f32 ref.
    assert jnp.allclose(out, expected, atol=2e-2, rtol=2e-2), (
        float(jnp.max(jnp.abs(out - expected))))

    print("KERNEL_OK")
</pallas_src>

<mosaic_0001>
module attributes {stable_mosaic.version = 11 : i64} {
  func.func @_discriminator_kernel(%arg0: i32, %arg1: memref<384x32xf32, #tpu.memory_space<vmem>>, %arg2: memref<32x256xbf16, #tpu.memory_space<vmem>>, %arg3: memref<1x256xf32, #tpu.memory_space<vmem>>, %arg4: memref<256x128xbf16, #tpu.memory_space<vmem>>, %arg5: memref<1x128xf32, #tpu.memory_space<vmem>>, %arg6: memref<1x128xf32, #tpu.memory_space<vmem>>, %arg7: memref<1x1xf32, #tpu.memory_space<vmem>>, %arg8: memref<1x384xf32, #tpu.memory_space<vmem>>) attributes {dimension_semantics = [#tpu.dimension_semantics<parallel>], iteration_bounds = array<i64: 1>, scalar_prefetch = 0 : i64, scratch_operands = 0 : i64, tpu.core_type = #tpu.core_type<tc>, window_params = [{transform_indices = @transform_0, window_bounds = array<i64: 384, 32>}, {pipeline_mode = #tpu.pipeline_mode<synchronous>, transform_indices = @transform_1, window_bounds = array<i64: 32, 256>}, {pipeline_mode = #tpu.pipeline_mode<synchronous>, transform_indices = @transform_2, window_bounds = array<i64: 1, 256>}, {pipeline_mode = #tpu.pipeline_mode<synchronous>, transform_indices = @transform_3, window_bounds = array<i64: 256, 128>}, {pipeline_mode = #tpu.pipeline_mode<synchronous>, transform_indices = @transform_4, window_bounds = array<i64: 1, 128>}, {pipeline_mode = #tpu.pipeline_mode<synchronous>, transform_indices = @transform_5, window_bounds = array<i64: 1, 128>}, {pipeline_mode = #tpu.pipeline_mode<synchronous>, transform_indices = @transform_6, window_bounds = array<i64: 1, 1>}, {transform_indices = @transform_7, window_bounds = array<i64: 1, 384>}]} {
    %c0 = arith.constant 0 : index
    %c0_0 = arith.constant 0 : index
    %0 = vector.load %arg1[%c0, %c0_0] : memref<384x32xf32, #tpu.memory_space<vmem>>, vector<384x32xf32>
    %1 = arith.truncf %0 : vector<384x32xf32> to vector<384x32xbf16>
    %c0_1 = arith.constant 0 : index
    %c0_2 = arith.constant 0 : index
    %2 = vector.load %arg2[%c0_1, %c0_2] : memref<32x256xbf16, #tpu.memory_space<vmem>>, vector<32x256xbf16>
    %cst = arith.constant dense<0.000000e+00> : vector<384x256xf32>
    %3 = tpu.matmul %1, %2, %cst {dimension_numbers = #tpu.dot_dimension_numbers<[1], [0], [0], [1], [0, 0, 1, 1], [], []>} : vector<384x32xbf16>, vector<32x256xbf16>, vector<384x256xf32> -> vector<384x256xf32>
    %c0_3 = arith.constant 0 : index
    %c0_4 = arith.constant 0 : index
    %4 = vector.load %arg3[%c0_3, %c0_4] : memref<1x256xf32, #tpu.memory_space<vmem>>, vector<1x256xf32>
    %5 = vector.broadcast %4 : vector<1x256xf32> to vector<384x256xf32>
    %6 = arith.addf %3, %5 : vector<384x256xf32>
    %cst_5 = arith.constant 0.000000e+00 : f32
    %7 = vector.broadcast %cst_5 : f32 to vector<384x256xf32>
    %8 = arith.cmpf ogt, %6, %7 : vector<384x256xf32>
    %cst_6 = arith.constant 2.000000e-01 : f32
    %9 = vector.broadcast %cst_6 : f32 to vector<384x256xf32>
    %10 = arith.mulf %9, %6 : vector<384x256xf32>
    %11 = arith.select %8, %6, %10 : vector<384x256xi1>, vector<384x256xf32>
    %12 = arith.truncf %11 : vector<384x256xf32> to vector<384x256xbf16>
    %c0_7 = arith.constant 0 : index
    %c0_8 = arith.constant 0 : index
    %13 = vector.load %arg4[%c0_7, %c0_8] : memref<256x128xbf16, #tpu.memory_space<vmem>>, vector<256x128xbf16>
    %cst_9 = arith.constant dense<0.000000e+00> : vector<384x128xf32>
    %14 = tpu.matmul %12, %13, %cst_9 {dimension_numbers = #tpu.dot_dimension_numbers<[1], [0], [0], [1], [0, 0, 1, 1], [], []>} : vector<384x256xbf16>, vector<256x128xbf16>, vector<384x128xf32> -> vector<384x128xf32>
    %c0_10 = arith.constant 0 : index
    %c0_11 = arith.constant 0 : index
    %15 = vector.load %arg5[%c0_10, %c0_11] : memref<1x128xf32, #tpu.memory_space<vmem>>, vector<1x128xf32>
    %16 = vector.broadcast %15 : vector<1x128xf32> to vector<384x128xf32>
    %17 = arith.addf %14, %16 : vector<384x128xf32>
    %cst_12 = arith.constant 0.000000e+00 : f32
    %18 = vector.broadcast %cst_12 : f32 to vector<384x128xf32>
    %19 = arith.cmpf ogt, %17, %18 : vector<384x128xf32>
    %cst_13 = arith.constant 2.000000e-01 : f32
    %20 = vector.broadcast %cst_13 : f32 to vector<384x128xf32>
    %21 = arith.mulf %20, %17 : vector<384x128xf32>
    %22 = arith.select %19, %17, %21 : vector<384x128xi1>, vector<384x128xf32>
    %c0_14 = arith.constant 0 : index
    %c0_15 = arith.constant 0 : index
    %23 = vector.load %arg6[%c0_14, %c0_15] : memref<1x128xf32, #tpu.memory_space<vmem>>, vector<1x128xf32>
    %24 = vector.broadcast %23 : vector<1x128xf32> to vector<384x128xf32>
    %25 = arith.mulf %22, %24 : vector<384x128xf32>
    %cst_16 = arith.constant dense<0.000000e+00> : vector<384xf32>
    %26 = vector.multi_reduction <add>, %25, %cst_16 [1] : vector<384x128xf32> to vector<384xf32>
    %27 = vector.shape_cast %26 : vector<384xf32> to vector<1x384xf32>
    %c0_17 = arith.constant 0 : index
    %c0_18 = arith.constant 0 : index
    %28 = vector.load %arg7[%c0_17, %c0_18] : memref<1x1xf32, #tpu.memory_space<vmem>>, vector<1x1xf32>
    %29 = vector.broadcast %28 : vector<1x1xf32> to vector<1x384xf32>
    %30 = arith.addf %27, %29 : vector<1x384xf32>
    %31 = arith.negf %30 : vector<1x384xf32>
    %32 = math.exp %31 : vector<1x384xf32>
    %cst_19 = arith.constant 1.000000e+00 : f32
    %33 = vector.broadcast %cst_19 : f32 to vector<1x384xf32>
    %34 = arith.addf %33, %32 : vector<1x384xf32>
    %35 = arith.divf %33, %34 : vector<1x384xf32>
    %c0_20 = arith.constant 0 : index
    %c0_21 = arith.constant 0 : index
    %36 = vector.load %arg8[%c0_20, %c0_21] : memref<1x384xf32, #tpu.memory_space<vmem>>, vector<1x384xf32>
    tpu.vector_store %arg8[%c0_20, %c0_21], %35 {strides = array<i32>} : memref<1x384xf32, #tpu.memory_space<vmem>>, vector<1x384xf32>,
    return
  }
  func.func @transform_0(%arg0: i32) -> (i32, i32) {
    %c0_i32 = arith.constant 0 : i32
    %c0_i32_0 = arith.constant 0 : i32
    return %arg0, %c0_i32 : i32, i32
  }
  func.func @transform_1(%arg0: i32) -> (i32, i32) {
    %c0_i32 = arith.constant 0 : i32
    %c0_i32_0 = arith.constant 0 : i32
    %c0_i32_1 = arith.constant 0 : i32
    return %c0_i32, %c0_i32_0 : i32, i32
  }
  func.func @transform_2(%arg0: i32) -> (i32, i32) {
    %c0_i32 = arith.constant 0 : i32
    %c0_i32_0 = arith.constant 0 : i32
    %c0_i32_1 = arith.constant 0 : i32
    return %c0_i32, %c0_i32_0 : i32, i32
  }
  func.func @transform_3(%arg0: i32) -> (i32, i32) {
    %c0_i32 = arith.constant 0 : i32
    %c0_i32_0 = arith.constant 0 : i32
    %c0_i32_1 = arith.constant 0 : i32
    return %c0_i32, %c0_i32_0 : i32, i32
  }
  func.func @transform_4(%arg0: i32) -> (i32, i32) {
    %c0_i32 = arith.constant 0 : i32
    %c0_i32_0 = arith.constant 0 : i32
    %c0_i32_1 = arith.constant 0 : i32
    return %c0_i32, %c0_i32_0 : i32, i32
  }
  func.func @transform_5(%arg0: i32) -> (i32, i32) {
    %c0_i32 = arith.constant 0 : i32
    %c0_i32_0 = arith.constant 0 : i32
    %c0_i32_1 = arith.constant 0 : i32
    return %c0_i32, %c0_i32_0 : i32, i32
  }
  func.func @transform_6(%arg0: i32) -> (i32, i32) {
    %c0_i32 = arith.constant 0 : i32
    %c0_i32_0 = arith.constant 0 : i32
    %c0_i32_1 = arith.constant 0 : i32
    return %c0_i32, %c0_i32_0 : i32, i32
  }
  func.func @transform_7(%arg0: i32) -> (i32, i32) {
    %c0_i32 = arith.constant 0 : i32
    %c0_i32_0 = arith.constant 0 : i32
    return %c0_i32, %arg0 : i32, i32
  }
}

</mosaic_0001>

<llo_original>
// kernel: tpu_custom_call.1
$region0: #{tpu_custom_call.1}
  #allocation0 [shape = 'u32[]', space=smem, size = 0x4, offset = 0x4, fixed_abs, tag = 'smem constant byte address 0x4 - core index']
  #allocation1 [shape = 'u32[144,128]{1,0:T(1,128)}', space=vmem, size = 0x12000, scoped, tag = 'internal scratch']
  #allocation2 [shape = 'f32[1,1]{1,0:T(1,128)S(1)}', space=vmem, size = 0x200, scoped, tag = 'scoped memory for tpu_custom_call.1']
  %s0 = inlined_call_operand.vmem [shape: f32[384,32], index: 0, kind: input, shape index: {}]
  %s1 = inlined_call_operand.vmem [shape: bf16[32,256], index: 1, kind: input, shape index: {}]
  %s2 = inlined_call_operand.vmem [shape: f32[1,256], index: 2, kind: input, shape index: {}]
  %s3 = inlined_call_operand.vmem [shape: bf16[256,128], index: 3, kind: input, shape index: {}]
  %s4 = inlined_call_operand.vmem [shape: f32[1,128], index: 4, kind: input, shape index: {}]
  %s5 = inlined_call_operand.vmem [shape: f32[1,128], index: 5, kind: input, shape index: {}]
  %s6 = inlined_call_operand.<no memory space> [shape: f32[1,1], index: 6, kind: input, shape index: {}]
  %s7 = inlined_call_operand.hbm [shape: f32[1,384], index: 7, kind: output, shape index: {}]
  %s8 = sld [smem:[#allocation0]]
  $region38: #{tpu_custom_call.1} parent=0
    _
  %s10 = ssub.s32 1, %s8
  %s11 = scalar_select 0, %s10, %s8
  %v12 = vstv %s6
  %13 = vst [vmem:[#allocation2] sm:$0x1] %v12
  $region1: #{tpu_custom_call.1} parent=0
    #allocation3 [shape = 'u8[1536]{0}', space=vmem, size = 0x800, scoped, tag = 'output window, operand 0, single buffered']
    #allocation4 [shape = 's32[1]{0}', space=sflag, size = 0x4, scoped, tag = 'scoped memory for tpu_custom_call.1']
    %14 = vsyncpa [#allocation4], 0
    // Predicated region
    $region2: #{tpu_custom_call.1} parent=1 // pred_check
      _
    $region3: #{tpu_custom_call.1} parent=1 // pred_check_branch
      %16 = sbr.rel (0) target = $region5
    $region4: #{tpu_custom_call.1} parent=1 // pred_region
      _
    $region5: #{tpu_custom_call.1} parent=1 // pred_fallthru
      _
    // Predicated region
    $region6: #{tpu_custom_call.1} parent=1 // pred_check
      _
    $region7: #{tpu_custom_call.1} parent=1 // pred_check_branch
      %18 = sbr.rel (0) target = $region9
    $region8: #{tpu_custom_call.1} parent=1 // pred_region
      _
    $region9: #{tpu_custom_call.1} parent=1 // pred_fallthru
      _
    // Predicated region
    $region10: #{tpu_custom_call.1} parent=1 // pred_check
      _
    $region11: #{tpu_custom_call.1} parent=1 // pred_check_branch
      %20 = sbr.rel (0) target = $region13
    $region12: #{tpu_custom_call.1} parent=1 // pred_region
      _
    $region13: #{tpu_custom_call.1} parent=1 // pred_fallthru
      _
    // Predicated region
    $region14: #{tpu_custom_call.1} parent=1 // pred_check
      _
    $region15: #{tpu_custom_call.1} parent=1 // pred_check_branch
      %22 = sbr.rel (0) target = $region17
    $region16: #{tpu_custom_call.1} parent=1 // pred_region
      _
    $region17: #{tpu_custom_call.1} parent=1 // pred_fallthru
      _
    // Predicated region
    $region18: #{tpu_custom_call.1} parent=1 // pred_check
      _
    $region19: #{tpu_custom_call.1} parent=1 // pred_check_branch
      %24 = sbr.rel (0) target = $region21
    $region20: #{tpu_custom_call.1} parent=1 // pred_region
      _
    $region21: #{tpu_custom_call.1} parent=1 // pred_fallthru
      _
    // Predicated region
    $region22: #{tpu_custom_call.1} parent=1 // pred_check
      _
    $region23: #{tpu_custom_call.1} parent=1 // pred_check_branch
      %26 = sbr.rel (0) target = $region25
    $region24: #{tpu_custom_call.1} parent=1 // pred_region
      _
    $region25: #{tpu_custom_call.1} parent=1 // pred_fallthru
      _
    // Predicated region
    $region26: #{tpu_custom_call.1} parent=1 // pred_check
      _
    $region27: #{tpu_custom_call.1} parent=1 // pred_check_branch
      %28 = sbr.rel (0) target = $region29
    $region28: #{tpu_custom_call.1} parent=1 // pred_region
      _
    $region29: #{tpu_custom_call.1} parent=1 // pred_fallthru
      _
    %v30 = vld [vmem:[%s0] sm:$0xff]
    %v31 = vld [vmem:[%s0 + $0x8] sm:$0xff]
    %v32 = vld [vmem:[%s0 + $0x10] sm:$0xff]
    %v33 = vld [vmem:[%s0 + $0x18] sm:$0xff]
    %v34 = vld [vmem:[%s0 + $0x20] sm:$0xff]
    %v35 = vld [vmem:[%s0 + $0x28] sm:$0xff]
    %v36 = vld [vmem:[%s0 + $0x30] sm:$0xff]
    %v37 = vld [vmem:[%s0 + $0x38] sm:$0xff]
    %v38 = vld [vmem:[%s0 + $0x40] sm:$0xff]
    %v39 = vld [vmem:[%s0 + $0x48] sm:$0xff]
    %v40 = vld [vmem:[%s0 + $0x50] sm:$0xff]
    %v41 = vld [vmem:[%s0 + $0x58] sm:$0xff]
    %v42 = vld [vmem:[%s0 + $0x60] sm:$0xff]
    %v43 = vld [vmem:[%s0 + $0x68] sm:$0xff]
    %v44 = vld [vmem:[%s0 + $0x70] sm:$0xff]
    %v45 = vld [vmem:[%s0 + $0x78] sm:$0xff]
    %v46 = vld [vmem:[%s0 + $0x80] sm:$0xff]
    %v47 = vld [vmem:[%s0 + $0x88] sm:$0xff]
    %v48 = vld [vmem:[%s0 + $0x90] sm:$0xff]
    %v49 = vld [vmem:[%s0 + $0x98] sm:$0xff]
    %v50 = vld [vmem:[%s0 + $0xa0] sm:$0xff]
    %v51 = vld [vmem:[%s0 + $0xa8] sm:$0xff]
    %v52 = vld [vmem:[%s0 + $0xb0] sm:$0xff]
    %v53 = vld [vmem:[%s0 + $0xb8] sm:$0xff]
    %v54 = vld [vmem:[%s0 + $0xc0] sm:$0xff]
    %v55 = vld [vmem:[%s0 + $0xc8] sm:$0xff]
    %v56 = vld [vmem:[%s0 + $0xd0] sm:$0xff]
    %v57 = vld [vmem:[%s0 + $0xd8] sm:$0xff]
    %v58 = vld [vmem:[%s0 + $0xe0] sm:$0xff]
    %v59 = vld [vmem:[%s0 + $0xe8] sm:$0xff]
    %v60 = vld [vmem:[%s0 + $0xf0] sm:$0xff]
    %v61 = vld [vmem:[%s0 + $0xf8] sm:$0xff]
    %v62 = vld [vmem:[%s0 + $0x100] sm:$0xff]
    %v63 = vld [vmem:[%s0 + $0x108] sm:$0xff]
    %v64 = vld [vmem:[%s0 + $0x110] sm:$0xff]
    %v65 = vld [vmem:[%s0 + $0x118] sm:$0xff]
    %v66 = vld [vmem:[%s0 + $0x120] sm:$0xff]
    %v67 = vld [vmem:[%s0 + $0x128] sm:$0xff]
    %v68 = vld [vmem:[%s0 + $0x130] sm:$0xff]
    %v69 = vld [vmem:[%s0 + $0x138] sm:$0xff]
    %v70 = vld [vmem:[%s0 + $0x140] sm:$0xff]
    %v71 = vld [vmem:[%s0 + $0x148] sm:$0xff]
    %v72 = vld [vmem:[%s0 + $0x150] sm:$0xff]
    %v73 = vld [vmem:[%s0 + $0x158] sm:$0xff]
    %v74 = vld [vmem:[%s0 + $0x160] sm:$0xff]
    %v75 = vld [vmem:[%s0 + $0x168] sm:$0xff]
    %v76 = vld [vmem:[%s0 + $0x170] sm:$0xff]
    %v77 = vld [vmem:[%s0 + $0x178] sm:$0xff]
    %v78 = vpack.c.bf16 %v31, %v30
    %v79 = vpack.c.bf16 %v33, %v32
    %v80 = vpack.c.bf16 %v35, %v34
    %v81 = vpack.c.bf16 %v37, %v36
    %v82 = vpack.c.bf16 %v39, %v38
    %v83 = vpack.c.bf16 %v41, %v40
    %v84 = vpack.c.bf16 %v43, %v42
    %v85 = vpack.c.bf16 %v45, %v44
    %v86 = vpack.c.bf16 %v47, %v46
    %v87 = vpack.c.bf16 %v49, %v48
    %v88 = vpack.c.bf16 %v51, %v50
    %v89 = vpack.c.bf16 %v53, %v52
    %v90 = vpack.c.bf16 %v55, %v54
    %v91 = vpack.c.bf16 %v57, %v56
    %v92 = vpack.c.bf16 %v59, %v58
    %v93 = vpack.c.bf16 %v61, %v60
    %v94 = vpack.c.bf16 %v63, %v62
    %v95 = vpack.c.bf16 %v65, %v64
    %v96 = vpack.c.bf16 %v67, %v66
    %v97 = vpack.c.bf16 %v69, %v68
    %v98 = vpack.c.bf16 %v71, %v70
    %v99 = vpack.c.bf16 %v73, %v72
    %v100 = vpack.c.bf16 %v75, %v74
    %v101 = vpack.c.bf16 %v77, %v76
    %v102 = vld [vmem:[%s1] sm:$0xff]
    %v103 = vld [vmem:[%s1 + $0x8] sm:$0xff]
    %v104 = vld [vmem:[%s1 + $0x10] sm:$0xff]
    %v105 = vld [vmem:[%s1 + $0x18] sm:$0xff]
    %v106 = vld [vmem:[%s2] sm:$0x3]
    %v108 = vlaneseq
    %v109 = vshrl.u32 %v108, 7
    %v110 = vsub.s32 0, %v109
    %v111 = vrot.slane %v106, %v110
    %v112 = vlaneseq
    %v113 = vshrl.u32 %v112, 7
    %v114 = vsub.s32 1, %v113
    %v115 = vrot.slane %v106, %v114
    %v122 = vunpack.c.l.b16 %v102
    %v123 = vunpack.c.h.b16 %v102
    %v124 = vunpack.c.l.b16 %v103
    %v125 = vunpack.c.h.b16 %v103
    %v126 = vunpack.c.l.b16 %v104
    %v127 = vunpack.c.h.b16 %v104
    %v128 = vunpack.c.l.b16 %v105
    %v129 = vunpack.c.h.b16 %v105
    %v130 = vpack.c.b16 %v124, %v122
    %v131 = vpack.c.b16 %v125, %v123
    %v132 = vpack.c.b16 %v128, %v126
    %v133 = vpack.c.b16 %v129, %v127
    %vm138 = vcmask 261120
    %v140 = vsel %vm138, %v78, 0
    %v143 = vsel %vm138, %v79, 0
    %v146 = vsel %vm138, %v80, 0
    %v149 = vsel %vm138, %v81, 0
    %v152 = vsel %vm138, %v82, 0
    %v155 = vsel %vm138, %v83, 0
    %v158 = vsel %vm138, %v84, 0
    %v161 = vsel %vm138, %v85, 0
    %v164 = vsel %vm138, %v86, 0
    %v167 = vsel %vm138, %v87, 0
    %v170 = vsel %vm138, %v88, 0
    %v173 = vsel %vm138, %v89, 0
    %v176 = vsel %vm138, %v90, 0
    %v179 = vsel %vm138, %v91, 0
    %v182 = vsel %vm138, %v92, 0
    %v185 = vsel %vm138, %v93, 0
    %v188 = vsel %vm138, %v94, 0
    %v191 = vsel %vm138, %v95, 0
    %v194 = vsel %vm138, %v96, 0
    %v197 = vsel %vm138, %v97, 0
    %v200 = vsel %vm138, %v98, 0
    %v203 = vsel %vm138, %v99, 0
    %v206 = vsel %vm138, %v100, 0
    %v209 = vsel %vm138, %v101, 0
    %211 = vmatprep.subr.bf16.mxu0 0
    %212 = vmatpush1.bf16.msra.mxu0 0
    %213 = vmatprep.subr.bf16.mxu0 0
    %214 = vmatpush1.bf16.msra.mxu0 0
    %215 = vmatprep.subr.bf16.mxu0 0
    %216 = vmatpush1.bf16.msra.mxu0 0
    %217 = vmatprep.subr.bf16.mxu0 0
    %218 = vmatpush1.bf16.msra.mxu0 0
    %219 = vmatprep.subr.bf16.mxu0 0
    %220 = vmatpush1.bf16.msra.mxu0 0
    %221 = vmatprep.subr.bf16.mxu0 0
    %222 = vmatpush1.bf16.msra.mxu0 0
    %223 = vmatprep.subr.bf16.mxu0 %v133
    %224 = vmatpush1.bf16.msra.mxu0 %v132
    %225 = vmatprep.subr.bf16.mxu0 %v131
    %226 = vmatpush1.bf16.msra.mxu0 %v130
    %227 = vmatprep.subr.bf16.mxu0 0
    %228 = vmatpush2.bf16.msra.mxu0 0
    %229 = vmatprep.subr.bf16.mxu0 0
    %230 = vmatpush2.bf16.msra.mxu0 0
    %231 = vmatprep.subr.bf16.mxu0 0
    %232 = vmatpush2.bf16.msra.mxu0 0
    %233 = vmatprep.subr.bf16.mxu0 0
    %234 = vmatpush2.bf16.msra.mxu0 0
    %235 = vmatprep.subr.bf16.mxu0 0
    %236 = vmatpush2.bf16.msra.mxu0 0
    %237 = vmatprep.subr.bf16.mxu0 0
    %238 = vmatpush2.bf16.msra.mxu0 0
    %239 = vmatprep.subr.bf16.mxu0 0
    %240 = vmatpush2.bf16.msra.mxu0 0
    %241 = vmatprep.subr.bf16.mxu0 0
    %242 = vmatpush2.bf16.msra.mxu0 0
    %243 = vmatprep.mubr.bf16.mxu0 0
    %244 = vmatmul.mubr.bf16.gmra.mxu0 %v140
    %v245 = vpop.f32.mrf.mxu0
    %v246 = vadd.f32 %v111, %v245
    %v247 = vpop.f32.mrf.mxu0
    %v248 = vadd.f32 %v115, %v247
    %v249 = vpop.f32.mrf.mxu0
    %v250 = vadd.f32 %v111, %v249
    %v251 = vpop.f32.mrf.mxu0
    %v252 = vadd.f32 %v115, %v251
    %253 = vmatprep.mubr.bf16.mxu0 0
    %254 = vmatmul.mubr.bf16.gmra.mxu0 %v143
    %v255 = vpop.f32.mrf.mxu0
    %v256 = vadd.f32 %v111, %v255
    %v257 = vpop.f32.mrf.mxu0
    %v258 = vadd.f32 %v115, %v257
    %v259 = vpop.f32.mrf.mxu0
    %v260 = vadd.f32 %v111, %v259
    %v261 = vpop.f32.mrf.mxu0
    %v262 = vadd.f32 %v115, %v261
    %263 = vmatprep.mubr.bf16.mxu0 0
    %264 = vmatmul.mubr.bf16.gmra.mxu0 %v146
    %v265 = vpop.f32.mrf.mxu0
    %v266 = vadd.f32 %v111, %v265
    %v267 = vpop.f32.mrf.mxu0
    %v268 = vadd.f32 %v115, %v267
    %v269 = vpop.f32.mrf.mxu0
    %v270 = vadd.f32 %v111, %v269
    %v271 = vpop.f32.mrf.mxu0
    %v272 = vadd.f32 %v115, %v271
    %273 = vmatprep.mubr.bf16.mxu0 0
    %274 = vmatmul.mubr.bf16.gmra.mxu0 %v149
    %v275 = vpop.f32.mrf.mxu0
    %v276 = vadd.f32 %v111, %v275
    %v277 = vpop.f32.mrf.mxu0
    %v278 = vadd.f32 %v115, %v277
    %v279 = vpop.f32.mrf.mxu0
    %v280 = vadd.f32 %v111, %v279
    %v281 = vpop.f32.mrf.mxu0
    %v282 = vadd.f32 %v115, %v281
    %283 = vmatprep.mubr.bf16.mxu0 0
    %284 = vmatmul.mubr.bf16.gmra.mxu0 %v152
    %v285 = vpop.f32.mrf.mxu0
    %v286 = vadd.f32 %v111, %v285
    %v287 = vpop.f32.mrf.mxu0
    %v288 = vadd.f32 %v115, %v287
    %v289 = vpop.f32.mrf.mxu0
    %v290 = vadd.f32 %v111, %v289
    %v291 = vpop.f32.mrf.mxu0
    %v292 = vadd.f32 %v115, %v291
    %293 = vmatprep.mubr.bf16.mxu0 0
    %294 = vmatmul.mubr.bf16.gmra.mxu0 %v155
    %v295 = vpop.f32.mrf.mxu0
    %v296 = vadd.f32 %v111, %v295
    %v297 = vpop.f32.mrf.mxu0
    %v298 = vadd.f32 %v115, %v297
    %v299 = vpop.f32.mrf.mxu0
    %v300 = vadd.f32 %v111, %v299
    %v301 = vpop.f32.mrf.mxu0
    %v302 = vadd.f32 %v115, %v301
    %303 = vmatprep.mubr.bf16.mxu0 0
    %304 = vmatmul.mubr.bf16.gmra.mxu0 %v158
    %v305 = vpop.f32.mrf.mxu0
    %v306 = vadd.f32 %v111, %v305
    %v307 = vpop.f32.mrf.mxu0
    %v308 = vadd.f32 %v115, %v307
    %v309 = vpop.f32.mrf.mxu0
    %v310 = vadd.f32 %v111, %v309
    %v311 = vpop.f32.mrf.mxu0
    %v312 = vadd.f32 %v115, %v311
    %313 = vmatprep.mubr.bf16.mxu0 0
    %314 = vmatmul.mubr.bf16.gmra.mxu0 %v161
    %v315 = vpop.f32.mrf.mxu0
    %v316 = vadd.f32 %v111, %v315
    %v317 = vpop.f32.mrf.mxu0
    %v318 = vadd.f32 %v115, %v317
    %v319 = vpop.f32.mrf.mxu0
    %v320 = vadd.f32 %v111, %v319
    %v321 = vpop.f32.mrf.mxu0
    %v322 = vadd.f32 %v115, %v321
    %323 = vmatprep.mubr.bf16.mxu0 0
    %324 = vmatmul.mubr.bf16.gmra.mxu0 %v164
    %v325 = vpop.f32.mrf.mxu0
    %v326 = vadd.f32 %v111, %v325
    %v327 = vpop.f32.mrf.mxu0
    %v328 = vadd.f32 %v115, %v327
    %v329 = vpop.f32.mrf.mxu0
    %v330 = vadd.f32 %v111, %v329
    %v331 = vpop.f32.mrf.mxu0
    %v332 = vadd.f32 %v115, %v331
    %333 = vmatprep.mubr.bf16.mxu0 0
    %334 = vmatmul.mubr.bf16.gmra.mxu0 %v167
    %v335 = vpop.f32.mrf.mxu0
    %v336 = vadd.f32 %v111, %v335
    %v337 = vpop.f32.mrf.mxu0
    %v338 = vadd.f32 %v115, %v337
    %v339 = vpop.f32.mrf.mxu0
    %v340 = vadd.f32 %v111, %v339
    %v341 = vpop.f32.mrf.mxu0
    %v342 = vadd.f32 %v115, %v341
    %343 = vmatprep.mubr.bf16.mxu0 0
    %344 = vmatmul.mubr.bf16.gmra.mxu0 %v170
    %v345 = vpop.f32.mrf.mxu0
    %v346 = vadd.f32 %v111, %v345
    %v347 = vpop.f32.mrf.mxu0
    %v348 = vadd.f32 %v115, %v347
    %v349 = vpop.f32.mrf.mxu0
    %v350 = vadd.f32 %v111, %v349
    %v351 = vpop.f32.mrf.mxu0
    %v352 = vadd.f32 %v115, %v351
    %353 = vmatprep.mubr.bf16.mxu0 0
    %354 = vmatmul.mubr.bf16.gmra.mxu0 %v173
    %v355 = vpop.f32.mrf.mxu0
    %v356 = vadd.f32 %v111, %v355
    %v357 = vpop.f32.mrf.mxu0
    %v358 = vadd.f32 %v115, %v357
    %v359 = vpop.f32.mrf.mxu0
    %v360 = vadd.f32 %v111, %v359
    %v361 = vpop.f32.mrf.mxu0
    %v362 = vadd.f32 %v115, %v361
    %363 = vmatprep.mubr.bf16.mxu0 0
    %364 = vmatmul.mubr.bf16.gmra.mxu0 %v176
    %v365 = vpop.f32.mrf.mxu0
    %v366 = vadd.f32 %v111, %v365
    %v367 = vpop.f32.mrf.mxu0
    %v368 = vadd.f32 %v115, %v367
    %v369 = vpop.f32.mrf.mxu0
    %v370 = vadd.f32 %v111, %v369
    %v371 = vpop.f32.mrf.mxu0
    %v372 = vadd.f32 %v115, %v371
    %373 = vmatprep.mubr.bf16.mxu0 0
    %374 = vmatmul.mubr.bf16.gmra.mxu0 %v179
    %v375 = vpop.f32.mrf.mxu0
    %v376 = vadd.f32 %v111, %v375
    %v377 = vpop.f32.mrf.mxu0
    %v378 = vadd.f32 %v115, %v377
    %v379 = vpop.f32.mrf.mxu0
    %v380 = vadd.f32 %v111, %v379
    %v381 = vpop.f32.mrf.mxu0
    %v382 = vadd.f32 %v115, %v381
    %383 = vmatprep.mubr.bf16.mxu0 0
    %384 = vmatmul.mubr.bf16.gmra.mxu0 %v182
    %v385 = vpop.f32.mrf.mxu0
    %v386 = vadd.f32 %v111, %v385
    %v387 = vpop.f32.mrf.mxu0
    %v388 = vadd.f32 %v115, %v387
    %v389 = vpop.f32.mrf.mxu0
    %v390 = vadd.f32 %v111, %v389
    %v391 = vpop.f32.mrf.mxu0
    %v392 = vadd.f32 %v115, %v391
    %393 = vmatprep.mubr.bf16.mxu0 0
    %394 = vmatmul.mubr.bf16.gmra.mxu0 %v185
    %v395 = vpop.f32.mrf.mxu0
    %v396 = vadd.f32 %v111, %v395
    %v397 = vpop.f32.mrf.mxu0
    %v398 = vadd.f32 %v115, %v397
    %v399 = vpop.f32.mrf.mxu0
    %v400 = vadd.f32 %v111, %v399
    %v401 = vpop.f32.mrf.mxu0
    %v402 = vadd.f32 %v115, %v401
    %403 = vmatprep.mubr.bf16.mxu0 0
    %404 = vmatmul.mubr.bf16.gmra.mxu0 %v188
    %v405 = vpop.f32.mrf.mxu0
    %v406 = vadd.f32 %v111, %v405
    %v407 = vpop.f32.mrf.mxu0
    %v408 = vadd.f32 %v115, %v407
    %v409 = vpop.f32.mrf.mxu0
    %v410 = vadd.f32 %v111, %v409
    %v411 = vpop.f32.mrf.mxu0
    %v412 = vadd.f32 %v115, %v411
    %413 = vmatprep.mubr.bf16.mxu0 0
    %414 = vmatmul.mubr.bf16.gmra.mxu0 %v191
    %v415 = vpop.f32.mrf.mxu0
    %v416 = vadd.f32 %v111, %v415
    %v417 = vpop.f32.mrf.mxu0
    %v418 = vadd.f32 %v115, %v417
    %v419 = vpop.f32.mrf.mxu0
    %v420 = vadd.f32 %v111, %v419
    %v421 = vpop.f32.mrf.mxu0
    %v422 = vadd.f32 %v115, %v421
    %423 = vmatprep.mubr.bf16.mxu0 0
    %424 = vmatmul.mubr.bf16.gmra.mxu0 %v194
    %v425 = vpop.f32.mrf.mxu0
    %v426 = vadd.f32 %v111, %v425
    %v427 = vpop.f32.mrf.mxu0
    %v428 = vadd.f32 %v115, %v427
    %v429 = vpop.f32.mrf.mxu0
    %v430 = vadd.f32 %v111, %v429
    %v431 = vpop.f32.mrf.mxu0
    %v432 = vadd.f32 %v115, %v431
    %433 = vmatprep.mubr.bf16.mxu0 0
    %434 = vmatmul.mubr.bf16.gmra.mxu0 %v197
    %v435 = vpop.f32.mrf.mxu0
    %v436 = vadd.f32 %v111, %v435
    %v437 = vpop.f32.mrf.mxu0
    %v438 = vadd.f32 %v115, %v437
    %v439 = vpop.f32.mrf.mxu0
    %v440 = vadd.f32 %v111, %v439
    %v441 = vpop.f32.mrf.mxu0
    %v442 = vadd.f32 %v115, %v441
    %443 = vmatprep.mubr.bf16.mxu0 0
    %444 = vmatmul.mubr.bf16.gmra.mxu0 %v200
    %v445 = vpop.f32.mrf.mxu0
    %v446 = vadd.f32 %v111, %v445
    %v447 = vpop.f32.mrf.mxu0
    %v448 = vadd.f32 %v115, %v447
    %v449 = vpop.f32.mrf.mxu0
    %v450 = vadd.f32 %v111, %v449
    %v451 = vpop.f32.mrf.mxu0
    %v452 = vadd.f32 %v115, %v451
    %453 = vmatprep.mubr.bf16.mxu0 0
    %454 = vmatmul.mubr.bf16.gmra.mxu0 %v203
    %v455 = vpop.f32.mrf.mxu0
    %v456 = vadd.f32 %v111, %v455
    %v457 = vpop.f32.mrf.mxu0
    %v458 = vadd.f32 %v115, %v457
    %v459 = vpop.f32.mrf.mxu0
    %v460 = vadd.f32 %v111, %v459
    %v461 = vpop.f32.mrf.mxu0
    %v462 = vadd.f32 %v115, %v461
    %463 = vmatprep.mubr.bf16.mxu0 0
    %464 = vmatmul.mubr.bf16.gmra.mxu0 %v206
    %v465 = vpop.f32.mrf.mxu0
    %v466 = vadd.f32 %v111, %v465
    %v467 = vpop.f32.mrf.mxu0
    %v468 = vadd.f32 %v115, %v467
    %v469 = vpop.f32.mrf.mxu0
    %v470 = vadd.f32 %v111, %v469
    %v471 = vpop.f32.mrf.mxu0
    %v472 = vadd.f32 %v115, %v471
    %473 = vmatprep.mubr.bf16.mxu0 0
    %474 = vmatmul.mubr.bf16.gmra.mxu0 %v209
    %v475 = vpop.f32.mrf.mxu0
    %v476 = vadd.f32 %v111, %v475
    %v477 = vpop.f32.mrf.mxu0
    %v478 = vadd.f32 %v115, %v477
    %v479 = vpop.f32.mrf.mxu0
    %v480 = vadd.f32 %v111, %v479
    %v481 = vpop.f32.mrf.mxu0
    %v482 = vadd.f32 %v115, %v481
    %483 = vdwg.mxu0
    %vm484 = vcmp.gt.f32.partialorder %v246, 0.0
    %vm485 = vcmp.gt.f32.partialorder %v248, 0.0
    %vm486 = vcmp.gt.f32.partialorder %v250, 0.0
    %vm487 = vcmp.gt.f32.partialorder %v252, 0.0
    %vm488 = vcmp.gt.f32.partialorder %v256, 0.0
    %vm489 = vcmp.gt.f32.partialorder %v258, 0.0
    %vm490 = vcmp.gt.f32.partialorder %v260, 0.0
    %vm491 = vcmp.gt.f32.partialorder %v262, 0.0
    %vm492 = vcmp.gt.f32.partialorder %v266, 0.0
    %vm493 = vcmp.gt.f32.partialorder %v268, 0.0
    %vm494 = vcmp.gt.f32.partialorder %v270, 0.0
    %vm495 = vcmp.gt.f32.partialorder %v272, 0.0
    %vm496 = vcmp.gt.f32.partialorder %v276, 0.0
    %vm497 = vcmp.gt.f32.partialorder %v278, 0.0
    %vm498 = vcmp.gt.f32.partialorder %v280, 0.0
    %vm499 = vcmp.gt.f32.partialorder %v282, 0.0
    %vm500 = vcmp.gt.f32.partialorder %v286, 0.0
    %vm501 = vcmp.gt.f32.partialorder %v288, 0.0
    %vm502 = vcmp.gt.f32.partialorder %v290, 0.0
    %vm503 = vcmp.gt.f32.partialorder %v292, 0.0
    %vm504 = vcmp.gt.f32.partialorder %v296, 0.0
    %vm505 = vcmp.gt.f32.partialorder %v298, 0.0
    %vm506 = vcmp.gt.f32.partialorder %v300, 0.0
    %vm507 = vcmp.gt.f32.partialorder %v302, 0.0
    %vm508 = vcmp.gt.f32.partialorder %v306, 0.0
    %vm509 = vcmp.gt.f32.partialorder %v308, 0.0
    %vm510 = vcmp.gt.f32.partialorder %v310, 0.0
    %vm511 = vcmp.gt.f32.partialorder %v312, 0.0
    %vm512 = vcmp.gt.f32.partialorder %v316, 0.0
    %vm513 = vcmp.gt.f32.partialorder %v318, 0.0
    %vm514 = vcmp.gt.f32.partialorder %v320, 0.0
    %vm515 = vcmp.gt.f32.partialorder %v322, 0.0
    %vm516 = vcmp.gt.f32.partialorder %v326, 0.0
    %vm517 = vcmp.gt.f32.partialorder %v328, 0.0
    %vm518 = vcmp.gt.f32.partialorder %v330, 0.0
    %vm519 = vcmp.gt.f32.partialorder %v332, 0.0
    %vm520 = vcmp.gt.f32.partialorder %v336, 0.0
    %vm521 = vcmp.gt.f32.partialorder %v338, 0.0
    %vm522 = vcmp.gt.f32.partialorder %v340, 0.0
    %vm523 = vcmp.gt.f32.partialorder %v342, 0.0
    %vm524 = vcmp.gt.f32.partialorder %v346, 0.0
    %vm525 = vcmp.gt.f32.partialorder %v348, 0.0
    %vm526 = vcmp.gt.f32.partialorder %v350, 0.0
    %vm527 = vcmp.gt.f32.partialorder %v352, 0.0
    %vm528 = vcmp.gt.f32.partialorder %v356, 0.0
    %vm529 = vcmp.gt.f32.partialorder %v358, 0.0
    %vm530 = vcmp.gt.f32.partialorder %v360, 0.0
    %vm531 = vcmp.gt.f32.partialorder %v362, 0.0
    %vm532 = vcmp.gt.f32.partialorder %v366, 0.0
    %vm533 = vcmp.gt.f32.partialorder %v368, 0.0
    %vm534 = vcmp.gt.f32.partialorder %v370, 0.0
    %vm535 = vcmp.gt.f32.partialorder %v372, 0.0
    %vm536 = vcmp.gt.f32.partialorder %v376, 0.0
    %vm537 = vcmp.gt.f32.partialorder %v378, 0.0
    %vm538 = vcmp.gt.f32.partialorder %v380, 0.0
    %vm539 = vcmp.gt.f32.partialorder %v382, 0.0
    %vm540 = vcmp.gt.f32.partialorder %v386, 0.0
    %vm541 = vcmp.gt.f32.partialorder %v388, 0.0
    %vm542 = vcmp.gt.f32.partialorder %v390, 0.0
    %vm543 = vcmp.gt.f32.partialorder %v392, 0.0
    %vm544 = vcmp.gt.f32.partialorder %v396, 0.0
    %vm545 = vcmp.gt.f32.partialorder %v398, 0.0
    %vm546 = vcmp.gt.f32.partialorder %v400, 0.0
    %vm547 = vcmp.gt.f32.partialorder %v402, 0.0
    %vm548 = vcmp.gt.f32.partialorder %v406, 0.0
    %vm549 = vcmp.gt.f32.partialorder %v408, 0.0
    %vm550 = vcmp.gt.f32.partialorder %v410, 0.0
    %vm551 = vcmp.gt.f32.partialorder %v412, 0.0
    %vm552 = vcmp.gt.f32.partialorder %v416, 0.0
    %vm553 = vcmp.gt.f32.partialorder %v418, 0.0
    %vm554 = vcmp.gt.f32.partialorder %v420, 0.0
    %vm555 = vcmp.gt.f32.partialorder %v422, 0.0
    %vm556 = vcmp.gt.f32.partialorder %v426, 0.0
    %vm557 = vcmp.gt.f32.partialorder %v428, 0.0
    %vm558 = vcmp.gt.f32.partialorder %v430, 0.0
    %vm559 = vcmp.gt.f32.partialorder %v432, 0.0
    %vm560 = vcmp.gt.f32.partialorder %v436, 0.0
    %vm561 = vcmp.gt.f32.partialorder %v438, 0.0
    %vm562 = vcmp.gt.f32.partialorder %v440, 0.0
    %vm563 = vcmp.gt.f32.partialorder %v442, 0.0
    %vm564 = vcmp.gt.f32.partialorder %v446, 0.0
    %vm565 = vcmp.gt.f32.partialorder %v448, 0.0
    %vm566 = vcmp.gt.f32.partialorder %v450, 0.0
    %vm567 = vcmp.gt.f32.partialorder %v452, 0.0
    %vm568 = vcmp.gt.f32.partialorder %v456, 0.0
    %vm569 = vcmp.gt.f32.partialorder %v458, 0.0
    %vm570 = vcmp.gt.f32.partialorder %v460, 0.0
    %vm571 = vcmp.gt.f32.partialorder %v462, 0.0
    %vm572 = vcmp.gt.f32.partialorder %v466, 0.0
    %vm573 = vcmp.gt.f32.partialorder %v468, 0.0
    %vm574 = vcmp.gt.f32.partialorder %v470, 0.0
    %vm575 = vcmp.gt.f32.partialorder %v472, 0.0
    %vm576 = vcmp.gt.f32.partialorder %v476, 0.0
    %vm577 = vcmp.gt.f32.partialorder %v478, 0.0
    %vm578 = vcmp.gt.f32.partialorder %v480, 0.0
    %vm579 = vcmp.gt.f32.partialorder %v482, 0.0
    %v580 = vmul.f32 %v246, 0.2
    %v581 = vmul.f32 %v248, 0.2
    %v582 = vmul.f32 %v250, 0.2
    %v583 = vmul.f32 %v252, 0.2
    %v584 = vmul.f32 %v256, 0.2
    %v585 = vmul.f32 %v258, 0.2
    %v586 = vmul.f32 %v260, 0.2
    %v587 = vmul.f32 %v262, 0.2
    %v588 = vmul.f32 %v266, 0.2
    %v589 = vmul.f32 %v268, 0.2
    %v590 = vmul.f32 %v270, 0.2
    %v591 = vmul.f32 %v272, 0.2
    %v592 = vmul.f32 %v276, 0.2
    %v593 = vmul.f32 %v278, 0.2
    %v594 = vmul.f32 %v280, 0.2
    %v595 = vmul.f32 %v282, 0.2
    %v596 = vmul.f32 %v286, 0.2
    %v597 = vmul.f32 %v288, 0.2
    %v598 = vmul.f32 %v290, 0.2
    %v599 = vmul.f32 %v292, 0.2
    %v600 = vmul.f32 %v296, 0.2
    %v601 = vmul.f32 %v298, 0.2
    %v602 = vmul.f32 %v300, 0.2
    %v603 = vmul.f32 %v302, 0.2
    %v604 = vmul.f32 %v306, 0.2
    %v605 = vmul.f32 %v308, 0.2
    %v606 = vmul.f32 %v310, 0.2
    %v607 = vmul.f32 %v312, 0.2
    %v608 = vmul.f32 %v316, 0.2
    %v609 = vmul.f32 %v318, 0.2
    %v610 = vmul.f32 %v320, 0.2
    %v611 = vmul.f32 %v322, 0.2
    %v612 = vmul.f32 %v326, 0.2
    %v613 = vmul.f32 %v328, 0.2
    %v614 = vmul.f32 %v330, 0.2
    %v615 = vmul.f32 %v332, 0.2
    %v616 = vmul.f32 %v336, 0.2
    %v617 = vmul.f32 %v338, 0.2
    %v618 = vmul.f32 %v340, 0.2
    %v619 = vmul.f32 %v342, 0.2
    %v620 = vmul.f32 %v346, 0.2
    %v621 = vmul.f32 %v348, 0.2
    %v622 = vmul.f32 %v350, 0.2
    %v623 = vmul.f32 %v352, 0.2
    %v624 = vmul.f32 %v356, 0.2
    %v625 = vmul.f32 %v358, 0.2
    %v626 = vmul.f32 %v360, 0.2
    %v627 = vmul.f32 %v362, 0.2
    %v628 = vmul.f32 %v366, 0.2
    %v629 = vmul.f32 %v368, 0.2
    %v630 = vmul.f32 %v370, 0.2
    %v631 = vmul.f32 %v372, 0.2
    %v632 = vmul.f32 %v376, 0.2
    %v633 = vmul.f32 %v378, 0.2
    %v634 = vmul.f32 %v380, 0.2
    %v635 = vmul.f32 %v382, 0.2
    %v636 = vmul.f32 %v386, 0.2
    %v637 = vmul.f32 %v388, 0.2
    %v638 = vmul.f32 %v390, 0.2
    %v639 = vmul.f32 %v392, 0.2
    %v640 = vmul.f32 %v396, 0.2
    %v641 = vmul.f32 %v398, 0.2
    %v642 = vmul.f32 %v400, 0.2
    %v643 = vmul.f32 %v402, 0.2
    %v644 = vmul.f32 %v406, 0.2
    %v645 = vmul.f32 %v408, 0.2
    %v646 = vmul.f32 %v410, 0.2
    %v647 = vmul.f32 %v412, 0.2
    %v648 = vmul.f32 %v416, 0.2
    %v649 = vmul.f32 %v418, 0.2
    %v650 = vmul.f32 %v420, 0.2
    %v651 = vmul.f32 %v422, 0.2
    %v652 = vmul.f32 %v426, 0.2
    %v653 = vmul.f32 %v428, 0.2
    %v654 = vmul.f32 %v430, 0.2
    %v655 = vmul.f32 %v432, 0.2
    %v656 = vmul.f32 %v436, 0.2
    %v657 = vmul.f32 %v438, 0.2
    %v658 = vmul.f32 %v440, 0.2
    %v659 = vmul.f32 %v442, 0.2
    %v660 = vmul.f32 %v446, 0.2
    %v661 = vmul.f32 %v448, 0.2
    %v662 = vmul.f32 %v450, 0.2
    %v663 = vmul.f32 %v452, 0.2
    %v664 = vmul.f32 %v456, 0.2
    %v665 = vmul.f32 %v458, 0.2
    %v666 = vmul.f32 %v460, 0.2
    %v667 = vmul.f32 %v462, 0.2
    %v668 = vmul.f32 %v466, 0.2
    %v669 = vmul.f32 %v468, 0.2
    %v670 = vmul.f32 %v470, 0.2
    %v671 = vmul.f32 %v472, 0.2
    %v672 = vmul.f32 %v476, 0.2
    %v673 = vmul.f32 %v478, 0.2
    %v674 = vmul.f32 %v480, 0.2
    %v675 = vmul.f32 %v482, 0.2
    %v676 = vsel %vm484, %v246, %v580
    %v677 = vsel %vm485, %v248, %v581
    %v678 = vsel %vm486, %v250, %v582
    %v679 = vsel %vm487, %v252, %v583
    %v680 = vsel %vm488, %v256, %v584
    %v681 = vsel %vm489, %v258, %v585
    %v682 = vsel %vm490, %v260, %v586
    %v683 = vsel %vm491, %v262, %v587
    %v684 = vsel %vm492, %v266, %v588
    %v685 = vsel %vm493, %v268, %v589
    %v686 = vsel %vm494, %v270, %v590
    %v687 = vsel %vm495, %v272, %v591
    %v688 = vsel %vm496, %v276, %v592
    %v689 = vsel %vm497, %v278, %v593
    %v690 = vsel %vm498, %v280, %v594
    %v691 = vsel %vm499, %v282, %v595
    %v692 = vsel %vm500, %v286, %v596
    %v693 = vsel %vm501, %v288, %v597
    %v694 = vsel %vm502, %v290, %v598
    %v695 = vsel %vm503, %v292, %v599
    %v696 = vsel %vm504, %v296, %v600
    %v697 = vsel %vm505, %v298, %v601
    %v698 = vsel %vm506, %v300, %v602
    %v699 = vsel %vm507, %v302, %v603
    %v700 = vsel %vm508, %v306, %v604
    %v701 = vsel %vm509, %v308, %v605
    %v702 = vsel %vm510, %v310, %v606
    %v703 = vsel %vm511, %v312, %v607
    %v704 = vsel %vm512, %v316, %v608
    %v705 = vsel %vm513, %v318, %v609
    %v706 = vsel %vm514, %v320, %v610
    %v707 = vsel %vm515, %v322, %v611
    %v708 = vsel %vm516, %v326, %v612
    %v709 = vsel %vm517, %v328, %v613
    %v710 = vsel %vm518, %v330, %v614
    %v711 = vsel %vm519, %v332, %v615
    %v712 = vsel %vm520, %v336, %v616
    %v713 = vsel %vm521, %v338, %v617
    %v714 = vsel %vm522, %v340, %v618
    %v715 = vsel %vm523, %v342, %v619
    %v716 = vsel %vm524, %v346, %v620
    %v717 = vsel %vm525, %v348, %v621
    %v718 = vsel %vm526, %v350, %v622
    %v719 = vsel %vm527, %v352, %v623
    %v720 = vsel %vm528, %v356, %v624
    %v721 = vsel %vm529, %v358, %v625
    %v722 = vsel %vm530, %v360, %v626
    %v723 = vsel %vm531, %v362, %v627
    %v724 = vsel %vm532, %v366, %v628
    %v725 = vsel %vm533, %v368, %v629
    %v726 = vsel %vm534, %v370, %v630
    %v727 = vsel %vm535, %v372, %v631
    %v728 = vsel %vm536, %v376, %v632
    %v729 = vsel %vm537, %v378, %v633
    %v730 = vsel %vm538, %v380, %v634
    %v731 = vsel %vm539, %v382, %v635
    %v732 = vsel %vm540, %v386, %v636
    %v733 = vsel %vm541, %v388, %v637
    %v734 = vsel %vm542, %v390, %v638
    %v735 = vsel %vm543, %v392, %v639
    %v736 = vsel %vm544, %v396, %v640
    %v737 = vsel %vm545, %v398, %v641
    %v738 = vsel %vm546, %v400, %v642
    %v739 = vsel %vm547, %v402, %v643
    %v740 = vsel %vm548, %v406, %v644
    %v741 = vsel %vm549, %v408, %v645
    %v742 = vsel %vm550, %v410, %v646
    %v743 = vsel %vm551, %v412, %v647
    %v744 = vsel %vm552, %v416, %v648
    %v745 = vsel %vm553, %v418, %v649
    %v746 = vsel %vm554, %v420, %v650
    %v747 = vsel %vm555, %v422, %v651
    %v748 = vsel %vm556, %v426, %v652
    %v749 = vsel %vm557, %v428, %v653
    %v750 = vsel %vm558, %v430, %v654
    %v751 = vsel %vm559, %v432, %v655
    %v752 = vsel %vm560, %v436, %v656
    %v753 = vsel %vm561, %v438, %v657
    %v754 = vsel %vm562, %v440, %v658
    %v755 = vsel %vm563, %v442, %v659
    %v756 = vsel %vm564, %v446, %v660
    %v757 = vsel %vm565, %v448, %v661
    %v758 = vsel %vm566, %v450, %v662
    %v759 = vsel %vm567, %v452, %v663
    %v760 = vsel %vm568, %v456, %v664
    %v761 = vsel %vm569, %v458, %v665
    %v762 = vsel %vm570, %v460, %v666
    %v763 = vsel %vm571, %v462, %v667
    %v764 = vsel %vm572, %v466, %v668
    %v765 = vsel %vm573, %v468, %v669
    %v766 = vsel %vm574, %v470, %v670
    %v767 = vsel %vm575, %v472, %v671
    %v768 = vsel %vm576, %v476, %v672
    %v769 = vsel %vm577, %v478, %v673
    %v770 = vsel %vm578, %v480, %v674
    %v771 = vsel %vm579, %v482, %v675
    %v772 = vpack.c.bf16 %v678, %v676
    %v773 = vpack.c.bf16 %v679, %v677
    %v774 = vpack.c.bf16 %v682, %v680
    %v775 = vpack.c.bf16 %v683, %v681
    %v776 = vpack.c.bf16 %v686, %v684
    %v777 = vpack.c.bf16 %v687, %v685
    %v778 = vpack.c.bf16 %v690, %v688
    %v779 = vpack.c.bf16 %v691, %v689
    %v780 = vpack.c.bf16 %v694, %v692
    %v781 = vpack.c.bf16 %v695, %v693
    %v782 = vpack.c.bf16 %v698, %v696
    %v783 = vpack.c.bf16 %v699, %v697
    %v784 = vpack.c.bf16 %v702, %v700
    %v785 = vpack.c.bf16 %v703, %v701
    %v786 = vpack.c.bf16 %v706, %v704
    %v787 = vpack.c.bf16 %v707, %v705
    %v788 = vpack.c.bf16 %v710, %v708
    %v789 = vpack.c.bf16 %v711, %v709
    %v790 = vpack.c.bf16 %v714, %v712
    %v791 = vpack.c.bf16 %v715, %v713
    %v792 = vpack.c.bf16 %v718, %v716
    %v793 = vpack.c.bf16 %v719, %v717
    %v794 = vpack.c.bf16 %v722, %v720
    %v795 = vpack.c.bf16 %v723, %v721
    %v796 = vpack.c.bf16 %v726, %v724
    %v797 = vpack.c.bf16 %v727, %v725
    %v798 = vpack.c.bf16 %v730, %v728
    %v799 = vpack.c.bf16 %v731, %v729
    %v800 = vpack.c.bf16 %v734, %v732
    %v801 = vpack.c.bf16 %v735, %v733
    %v802 = vpack.c.bf16 %v738, %v736
    %v803 = vpack.c.bf16 %v739, %v737
    %v804 = vpack.c.bf16 %v742, %v740
    %v805 = vpack.c.bf16 %v743, %v741
    %v806 = vpack.c.bf16 %v746, %v744
    %v807 = vpack.c.bf16 %v747, %v745
    %v808 = vpack.c.bf16 %v750, %v748
    %v809 = vpack.c.bf16 %v751, %v749
    %v810 = vpack.c.bf16 %v754, %v752
    %v811 = vpack.c.bf16 %v755, %v753
    %v812 = vpack.c.bf16 %v758, %v756
    %v813 = vpack.c.bf16 %v759, %v757
    %v814 = vpack.c.bf16 %v762, %v760
    %v815 = vpack.c.bf16 %v763, %v761
    %v816 = vpack.c.bf16 %v766, %v764
    %v817 = vpack.c.bf16 %v767, %v765
    %v818 = vpack.c.bf16 %v770, %v768
    %v819 = vpack.c.bf16 %v771, %v769
    %v820 = vld [vmem:[%s3] sm:$0xf]
    %v821 = vld [vmem:[%s3 + $0x4] sm:$0xf]
    %v822 = vld [vmem:[%s3 + $0x8] sm:$0xf]
    %v823 = vld [vmem:[%s3 + $0xc] sm:$0xf]
    %v824 = vld [vmem:[%s3 + $0x10] sm:$0xf]
    %v825 = vld [vmem:[%s3 + $0x14] sm:$0xf]
    %v826 = vld [vmem:[%s3 + $0x18] sm:$0xf]
    %v827 = vld [vmem:[%s3 + $0x1c] sm:$0xf]
    %v828 = vld [vmem:[%s3 + $0x20] sm:$0xf]
    %v829 = vld [vmem:[%s3 + $0x24] sm:$0xf]
    %v830 = vld [vmem:[%s3 + $0x28] sm:$0xf]
    %v831 = vld [vmem:[%s3 + $0x2c] sm:$0xf]
    %v832 = vld [vmem:[%s3 + $0x30] sm:$0xf]
    %v833 = vld [vmem:[%s3 + $0x34] sm:$0xf]
    %v834 = vld [vmem:[%s3 + $0x38] sm:$0xf]
    %v835 = vld [vmem:[%s3 + $0x3c] sm:$0xf]
    %v836 = vld [vmem:[%s3 + $0x40] sm:$0xf]
    %v837 = vld [vmem:[%s3 + $0x44] sm:$0xf]
    %v838 = vld [vmem:[%s3 + $0x48] sm:$0xf]
    %v839 = vld [vmem:[%s3 + $0x4c] sm:$0xf]
    %v840 = vld [vmem:[%s3 + $0x50] sm:$0xf]
    %v841 = vld [vmem:[%s3 + $0x54] sm:$0xf]
    %v842 = vld [vmem:[%s3 + $0x58] sm:$0xf]
    %v843 = vld [vmem:[%s3 + $0x5c] sm:$0xf]
    %v844 = vld [vmem:[%s3 + $0x60] sm:$0xf]
    %v845 = vld [vmem:[%s3 + $0x64] sm:$0xf]
    %v846 = vld [vmem:[%s3 + $0x68] sm:$0xf]
    %v847 = vld [vmem:[%s3 + $0x6c] sm:$0xf]
    %v848 = vld [vmem:[%s3 + $0x70] sm:$0xf]
    %v849 = vld [vmem:[%s3 + $0x74] sm:$0xf]
    %v850 = vld [vmem:[%s3 + $0x78] sm:$0xf]
    %v851 = vld [vmem:[%s3 + $0x7c] sm:$0xf]
    %v852 = vld [vmem:[%s4] sm:$0x1]
    %v854 = vlaneseq
    %v855 = vshrl.u32 %v854, 7
    %v856 = vsub.s32 0, %v855
    %v857 = vrot.slane %v852, %v856
    %v891 = vunpack.c.l.b16 %v820
    %v892 = vunpack.c.l.b16 %v821
    %v893 = vunpack.c.l.b16 %v822
    %v894 = vunpack.c.l.b16 %v823
    %v895 = vunpack.c.l.b16 %v824
    %v896 = vunpack.c.l.b16 %v825
    %v897 = vunpack.c.l.b16 %v826
    %v898 = vunpack.c.l.b16 %v827
    %v899 = vunpack.c.l.b16 %v828
    %v900 = vunpack.c.l.b16 %v829
    %v901 = vunpack.c.l.b16 %v830
    %v902 = vunpack.c.l.b16 %v831
    %v903 = vunpack.c.l.b16 %v832
    %v904 = vunpack.c.l.b16 %v833
    %v905 = vunpack.c.l.b16 %v834
    %v906 = vunpack.c.l.b16 %v835
    %v907 = vunpack.c.l.b16 %v836
    %v908 = vunpack.c.l.b16 %v837
    %v909 = vunpack.c.l.b16 %v838
    %v910 = vunpack.c.l.b16 %v839
    %v911 = vunpack.c.l.b16 %v840
    %v912 = vunpack.c.l.b16 %v841
    %v913 = vunpack.c.l.b16 %v842
    %v914 = vunpack.c.l.b16 %v843
    %v915 = vunpack.c.l.b16 %v844
    %v916 = vunpack.c.l.b16 %v845
    %v917 = vunpack.c.l.b16 %v846
    %v918 = vunpack.c.l.b16 %v847
    %v919 = vunpack.c.l.b16 %v848
    %v920 = vunpack.c.l.b16 %v849
    %v921 = vunpack.c.l.b16 %v850
    %v922 = vunpack.c.l.b16 %v851
    %v923 = vpack.c.b16 %v892, %v891
    %v924 = vpack.c.b16 %v894, %v893
    %v925 = vpack.c.b16 %v896, %v895
    %v926 = vpack.c.b16 %v898, %v897
    %v927 = vpack.c.b16 %v900, %v899
    %v928 = vpack.c.b16 %v902, %v901
    %v929 = vpack.c.b16 %v904, %v903
    %v930 = vpack.c.b16 %v906, %v905
    %v931 = vpack.c.b16 %v908, %v907
    %v932 = vpack.c.b16 %v910, %v909
    %v933 = vpack.c.b16 %v912, %v911
    %v934 = vpack.c.b16 %v914, %v913
    %v935 = vpack.c.b16 %v916, %v915
    %v936 = vpack.c.b16 %v918, %v917
    %v937 = vpack.c.b16 %v920, %v919
    %v938 = vpack.c.b16 %v922, %v921
    %955 = vmatprep.subr.bf16.mxu0 0
    %956 = vmatpush1.bf16.msra.mxu0 %v930
    %957 = vmatprep.subr.bf16.mxu0 0
    %958 = vmatpush1.bf16.msra.mxu0 %v929
    %959 = vmatprep.subr.bf16.mxu0 0
    %960 = vmatpush1.bf16.msra.mxu0 %v928
    %961 = vmatprep.subr.bf16.mxu0 0
    %962 = vmatpush1.bf16.msra.mxu0 %v927
    %963 = vmatprep.subr.bf16.mxu0 0
    %964 = vmatpush1.bf16.msra.mxu0 %v926
    %965 = vmatprep.subr.bf16.mxu0 0
    %966 = vmatpush1.bf16.msra.mxu0 %v925
    %967 = vmatprep.subr.bf16.mxu0 0
    %968 = vmatpush1.bf16.msra.mxu0 %v924
    %969 = vmatprep.subr.bf16.mxu0 0
    %970 = vmatpush1.bf16.msra.mxu0 %v923
    %971 = vmatprep.subr.bf16.mxu0 0
    %972 = vmatpush2.bf16.msra.mxu0 %v938
    %973 = vmatprep.subr.bf16.mxu0 0
    %974 = vmatpush2.bf16.msra.mxu0 %v937
    %975 = vmatprep.subr.bf16.mxu0 0
    %976 = vmatpush2.bf16.msra.mxu0 %v936
    %977 = vmatprep.subr.bf16.mxu0 0
    %978 = vmatpush2.bf16.msra.mxu0 %v935
    %979 = vmatprep.subr.bf16.mxu0 0
    %980 = vmatpush2.bf16.msra.mxu0 %v934
    %981 = vmatprep.subr.bf16.mxu0 0
    %982 = vmatpush2.bf16.msra.mxu0 %v933
    %983 = vmatprep.subr.bf16.mxu0 0
    %984 = vmatpush2.bf16.msra.mxu0 %v932
    %985 = vmatprep.subr.bf16.mxu0 0
    %986 = vmatpush2.bf16.msra.mxu0 %v931
    %987 = vmatprep.mubr.bf16.mxu0 %v773
    %988 = vmatmul.mubr.bf16.gmra.mxu0 %v772
    %v989 = vpop.f32.mrf.mxu0
    %v990 = vadd.f32 %v857, %v989
    %v991 = vpop.f32.mrf.mxu0
    %v992 = vpop.f32.mrf.mxu0
    %v993 = vadd.f32 %v857, %v992
    %v994 = vpop.f32.mrf.mxu0
    %995 = vmatprep.mubr.bf16.mxu0 %v775
    %996 = vmatmul.mubr.bf16.gmra.mxu0 %v774
    %v997 = vpop.f32.mrf.mxu0
    %v998 = vadd.f32 %v857, %v997
    %v999 = vpop.f32.mrf.mxu0
    %v1000 = vpop.f32.mrf.mxu0
    %v1001 = vadd.f32 %v857, %v1000
    %v1002 = vpop.f32.mrf.mxu0
    %1003 = vmatprep.mubr.bf16.mxu0 %v777
    %1004 = vmatmul.mubr.bf16.gmra.mxu0 %v776
    %v1005 = vpop.f32.mrf.mxu0
    %v1006 = vadd.f32 %v857, %v1005
    %v1007 = vpop.f32.mrf.mxu0
    %v1008 = vpop.f32.mrf.mxu0
    %v1009 = vadd.f32 %v857, %v1008
    %v1010 = vpop.f32.mrf.mxu0
    %1011 = vmatprep.mubr.bf16.mxu0 %v779
    %1012 = vmatmul.mubr.bf16.gmra.mxu0 %v778
    %v1013 = vpop.f32.mrf.mxu0
    %v1014 = vadd.f32 %v857, %v1013
    %v1015 = vpop.f32.mrf.mxu0
    %v1016 = vpop.f32.mrf.mxu0
    %v1017 = vadd.f32 %v857, %v1016
    %v1018 = vpop.f32.mrf.mxu0
    %1019 = vmatprep.mubr.bf16.mxu0 %v781
    %1020 = vmatmul.mubr.bf16.gmra.mxu0 %v780
    %v1021 = vpop.f32.mrf.mxu0
    %v1022 = vadd.f32 %v857, %v1021
    %v1023 = vpop.f32.mrf.mxu0
    %v1024 = vpop.f32.mrf.mxu0
    %v1025 = vadd.f32 %v857, %v1024
    %v1026 = vpop.f32.mrf.mxu0
    %1027 = vmatprep.mubr.bf16.mxu0 %v783
    %1028 = vmatmul.mubr.bf16.gmra.mxu0 %v782
    %v1029 = vpop.f32.mrf.mxu0
    %v1030 = vadd.f32 %v857, %v1029
    %v1031 = vpop.f32.mrf.mxu0
    %v1032 = vpop.f32.mrf.mxu0
    %v1033 = vadd.f32 %v857, %v1032
    %v1034 = vpop.f32.mrf.mxu0
    %1035 = vmatprep.mubr.bf16.mxu0 %v785
    %1036 = vmatmul.mubr.bf16.gmra.mxu0 %v784
    %v1037 = vpop.f32.mrf.mxu0
    %v1038 = vadd.f32 %v857, %v1037
    %v1039 = vpop.f32.mrf.mxu0
    %v1040 = vpop.f32.mrf.mxu0
    %v1041 = vadd.f32 %v857, %v1040
    %v1042 = vpop.f32.mrf.mxu0
    %1043 = vmatprep.mubr.bf16.mxu0 %v787
    %1044 = vmatmul.mubr.bf16.gmra.mxu0 %v786
    %v1045 = vpop.f32.mrf.mxu0
    %v1046 = vadd.f32 %v857, %v1045
    %v1047 = vpop.f32.mrf.mxu0
    %v1048 = vpop.f32.mrf.mxu0
    %v1049 = vadd.f32 %v857, %v1048
    %v1050 = vpop.f32.mrf.mxu0
    %1051 = vmatprep.mubr.bf16.mxu0 %v789
    %1052 = vmatmul.mubr.bf16.gmra.mxu0 %v788
    %v1053 = vpop.f32.mrf.mxu0
    %v1054 = vadd.f32 %v857, %v1053
    %v1055 = vpop.f32.mrf.mxu0
    %v1056 = vpop.f32.mrf.mxu0
    %v1057 = vadd.f32 %v857, %v1056
    %v1058 = vpop.f32.mrf.mxu0
    %1059 = vmatprep.mubr.bf16.mxu0 %v791
    %1060 = vmatmul.mubr.bf16.gmra.mxu0 %v790
    %v1061 = vpop.f32.mrf.mxu0
    %v1062 = vadd.f32 %v857, %v1061
    %v1063 = vpop.f32.mrf.mxu0
    %v1064 = vpop.f32.mrf.mxu0
    %v1065 = vadd.f32 %v857, %v1064
    %v1066 = vpop.f32.mrf.mxu0
    %1067 = vmatprep.mubr.bf16.mxu0 %v793
    %1068 = vmatmul.mubr.bf16.gmra.mxu0 %v792
    %v1069 = vpop.f32.mrf.mxu0
    %v1070 = vadd.f32 %v857, %v1069
    %v1071 = vpop.f32.mrf.mxu0
    %v1072 = vpop.f32.mrf.mxu0
    %v1073 = vadd.f32 %v857, %v1072
    %v1074 = vpop.f32.mrf.mxu0
    %1075 = vmatprep.mubr.bf16.mxu0 %v795
    %1076 = vmatmul.mubr.bf16.gmra.mxu0 %v794
    %v1077 = vpop.f32.mrf.mxu0
    %v1078 = vadd.f32 %v857, %v1077
    %v1079 = vpop.f32.mrf.mxu0
    %v1080 = vpop.f32.mrf.mxu0
    %v1081 = vadd.f32 %v857, %v1080
    %v1082 = vpop.f32.mrf.mxu0
    %1083 = vmatprep.mubr.bf16.mxu0 %v797
    %1084 = vmatmul.mubr.bf16.gmra.mxu0 %v796
    %v1085 = vpop.f32.mrf.mxu0
    %v1086 = vadd.f32 %v857, %v1085
    %v1087 = vpop.f32.mrf.mxu0
    %v1088 = vpop.f32.mrf.mxu0
    %v1089 = vadd.f32 %v857, %v1088
    %v1090 = vpop.f32.mrf.mxu0
    %1091 = vmatprep.mubr.bf16.mxu0 %v799
    %1092 = vmatmul.mubr.bf16.gmra.mxu0 %v798
    %v1093 = vpop.f32.mrf.mxu0
    %v1094 = vadd.f32 %v857, %v1093
    %v1095 = vpop.f32.mrf.mxu0
    %v1096 = vpop.f32.mrf.mxu0
    %v1097 = vadd.f32 %v857, %v1096
    %v1098 = vpop.f32.mrf.mxu0
    %1099 = vmatprep.mubr.bf16.mxu0 %v801
    %1100 = vmatmul.mubr.bf16.gmra.mxu0 %v800
    %v1101 = vpop.f32.mrf.mxu0
    %v1102 = vadd.f32 %v857, %v1101
    %v1103 = vpop.f32.mrf.mxu0
    %v1104 = vpop.f32.mrf.mxu0
    %v1105 = vadd.f32 %v857, %v1104
    %v1106 = vpop.f32.mrf.mxu0
    %1107 = vmatprep.mubr.bf16.mxu0 %v803
    %1108 = vmatmul.mubr.bf16.gmra.mxu0 %v802
    %v1109 = vpop.f32.mrf.mxu0
    %v1110 = vadd.f32 %v857, %v1109
    %v1111 = vpop.f32.mrf.mxu0
    %v1112 = vpop.f32.mrf.mxu0
    %v1113 = vadd.f32 %v857, %v1112
    %v1114 = vpop.f32.mrf.mxu0
    %1115 = vmatprep.mubr.bf16.mxu0 %v805
    %1116 = vmatmul.mubr.bf16.gmra.mxu0 %v804
    %v1117 = vpop.f32.mrf.mxu0
    %v1118 = vadd.f32 %v857, %v1117
    %v1119 = vpop.f32.mrf.mxu0
    %v1120 = vpop.f32.mrf.mxu0
    %v1121 = vadd.f32 %v857, %v1120
    %v1122 = vpop.f32.mrf.mxu0
    %1123 = vmatprep.mubr.bf16.mxu0 %v807
    %1124 = vmatmul.mubr.bf16.gmra.mxu0 %v806
    %v1125 = vpop.f32.mrf.mxu0
    %v1126 = vadd.f32 %v857, %v1125
    %v1127 = vpop.f32.mrf.mxu0
    %v1128 = vpop.f32.mrf.mxu0
    %v1129 = vadd.f32 %v857, %v1128
    %v1130 = vpop.f32.mrf.mxu0
    %1131 = vmatprep.mubr.bf16.mxu0 %v809
    %1132 = vmatmul.mubr.bf16.gmra.mxu0 %v808
    %v1133 = vpop.f32.mrf.mxu0
    %v1134 = vadd.f32 %v857, %v1133
    %v1135 = vpop.f32.mrf.mxu0
    %v1136 = vpop.f32.mrf.mxu0
    %v1137 = vadd.f32 %v857, %v1136
    %v1138 = vpop.f32.mrf.mxu0
    %1139 = vmatprep.mubr.bf16.mxu0 %v811
    %1140 = vmatmul.mubr.bf16.gmra.mxu0 %v810
    %v1141 = vpop.f32.mrf.mxu0
    %v1142 = vadd.f32 %v857, %v1141
    %v1143 = vpop.f32.mrf.mxu0
    %v1144 = vpop.f32.mrf.mxu0
    %v1145 = vadd.f32 %v857, %v1144
    %v1146 = vpop.f32.mrf.mxu0
    %1147 = vmatprep.mubr.bf16.mxu0 %v813
    %1148 = vmatmul.mubr.bf16.gmra.mxu0 %v812
    %v1149 = vpop.f32.mrf.mxu0
    %v1150 = vadd.f32 %v857, %v1149
    %v1151 = vpop.f32.mrf.mxu0
    %v1152 = vpop.f32.mrf.mxu0
    %v1153 = vadd.f32 %v857, %v1152
    %v1154 = vpop.f32.mrf.mxu0
    %1155 = vmatprep.mubr.bf16.mxu0 %v815
    %1156 = vmatmul.mubr.bf16.gmra.mxu0 %v814
    %v1157 = vpop.f32.mrf.mxu0
    %v1158 = vadd.f32 %v857, %v1157
    %v1159 = vpop.f32.mrf.mxu0
    %v1160 = vpop.f32.mrf.mxu0
    %v1161 = vadd.f32 %v857, %v1160
    %v1162 = vpop.f32.mrf.mxu0
    %1163 = vmatprep.mubr.bf16.mxu0 %v817
    %1164 = vmatmul.mubr.bf16.gmra.mxu0 %v816
    %v1165 = vpop.f32.mrf.mxu0
    %v1166 = vadd.f32 %v857, %v1165
    %v1167 = vpop.f32.mrf.mxu0
    %v1168 = vpop.f32.mrf.mxu0
    %v1169 = vadd.f32 %v857, %v1168
    %v1170 = vpop.f32.mrf.mxu0
    %1171 = vmatprep.mubr.bf16.mxu0 %v819
    %1172 = vmatmul.mubr.bf16.gmra.mxu0 %v818
    %v1173 = vpop.f32.mrf.mxu0
    %v1174 = vadd.f32 %v857, %v1173
    %v1175 = vpop.f32.mrf.mxu0
    %v1176 = vpop.f32.mrf.mxu0
    %v1177 = vadd.f32 %v857, %v1176
    %v1178 = vpop.f32.mrf.mxu0
    %1179 = vdwg.mxu0
    %vm1180 = vcmp.gt.f32.partialorder %v990, 0.0
    %vm1181 = vcmp.gt.f32.partialorder %v993, 0.0
    %vm1182 = vcmp.gt.f32.partialorder %v998, 0.0
    %vm1183 = vcmp.gt.f32.partialorder %v1001, 0.0
    %vm1184 = vcmp.gt.f32.partialorder %v1006, 0.0
    %vm1185 = vcmp.gt.f32.partialorder %v1009, 0.0
    %vm1186 = vcmp.gt.f32.partialorder %v1014, 0.0
    %vm1187 = vcmp.gt.f32.partialorder %v1017, 0.0
    %vm1188 = vcmp.gt.f32.partialorder %v1022, 0.0
    %vm1189 = vcmp.gt.f32.partialorder %v1025, 0.0
    %vm1190 = vcmp.gt.f32.partialorder %v1030, 0.0
    %vm1191 = vcmp.gt.f32.partialorder %v1033, 0.0
    %vm1192 = vcmp.gt.f32.partialorder %v1038, 0.0
    %vm1193 = vcmp.gt.f32.partialorder %v1041, 0.0
    %vm1194 = vcmp.gt.f32.partialorder %v1046, 0.0
    %vm1195 = vcmp.gt.f32.partialorder %v1049, 0.0
    %vm1196 = vcmp.gt.f32.partialorder %v1054, 0.0
    %vm1197 = vcmp.gt.f32.partialorder %v1057, 0.0
    %vm1198 = vcmp.gt.f32.partialorder %v1062, 0.0
    %vm1199 = vcmp.gt.f32.partialorder %v1065, 0.0
    %vm1200 = vcmp.gt.f32.partialorder %v1070, 0.0
    %vm1201 = vcmp.gt.f32.partialorder %v1073, 0.0
    %vm1202 = vcmp.gt.f32.partialorder %v1078, 0.0
    %vm1203 = vcmp.gt.f32.partialorder %v1081, 0.0
    %vm1204 = vcmp.gt.f32.partialorder %v1086, 0.0
    %vm1205 = vcmp.gt.f32.partialorder %v1089, 0.0
    %vm1206 = vcmp.gt.f32.partialorder %v1094, 0.0
    %vm1207 = vcmp.gt.f32.partialorder %v1097, 0.0
    %vm1208 = vcmp.gt.f32.partialorder %v1102, 0.0
    %vm1209 = vcmp.gt.f32.partialorder %v1105, 0.0
    %vm1210 = vcmp.gt.f32.partialorder %v1110, 0.0
    %vm1211 = vcmp.gt.f32.partialorder %v1113, 0.0
    %vm1212 = vcmp.gt.f32.partialorder %v1118, 0.0
    %vm1213 = vcmp.gt.f32.partialorder %v1121, 0.0
    %vm1214 = vcmp.gt.f32.partialorder %v1126, 0.0
    %vm1215 = vcmp.gt.f32.partialorder %v1129, 0.0
    %vm1216 = vcmp.gt.f32.partialorder %v1134, 0.0
    %vm1217 = vcmp.gt.f32.partialorder %v1137, 0.0
    %vm1218 = vcmp.gt.f32.partialorder %v1142, 0.0
    %vm1219 = vcmp.gt.f32.partialorder %v1145, 0.0
    %vm1220 = vcmp.gt.f32.partialorder %v1150, 0.0
    %vm1221 = vcmp.gt.f32.partialorder %v1153, 0.0
    %vm1222 = vcmp.gt.f32.partialorder %v1158, 0.0
    %vm1223 = vcmp.gt.f32.partialorder %v1161, 0.0
    %vm1224 = vcmp.gt.f32.partialorder %v1166, 0.0
    %vm1225 = vcmp.gt.f32.partialorder %v1169, 0.0
    %vm1226 = vcmp.gt.f32.partialorder %v1174, 0.0
    %vm1227 = vcmp.gt.f32.partialorder %v1177, 0.0
    %v1228 = vmul.f32 %v990, 0.2
    %v1229 = vmul.f32 %v993, 0.2
    %v1230 = vmul.f32 %v998, 0.2
    %v1231 = vmul.f32 %v1001, 0.2
    %v1232 = vmul.f32 %v1006, 0.2
    %v1233 = vmul.f32 %v1009, 0.2
    %v1234 = vmul.f32 %v1014, 0.2
    %v1235 = vmul.f32 %v1017, 0.2
    %v1236 = vmul.f32 %v1022, 0.2
    %v1237 = vmul.f32 %v1025, 0.2
    %v1238 = vmul.f32 %v1030, 0.2
    %v1239 = vmul.f32 %v1033, 0.2
    %v1240 = vmul.f32 %v1038, 0.2
    %v1241 = vmul.f32 %v1041, 0.2
    %v1242 = vmul.f32 %v1046, 0.2
    %v1243 = vmul.f32 %v1049, 0.2
    %v1244 = vmul.f32 %v1054, 0.2
    %v1245 = vmul.f32 %v1057, 0.2
    %v1246 = vmul.f32 %v1062, 0.2
    %v1247 = vmul.f32 %v1065, 0.2
    %v1248 = vmul.f32 %v1070, 0.2
    %v1249 = vmul.f32 %v1073, 0.2
    %v1250 = vmul.f32 %v1078, 0.2
    %v1251 = vmul.f32 %v1081, 0.2
    %v1252 = vmul.f32 %v1086, 0.2
    %v1253 = vmul.f32 %v1089, 0.2
    %v1254 = vmul.f32 %v1094, 0.2
    %v1255 = vmul.f32 %v1097, 0.2
    %v1256 = vmul.f32 %v1102, 0.2
    %v1257 = vmul.f32 %v1105, 0.2
    %v1258 = vmul.f32 %v1110, 0.2
    %v1259 = vmul.f32 %v1113, 0.2
    %v1260 = vmul.f32 %v1118, 0.2
    %v1261 = vmul.f32 %v1121, 0.2
    %v1262 = vmul.f32 %v1126, 0.2
    %v1263 = vmul.f32 %v1129, 0.2
    %v1264 = vmul.f32 %v1134, 0.2
    %v1265 = vmul.f32 %v1137, 0.2
    %v1266 = vmul.f32 %v1142, 0.2
    %v1267 = vmul.f32 %v1145, 0.2
    %v1268 = vmul.f32 %v1150, 0.2
    %v1269 = vmul.f32 %v1153, 0.2
    %v1270 = vmul.f32 %v1158, 0.2
    %v1271 = vmul.f32 %v1161, 0.2
    %v1272 = vmul.f32 %v1166, 0.2
    %v1273 = vmul.f32 %v1169, 0.2
    %v1274 = vmul.f32 %v1174, 0.2
    %v1275 = vmul.f32 %v1177, 0.2
    %v1276 = vsel %vm1180, %v990, %v1228
    %v1277 = vsel %vm1181, %v993, %v1229
    %v1278 = vsel %vm1182, %v998, %v1230
    %v1279 = vsel %vm1183, %v1001, %v1231
    %v1280 = vsel %vm1184, %v1006, %v1232
    %v1281 = vsel %vm1185, %v1009, %v1233
    %v1282 = vsel %vm1186, %v1014, %v1234
    %v1283 = vsel %vm1187, %v1017, %v1235
    %v1284 = vsel %vm1188, %v1022, %v1236
    %v1285 = vsel %vm1189, %v1025, %v1237
    %v1286 = vsel %vm1190, %v1030, %v1238
    %v1287 = vsel %vm1191, %v1033, %v1239
    %v1288 = vsel %vm1192, %v1038, %v1240
    %v1289 = vsel %vm1193, %v1041, %v1241
    %v1290 = vsel %vm1194, %v1046, %v1242
    %v1291 = vsel %vm1195, %v1049, %v1243
    %v1292 = vsel %vm1196, %v1054, %v1244
    %v1293 = vsel %vm1197, %v1057, %v1245
    %v1294 = vsel %vm1198, %v1062, %v1246
    %v1295 = vsel %vm1199, %v1065, %v1247
    %v1296 = vsel %vm1200, %v1070, %v1248
    %v1297 = vsel %vm1201, %v1073, %v1249
    %v1298 = vsel %vm1202, %v1078, %v1250
    %v1299 = vsel %vm1203, %v1081, %v1251
    %v1300 = vsel %vm1204, %v1086, %v1252
    %v1301 = vsel %vm1205, %v1089, %v1253
    %v1302 = vsel %vm1206, %v1094, %v1254
    %v1303 = vsel %vm1207, %v1097, %v1255
    %v1304 = vsel %vm1208, %v1102, %v1256
    %v1305 = vsel %vm1209, %v1105, %v1257
    %v1306 = vsel %vm1210, %v1110, %v1258
    %v1307 = vsel %vm1211, %v1113, %v1259
    %v1308 = vsel %vm1212, %v1118, %v1260
    %v1309 = vsel %vm1213, %v1121, %v1261
    %v1310 = vsel %vm1214, %v1126, %v1262
    %v1311 = vsel %vm1215, %v1129, %v1263
    %v1312 = vsel %vm1216, %v1134, %v1264
    %v1313 = vsel %vm1217, %v1137, %v1265
    %v1314 = vsel %vm1218, %v1142, %v1266
    %v1315 = vsel %vm1219, %v1145, %v1267
    %v1316 = vsel %vm1220, %v1150, %v1268
    %v1317 = vsel %vm1221, %v1153, %v1269
    %v1318 = vsel %vm1222, %v1158, %v1270
    %v1319 = vsel %vm1223, %v1161, %v1271
    %v1320 = vsel %vm1224, %v1166, %v1272
    %v1321 = vsel %vm1225, %v1169, %v1273
    %v1322 = vsel %vm1226, %v1174, %v1274
    %v1323 = vsel %vm1227, %v1177, %v1275
    %v1324 = vld [vmem:[%s5] sm:$0x1]
    %v1326 = vlaneseq
    %v1327 = vshrl.u32 %v1326, 7
    %v1328 = vsub.s32 0, %v1327
    %v1329 = vrot.slane %v1324, %v1328
    %v1331 = vmul.f32 %v1276, %v1329
    %v1332 = vmul.f32 %v1277, %v1329
    %v1333 = vmul.f32 %v1278, %v1329
    %v1334 = vmul.f32 %v1279, %v1329
    %v1335 = vmul.f32 %v1280, %v1329
    %v1336 = vmul.f32 %v1281, %v1329
    %v1337 = vmul.f32 %v1282, %v1329
    %v1338 = vmul.f32 %v1283, %v1329
    %v1339 = vmul.f32 %v1284, %v1329
    %v1340 = vmul.f32 %v1285, %v1329
    %v1341 = vmul.f32 %v1286, %v1329
    %v1342 = vmul.f32 %v1287, %v1329
    %v1343 = vmul.f32 %v1288, %v1329
    %v1344 = vmul.f32 %v1289, %v1329
    %v1345 = vmul.f32 %v1290, %v1329
    %v1346 = vmul.f32 %v1291, %v1329
    %v1347 = vmul.f32 %v1292, %v1329
    %v1348 = vmul.f32 %v1293, %v1329
    %v1349 = vmul.f32 %v1294, %v1329
    %v1350 = vmul.f32 %v1295, %v1329
    %v1351 = vmul.f32 %v1296, %v1329
    %v1352 = vmul.f32 %v1297, %v1329
    %v1353 = vmul.f32 %v1298, %v1329
    %v1354 = vmul.f32 %v1299, %v1329
    %v1355 = vmul.f32 %v1300, %v1329
    %v1356 = vmul.f32 %v1301, %v1329
    %v1357 = vmul.f32 %v1302, %v1329
    %v1358 = vmul.f32 %v1303, %v1329
    %v1359 = vmul.f32 %v1304, %v1329
    %v1360 = vmul.f32 %v1305, %v1329
    %v1361 = vmul.f32 %v1306, %v1329
    %v1362 = vmul.f32 %v1307, %v1329
    %v1363 = vmul.f32 %v1308, %v1329
    %v1364 = vmul.f32 %v1309, %v1329
    %v1365 = vmul.f32 %v1310, %v1329
    %v1366 = vmul.f32 %v1311, %v1329
    %v1367 = vmul.f32 %v1312, %v1329
    %v1368 = vmul.f32 %v1313, %v1329
    %v1369 = vmul.f32 %v1314, %v1329
    %v1370 = vmul.f32 %v1315, %v1329
    %v1371 = vmul.f32 %v1316, %v1329
    %v1372 = vmul.f32 %v1317, %v1329
    %v1373 = vmul.f32 %v1318, %v1329
    %v1374 = vmul.f32 %v1319, %v1329
    %v1375 = vmul.f32 %v1320, %v1329
    %v1376 = vmul.f32 %v1321, %v1329
    %v1377 = vmul.f32 %v1322, %v1329
    %v1378 = vmul.f32 %v1323, %v1329
    %1379 = vadd.xlane.f32.xlu0 %v1331
    %v1380 = vpop.xlane.xlu0 %1379
    %1381 = vadd.xlane.f32.xlu0 %v1332
    %v1382 = vpop.xlane.xlu0 %1381
    %1383 = vadd.xlane.f32.xlu0 %v1333
    %v1384 = vpop.xlane.xlu0 %1383
    %1385 = vadd.xlane.f32.xlu0 %v1334
    %v1386 = vpop.xlane.xlu0 %1385
    %1387 = vadd.xlane.f32.xlu0 %v1335
    %v1388 = vpop.xlane.xlu0 %1387
    %1389 = vadd.xlane.f32.xlu0 %v1336
    %v1390 = vpop.xlane.xlu0 %1389
    %1391 = vadd.xlane.f32.xlu0 %v1337
    %v1392 = vpop.xlane.xlu0 %1391
    %1393 = vadd.xlane.f32.xlu0 %v1338
    %v1394 = vpop.xlane.xlu0 %1393
    %1395 = vadd.xlane.f32.xlu0 %v1339
    %v1396 = vpop.xlane.xlu0 %1395
    %1397 = vadd.xlane.f32.xlu0 %v1340
    %v1398 = vpop.xlane.xlu0 %1397
    %1399 = vadd.xlane.f32.xlu0 %v1341
    %v1400 = vpop.xlane.xlu0 %1399
    %1401 = vadd.xlane.f32.xlu0 %v1342
    %v1402 = vpop.xlane.xlu0 %1401
    %1403 = vadd.xlane.f32.xlu0 %v1343
    %v1404 = vpop.xlane.xlu0 %1403
    %1405 = vadd.xlane.f32.xlu0 %v1344
    %v1406 = vpop.xlane.xlu0 %1405
    %1407 = vadd.xlane.f32.xlu0 %v1345
    %v1408 = vpop.xlane.xlu0 %1407
    %1409 = vadd.xlane.f32.xlu0 %v1346
    %v1410 = vpop.xlane.xlu0 %1409
    %1411 = vadd.xlane.f32.xlu0 %v1347
    %v1412 = vpop.xlane.xlu0 %1411
    %1413 = vadd.xlane.f32.xlu0 %v1348
    %v1414 = vpop.xlane.xlu0 %1413
    %1415 = vadd.xlane.f32.xlu0 %v1349
    %v1416 = vpop.xlane.xlu0 %1415
    %1417 = vadd.xlane.f32.xlu0 %v1350
    %v1418 = vpop.xlane.xlu0 %1417
    %1419 = vadd.xlane.f32.xlu0 %v1351
    %v1420 = vpop.xlane.xlu0 %1419
    %1421 = vadd.xlane.f32.xlu0 %v1352
    %v1422 = vpop.xlane.xlu0 %1421
    %1423 = vadd.xlane.f32.xlu0 %v1353
    %v1424 = vpop.xlane.xlu0 %1423
    %1425 = vadd.xlane.f32.xlu0 %v1354
    %v1426 = vpop.xlane.xlu0 %1425
    %1427 = vadd.xlane.f32.xlu0 %v1355
    %v1428 = vpop.xlane.xlu0 %1427
    %1429 = vadd.xlane.f32.xlu0 %v1356
    %v1430 = vpop.xlane.xlu0 %1429
    %1431 = vadd.xlane.f32.xlu0 %v1357
    %v1432 = vpop.xlane.xlu0 %1431
    %1433 = vadd.xlane.f32.xlu0 %v1358
    %v1434 = vpop.xlane.xlu0 %1433
    %1435 = vadd.xlane.f32.xlu0 %v1359
    %v1436 = vpop.xlane.xlu0 %1435
    %1437 = vadd.xlane.f32.xlu0 %v1360
    %v1438 = vpop.xlane.xlu0 %1437
    %1439 = vadd.xlane.f32.xlu0 %v1361
    %v1440 = vpop.xlane.xlu0 %1439
    %1441 = vadd.xlane.f32.xlu0 %v1362
    %v1442 = vpop.xlane.xlu0 %1441
    %1443 = vadd.xlane.f32.xlu0 %v1363
    %v1444 = vpop.xlane.xlu0 %1443
    %1445 = vadd.xlane.f32.xlu0 %v1364
    %v1446 = vpop.xlane.xlu0 %1445
    %1447 = vadd.xlane.f32.xlu0 %v1365
    %v1448 = vpop.xlane.xlu0 %1447
    %1449 = vadd.xlane.f32.xlu0 %v1366
    %v1450 = vpop.xlane.xlu0 %1449
    %1451 = vadd.xlane.f32.xlu0 %v1367
    %v1452 = vpop.xlane.xlu0 %1451
    %1453 = vadd.xlane.f32.xlu0 %v1368
    %v1454 = vpop.xlane.xlu0 %1453
    %1455 = vadd.xlane.f32.xlu0 %v1369
    %v1456 = vpop.xlane.xlu0 %1455
    %1457 = vadd.xlane.f32.xlu0 %v1370
    %v1458 = vpop.xlane.xlu0 %1457
    %1459 = vadd.xlane.f32.xlu0 %v1371
    %v1460 = vpop.xlane.xlu0 %1459
    %1461 = vadd.xlane.f32.xlu0 %v1372
    %v1462 = vpop.xlane.xlu0 %1461
    %1463 = vadd.xlane.f32.xlu0 %v1373
    %v1464 = vpop.xlane.xlu0 %1463
    %1465 = vadd.xlane.f32.xlu0 %v1374
    %v1466 = vpop.xlane.xlu0 %1465
    %1467 = vadd.xlane.f32.xlu0 %v1375
    %v1468 = vpop.xlane.xlu0 %1467
    %1469 = vadd.xlane.f32.xlu0 %v1376
    %v1470 = vpop.xlane.xlu0 %1469
    %1471 = vadd.xlane.f32.xlu0 %v1377
    %v1472 = vpop.xlane.xlu0 %1471
    %1473 = vadd.xlane.f32.xlu0 %v1378
    %v1474 = vpop.xlane.xlu0 %1473
    %v1475 = vld [vmem:[#allocation2] sm:$0x1]
    %1477 = vset.pattern.permute.xlu0 0
    %1478 = vperm.xlu0 %1477, %v1475
    %v1479 = vpop.permute.xlu0 %1478
    %v1481 = vlaneseq
    %v1482 = vshrl.u32 %v1481, 7
    %v1483 = vsub.s32 0, %v1482
    %v1484 = vrot.slane %v1479, %v1483
    %v1485 = vadd.f32 %v1380, %v1484
    %v1486 = vadd.f32 %v1382, %v1484
    %v1487 = vadd.f32 %v1384, %v1484
    %v1488 = vadd.f32 %v1386, %v1484
    %v1489 = vadd.f32 %v1388, %v1484
    %v1490 = vadd.f32 %v1390, %v1484
    %v1491 = vadd.f32 %v1392, %v1484
    %v1492 = vadd.f32 %v1394, %v1484
    %v1493 = vadd.f32 %v1396, %v1484
    %v1494 = vadd.f32 %v1398, %v1484
    %v1495 = vadd.f32 %v1400, %v1484
    %v1496 = vadd.f32 %v1402, %v1484
    %v1497 = vadd.f32 %v1404, %v1484
    %v1498 = vadd.f32 %v1406, %v1484
    %v1499 = vadd.f32 %v1408, %v1484
    %v1500 = vadd.f32 %v1410, %v1484
    %v1501 = vadd.f32 %v1412, %v1484
    %v1502 = vadd.f32 %v1414, %v1484
    %v1503 = vadd.f32 %v1416, %v1484
    %v1504 = vadd.f32 %v1418, %v1484
    %v1505 = vadd.f32 %v1420, %v1484
    %v1506 = vadd.f32 %v1422, %v1484
    %v1507 = vadd.f32 %v1424, %v1484
    %v1508 = vadd.f32 %v1426, %v1484
    %v1509 = vadd.f32 %v1428, %v1484
    %v1510 = vadd.f32 %v1430, %v1484
    %v1511 = vadd.f32 %v1432, %v1484
    %v1512 = vadd.f32 %v1434, %v1484
    %v1513 = vadd.f32 %v1436, %v1484
    %v1514 = vadd.f32 %v1438, %v1484
    %v1515 = vadd.f32 %v1440, %v1484
    %v1516 = vadd.f32 %v1442, %v1484
    %v1517 = vadd.f32 %v1444, %v1484
    %v1518 = vadd.f32 %v1446, %v1484
    %v1519 = vadd.f32 %v1448, %v1484
    %v1520 = vadd.f32 %v1450, %v1484
    %v1521 = vadd.f32 %v1452, %v1484
    %v1522 = vadd.f32 %v1454, %v1484
    %v1523 = vadd.f32 %v1456, %v1484
    %v1524 = vadd.f32 %v1458, %v1484
    %v1525 = vadd.f32 %v1460, %v1484
    %v1526 = vadd.f32 %v1462, %v1484
    %v1527 = vadd.f32 %v1464, %v1484
    %v1528 = vadd.f32 %v1466, %v1484
    %v1529 = vadd.f32 %v1468, %v1484
    %v1530 = vadd.f32 %v1470, %v1484
    %v1531 = vadd.f32 %v1472, %v1484
    %v1532 = vadd.f32 %v1474, %v1484
    %v1533 = vxor.u32 %v1485, 2147483648
    %v1534 = vxor.u32 %v1486, 2147483648
    %v1535 = vxor.u32 %v1487, 2147483648
    %v1536 = vxor.u32 %v1488, 2147483648
    %v1537 = vxor.u32 %v1489, 2147483648
    %v1538 = vxor.u32 %v1490, 2147483648
    %v1539 = vxor.u32 %v1491, 2147483648
    %v1540 = vxor.u32 %v1492, 2147483648
    %v1541 = vxor.u32 %v1493, 2147483648
    %v1542 = vxor.u32 %v1494, 2147483648
    %v1543 = vxor.u32 %v1495, 2147483648
    %v1544 = vxor.u32 %v1496, 2147483648
    %v1545 = vxor.u32 %v1497, 2147483648
    %v1546 = vxor.u32 %v1498, 2147483648
    %v1547 = vxor.u32 %v1499, 2147483648
    %v1548 = vxor.u32 %v1500, 2147483648
    %v1549 = vxor.u32 %v1501, 2147483648
    %v1550 = vxor.u32 %v1502, 2147483648
    %v1551 = vxor.u32 %v1503, 2147483648
    %v1552 = vxor.u32 %v1504, 2147483648
    %v1553 = vxor.u32 %v1505, 2147483648
    %v1554 = vxor.u32 %v1506, 2147483648
    %v1555 = vxor.u32 %v1507, 2147483648
    %v1556 = vxor.u32 %v1508, 2147483648
    %v1557 = vxor.u32 %v1509, 2147483648
    %v1558 = vxor.u32 %v1510, 2147483648
    %v1559 = vxor.u32 %v1511, 2147483648
    %v1560 = vxor.u32 %v1512, 2147483648
    %v1561 = vxor.u32 %v1513, 2147483648
    %v1562 = vxor.u32 %v1514, 2147483648
    %v1563 = vxor.u32 %v1515, 2147483648
    %v1564 = vxor.u32 %v1516, 2147483648
    %v1565 = vxor.u32 %v1517, 2147483648
    %v1566 = vxor.u32 %v1518, 2147483648
    %v1567 = vxor.u32 %v1519, 2147483648
    %v1568 = vxor.u32 %v1520, 2147483648
    %v1569 = vxor.u32 %v1521, 2147483648
    %v1570 = vxor.u32 %v1522, 2147483648
    %v1571 = vxor.u32 %v1523, 2147483648
    %v1572 = vxor.u32 %v1524, 2147483648
    %v1573 = vxor.u32 %v1525, 2147483648
    %v1574 = vxor.u32 %v1526, 2147483648
    %v1575 = vxor.u32 %v1527, 2147483648
    %v1576 = vxor.u32 %v1528, 2147483648
    %v1577 = vxor.u32 %v1529, 2147483648
    %v1578 = vxor.u32 %v1530, 2147483648
    %v1579 = vxor.u32 %v1531, 2147483648
    %v1580 = vxor.u32 %v1532, 2147483648
    %v1581 = vmul.f32 %v1533, 1.442695
    %v1582 = vpow.pop %v1581
    %v1583 = vmul.f32 %v1534, 1.442695
    %v1584 = vpow.pop %v1583
    %v1585 = vmul.f32 %v1535, 1.442695
    %v1586 = vpow.pop %v1585
    %v1587 = vmul.f32 %v1536, 1.442695
    %v1588 = vpow.pop %v1587
    %v1589 = vmul.f32 %v1537, 1.442695
    %v1590 = vpow.pop %v1589
    %v1591 = vmul.f32 %v1538, 1.442695
    %v1592 = vpow.pop %v1591
    %v1593 = vmul.f32 %v1539, 1.442695
    %v1594 = vpow.pop %v1593
    %v1595 = vmul.f32 %v1540, 1.442695
    %v1596 = vpow.pop %v1595
    %v1597 = vmul.f32 %v1541, 1.442695
    %v1598 = vpow.pop %v1597
    %v1599 = vmul.f32 %v1542, 1.442695
    %v1600 = vpow.pop %v1599
    %v1601 = vmul.f32 %v1543, 1.442695
    %v1602 = vpow.pop %v1601
    %v1603 = vmul.f32 %v1544, 1.442695
    %v1604 = vpow.pop %v1603
    %v1605 = vmul.f32 %v1545, 1.442695
    %v1606 = vpow.pop %v1605
    %v1607 = vmul.f32 %v1546, 1.442695
    %v1608 = vpow.pop %v1607
    %v1609 = vmul.f32 %v1547, 1.442695
    %v1610 = vpow.pop %v1609
    %v1611 = vmul.f32 %v1548, 1.442695
    %v1612 = vpow.pop %v1611
    %v1613 = vmul.f32 %v1549, 1.442695
    %v1614 = vpow.pop %v1613
    %v1615 = vmul.f32 %v1550, 1.442695
    %v1616 = vpow.pop %v1615
    %v1617 = vmul.f32 %v1551, 1.442695
    %v1618 = vpow.pop %v1617
    %v1619 = vmul.f32 %v1552, 1.442695
    %v1620 = vpow.pop %v1619
    %v1621 = vmul.f32 %v1553, 1.442695
    %v1622 = vpow.pop %v1621
    %v1623 = vmul.f32 %v1554, 1.442695
    %v1624 = vpow.pop %v1623
    %v1625 = vmul.f32 %v1555, 1.442695
    %v1626 = vpow.pop %v1625
    %v1627 = vmul.f32 %v1556, 1.442695
    %v1628 = vpow.pop %v1627
    %v1629 = vmul.f32 %v1557, 1.442695
    %v1630 = vpow.pop %v1629
    %v1631 = vmul.f32 %v1558, 1.442695
    %v1632 = vpow.pop %v1631
    %v1633 = vmul.f32 %v1559, 1.442695
    %v1634 = vpow.pop %v1633
    %v1635 = vmul.f32 %v1560, 1.442695
    %v1636 = vpow.pop %v1635
    %v1637 = vmul.f32 %v1561, 1.442695
    %v1638 = vpow.pop %v1637
    %v1639 = vmul.f32 %v1562, 1.442695
    %v1640 = vpow.pop %v1639
    %v1641 = vmul.f32 %v1563, 1.442695
    %v1642 = vpow.pop %v1641
    %v1643 = vmul.f32 %v1564, 1.442695
    %v1644 = vpow.pop %v1643
    %v1645 = vmul.f32 %v1565, 1.442695
    %v1646 = vpow.pop %v1645
    %v1647 = vmul.f32 %v1566, 1.442695
    %v1648 = vpow.pop %v1647
    %v1649 = vmul.f32 %v1567, 1.442695
    %v1650 = vpow.pop %v1649
    %v1651 = vmul.f32 %v1568, 1.442695
    %v1652 = vpow.pop %v1651
    %v1653 = vmul.f32 %v1569, 1.442695
    %v1654 = vpow.pop %v1653
    %v1655 = vmul.f32 %v1570, 1.442695
    %v1656 = vpow.pop %v1655
    %v1657 = vmul.f32 %v1571, 1.442695
    %v1658 = vpow.pop %v1657
    %v1659 = vmul.f32 %v1572, 1.442695
    %v1660 = vpow.pop %v1659
    %v1661 = vmul.f32 %v1573, 1.442695
    %v1662 = vpow.pop %v1661
    %v1663 = vmul.f32 %v1574, 1.442695
    %v1664 = vpow.pop %v1663
    %v1665 = vmul.f32 %v1575, 1.442695
    %v1666 = vpow.pop %v1665
    %v1667 = vmul.f32 %v1576, 1.442695
    %v1668 = vpow.pop %v1667
    %v1669 = vmul.f32 %v1577, 1.442695
    %v1670 = vpow.pop %v1669
    %v1671 = vmul.f32 %v1578, 1.442695
    %v1672 = vpow.pop %v1671
    %v1673 = vmul.f32 %v1579, 1.442695
    %v1674 = vpow.pop %v1673
    %v1675 = vmul.f32 %v1580, 1.442695
    %v1676 = vpow.pop %v1675
    %v1677 = vadd.f32 %v1582, 1.0
    %v1678 = vadd.f32 %v1584, 1.0
    %v1679 = vadd.f32 %v1586, 1.0
    %v1680 = vadd.f32 %v1588, 1.0
    %v1681 = vadd.f32 %v1590, 1.0
    %v1682 = vadd.f32 %v1592, 1.0
    %v1683 = vadd.f32 %v1594, 1.0
    %v1684 = vadd.f32 %v1596, 1.0
    %v1685 = vadd.f32 %v1598, 1.0
    %v1686 = vadd.f32 %v1600, 1.0
    %v1687 = vadd.f32 %v1602, 1.0
    %v1688 = vadd.f32 %v1604, 1.0
    %v1689 = vadd.f32 %v1606, 1.0
    %v1690 = vadd.f32 %v1608, 1.0
    %v1691 = vadd.f32 %v1610, 1.0
    %v1692 = vadd.f32 %v1612, 1.0
    %v1693 = vadd.f32 %v1614, 1.0
    %v1694 = vadd.f32 %v1616, 1.0
    %v1695 = vadd.f32 %v1618, 1.0
    %v1696 = vadd.f32 %v1620, 1.0
    %v1697 = vadd.f32 %v1622, 1.0
    %v1698 = vadd.f32 %v1624, 1.0
    %v1699 = vadd.f32 %v1626, 1.0
    %v1700 = vadd.f32 %v1628, 1.0
    %v1701 = vadd.f32 %v1630, 1.0
    %v1702 = vadd.f32 %v1632, 1.0
    %v1703 = vadd.f32 %v1634, 1.0
    %v1704 = vadd.f32 %v1636, 1.0
    %v1705 = vadd.f32 %v1638, 1.0
    %v1706 = vadd.f32 %v1640, 1.0
    %v1707 = vadd.f32 %v1642, 1.0
    %v1708 = vadd.f32 %v1644, 1.0
    %v1709 = vadd.f32 %v1646, 1.0
    %v1710 = vadd.f32 %v1648, 1.0
    %v1711 = vadd.f32 %v1650, 1.0
    %v1712 = vadd.f32 %v1652, 1.0
    %v1713 = vadd.f32 %v1654, 1.0
    %v1714 = vadd.f32 %v1656, 1.0
    %v1715 = vadd.f32 %v1658, 1.0
    %v1716 = vadd.f32 %v1660, 1.0
    %v1717 = vadd.f32 %v1662, 1.0
    %v1718 = vadd.f32 %v1664, 1.0
    %v1719 = vadd.f32 %v1666, 1.0
    %v1720 = vadd.f32 %v1668, 1.0
    %v1721 = vadd.f32 %v1670, 1.0
    %v1722 = vadd.f32 %v1672, 1.0
    %v1723 = vadd.f32 %v1674, 1.0
    %v1724 = vadd.f32 %v1676, 1.0
    %v1725 = vrcp.pop %v1677
    %v1726 = vmul.f32 1.0, %v1725
    %v1727 = vrcp.pop %v1678
    %v1728 = vmul.f32 1.0, %v1727
    %v1729 = vrcp.pop %v1679
    %v1730 = vmul.f32 1.0, %v1729
    %v1731 = vrcp.pop %v1680
    %v1732 = vmul.f32 1.0, %v1731
    %v1733 = vrcp.pop %v1681
    %v1734 = vmul.f32 1.0, %v1733
    %v1735 = vrcp.pop %v1682
    %v1736 = vmul.f32 1.0, %v1735
    %v1737 = vrcp.pop %v1683
    %v1738 = vmul.f32 1.0, %v1737
    %v1739 = vrcp.pop %v1684
    %v1740 = vmul.f32 1.0, %v1739
    %v1741 = vrcp.pop %v1685
    %v1742 = vmul.f32 1.0, %v1741
    %v1743 = vrcp.pop %v1686
    %v1744 = vmul.f32 1.0, %v1743
    %v1745 = vrcp.pop %v1687
    %v1746 = vmul.f32 1.0, %v1745
    %v1747 = vrcp.pop %v1688
    %v1748 = vmul.f32 1.0, %v1747
    %v1749 = vrcp.pop %v1689
    %v1750 = vmul.f32 1.0, %v1749
    %v1751 = vrcp.pop %v1690
    %v1752 = vmul.f32 1.0, %v1751
    %v1753 = vrcp.pop %v1691
    %v1754 = vmul.f32 1.0, %v1753
    %v1755 = vrcp.pop %v1692
    %v1756 = vmul.f32 1.0, %v1755
    %v1757 = vrcp.pop %v1693
    %v1758 = vmul.f32 1.0, %v1757
    %v1759 = vrcp.pop %v1694
    %v1760 = vmul.f32 1.0, %v1759
    %v1761 = vrcp.pop %v1695
    %v1762 = vmul.f32 1.0, %v1761
    %v1763 = vrcp.pop %v1696
    %v1764 = vmul.f32 1.0, %v1763
    %v1765 = vrcp.pop %v1697
    %v1766 = vmul.f32 1.0, %v1765
    %v1767 = vrcp.pop %v1698
    %v1768 = vmul.f32 1.0, %v1767
    %v1769 = vrcp.pop %v1699
    %v1770 = vmul.f32 1.0, %v1769
    %v1771 = vrcp.pop %v1700
    %v1772 = vmul.f32 1.0, %v1771
    %v1773 = vrcp.pop %v1701
    %v1774 = vmul.f32 1.0, %v1773
    %v1775 = vrcp.pop %v1702
    %v1776 = vmul.f32 1.0, %v1775
    %v1777 = vrcp.pop %v1703
    %v1778 = vmul.f32 1.0, %v1777
    %v1779 = vrcp.pop %v1704
    %v1780 = vmul.f32 1.0, %v1779
    %v1781 = vrcp.pop %v1705
    %v1782 = vmul.f32 1.0, %v1781
    %v1783 = vrcp.pop %v1706
    %v1784 = vmul.f32 1.0, %v1783
    %v1785 = vrcp.pop %v1707
    %v1786 = vmul.f32 1.0, %v1785
    %v1787 = vrcp.pop %v1708
    %v1788 = vmul.f32 1.0, %v1787
    %v1789 = vrcp.pop %v1709
    %v1790 = vmul.f32 1.0, %v1789
    %v1791 = vrcp.pop %v1710
    %v1792 = vmul.f32 1.0, %v1791
    %v1793 = vrcp.pop %v1711
    %v1794 = vmul.f32 1.0, %v1793
    %v1795 = vrcp.pop %v1712
    %v1796 = vmul.f32 1.0, %v1795
    %v1797 = vrcp.pop %v1713
    %v1798 = vmul.f32 1.0, %v1797
    %v1799 = vrcp.pop %v1714
    %v1800 = vmul.f32 1.0, %v1799
    %v1801 = vrcp.pop %v1715
    %v1802 = vmul.f32 1.0, %v1801
    %v1803 = vrcp.pop %v1716
    %v1804 = vmul.f32 1.0, %v1803
    %v1805 = vrcp.pop %v1717
    %v1806 = vmul.f32 1.0, %v1805
    %v1807 = vrcp.pop %v1718
    %v1808 = vmul.f32 1.0, %v1807
    %v1809 = vrcp.pop %v1719
    %v1810 = vmul.f32 1.0, %v1809
    %v1811 = vrcp.pop %v1720
    %v1812 = vmul.f32 1.0, %v1811
    %v1813 = vrcp.pop %v1721
    %v1814 = vmul.f32 1.0, %v1813
    %v1815 = vrcp.pop %v1722
    %v1816 = vmul.f32 1.0, %v1815
    %v1817 = vrcp.pop %v1723
    %v1818 = vmul.f32 1.0, %v1817
    %v1819 = vrcp.pop %v1724
    %v1820 = vmul.f32 1.0, %v1819
    %v1869 = vlaneseq
    %v1870 = vshrl.u32 %v1869, 7
    %v1871 = vsub.s32 0, %v1870
    %v1872 = vrot.slane %v1726, %v1871
    %v1873 = vlaneseq
    %v1874 = vshrl.u32 %v1873, 7
    %v1875 = vsub.s32 1, %v1874
    %v1876 = vrot.slane %v1726, %v1875
    %v1877 = vlaneseq
    %v1878 = vshrl.u32 %v1877, 7
    %v1879 = vsub.s32 2, %v1878
    %v1880 = vrot.slane %v1726, %v1879
    %v1881 = vlaneseq
    %v1882 = vshrl.u32 %v1881, 7
    %v1883 = vsub.s32 3, %v1882
    %v1884 = vrot.slane %v1726, %v1883
    %v1885 = vlaneseq
    %v1886 = vshrl.u32 %v1885, 7
    %v1887 = vsub.s32 4, %v1886
    %v1888 = vrot.slane %v1726, %v1887
    %v1889 = vlaneseq
    %v1890 = vshrl.u32 %v1889, 7
    %v1891 = vsub.s32 5, %v1890
    %v1892 = vrot.slane %v1726, %v1891
    %v1893 = vlaneseq
    %v1894 = vshrl.u32 %v1893, 7
    %v1895 = vsub.s32 6, %v1894
    %v1896 = vrot.slane %v1726, %v1895
    %v1897 = vlaneseq
    %v1898 = vshrl.u32 %v1897, 7
    %v1899 = vsub.s32 7, %v1898
    %v1900 = vrot.slane %v1726, %v1899
    %v1901 = vlaneseq
    %v1902 = vshrl.u32 %v1901, 7
    %v1903 = vsub.s32 0, %v1902
    %v1904 = vrot.slane %v1728, %v1903
    %v1905 = vlaneseq
    %v1906 = vshrl.u32 %v1905, 7
    %v1907 = vsub.s32 1, %v1906
    %v1908 = vrot.slane %v1728, %v1907
    %v1909 = vlaneseq
    %v1910 = vshrl.u32 %v1909, 7
    %v1911 = vsub.s32 2, %v1910
    %v1912 = vrot.slane %v1728, %v1911
    %v1913 = vlaneseq
    %v1914 = vshrl.u32 %v1913, 7
    %v1915 = vsub.s32 3, %v1914
    %v1916 = vrot.slane %v1728, %v1915
    %v1917 = vlaneseq
    %v1918 = vshrl.u32 %v1917, 7
    %v1919 = vsub.s32 4, %v1918
    %v1920 = vrot.slane %v1728, %v1919
    %v1921 = vlaneseq
    %v1922 = vshrl.u32 %v1921, 7
    %v1923 = vsub.s32 5, %v1922
    %v1924 = vrot.slane %v1728, %v1923
    %v1925 = vlaneseq
    %v1926 = vshrl.u32 %v1925, 7
    %v1927 = vsub.s32 6, %v1926
    %v1928 = vrot.slane %v1728, %v1927
    %v1929 = vlaneseq
    %v1930 = vshrl.u32 %v1929, 7
    %v1931 = vsub.s32 7, %v1930
    %v1932 = vrot.slane %v1728, %v1931
    %v1933 = vlaneseq
    %v1934 = vshrl.u32 %v1933, 7
    %v1935 = vsub.s32 0, %v1934
    %v1936 = vrot.slane %v1730, %v1935
    %v1937 = vlaneseq
    %v1938 = vshrl.u32 %v1937, 7
    %v1939 = vsub.s32 1, %v1938
    %v1940 = vrot.slane %v1730, %v1939
    %v1941 = vlaneseq
    %v1942 = vshrl.u32 %v1941, 7
    %v1943 = vsub.s32 2, %v1942
    %v1944 = vrot.slane %v1730, %v1943
    %v1945 = vlaneseq
    %v1946 = vshrl.u32 %v1945, 7
    %v1947 = vsub.s32 3, %v1946
    %v1948 = vrot.slane %v1730, %v1947
    %v1949 = vlaneseq
    %v1950 = vshrl.u32 %v1949, 7
    %v1951 = vsub.s32 4, %v1950
    %v1952 = vrot.slane %v1730, %v1951
    %v1953 = vlaneseq
    %v1954 = vshrl.u32 %v1953, 7
    %v1955 = vsub.s32 5, %v1954
    %v1956 = vrot.slane %v1730, %v1955
    %v1957 = vlaneseq
    %v1958 = vshrl.u32 %v1957, 7
    %v1959 = vsub.s32 6, %v1958
    %v1960 = vrot.slane %v1730, %v1959
    %v1961 = vlaneseq
    %v1962 = vshrl.u32 %v1961, 7
    %v1963 = vsub.s32 7, %v1962
    %v1964 = vrot.slane %v1730, %v1963
    %v1965 = vlaneseq
    %v1966 = vshrl.u32 %v1965, 7
    %v1967 = vsub.s32 0, %v1966
    %v1968 = vrot.slane %v1732, %v1967
    %v1969 = vlaneseq
    %v1970 = vshrl.u32 %v1969, 7
    %v1971 = vsub.s32 1, %v1970
    %v1972 = vrot.slane %v1732, %v1971
    %v1973 = vlaneseq
    %v1974 = vshrl.u32 %v1973, 7
    %v1975 = vsub.s32 2, %v1974
    %v1976 = vrot.slane %v1732, %v1975
    %v1977 = vlaneseq
    %v1978 = vshrl.u32 %v1977, 7
    %v1979 = vsub.s32 3, %v1978
    %v1980 = vrot.slane %v1732, %v1979
    %v1981 = vlaneseq
    %v1982 = vshrl.u32 %v1981, 7
    %v1983 = vsub.s32 4, %v1982
    %v1984 = vrot.slane %v1732, %v1983
    %v1985 = vlaneseq
    %v1986 = vshrl.u32 %v1985, 7
    %v1987 = vsub.s32 5, %v1986
    %v1988 = vrot.slane %v1732, %v1987
    %v1989 = vlaneseq
    %v1990 = vshrl.u32 %v1989, 7
    %v1991 = vsub.s32 6, %v1990
    %v1992 = vrot.slane %v1732, %v1991
    %v1993 = vlaneseq
    %v1994 = vshrl.u32 %v1993, 7
    %v1995 = vsub.s32 7, %v1994
    %v1996 = vrot.slane %v1732, %v1995
    %v1997 = vlaneseq
    %v1998 = vshrl.u32 %v1997, 7
    %v1999 = vsub.s32 0, %v1998
    %v2000 = vrot.slane %v1734, %v1999
    %v2001 = vlaneseq
    %v2002 = vshrl.u32 %v2001, 7
    %v2003 = vsub.s32 1, %v2002
    %v2004 = vrot.slane %v1734, %v2003
    %v2005 = vlaneseq
    %v2006 = vshrl.u32 %v2005, 7
    %v2007 = vsub.s32 2, %v2006
    %v2008 = vrot.slane %v1734, %v2007
    %v2009 = vlaneseq
    %v2010 = vshrl.u32 %v2009, 7
    %v2011 = vsub.s32 3, %v2010
    %v2012 = vrot.slane %v1734, %v2011
    %v2013 = vlaneseq
    %v2014 = vshrl.u32 %v2013, 7
    %v2015 = vsub.s32 4, %v2014
    %v2016 = vrot.slane %v1734, %v2015
    %v2017 = vlaneseq
    %v2018 = vshrl.u32 %v2017, 7
    %v2019 = vsub.s32 5, %v2018
    %v2020 = vrot.slane %v1734, %v2019
    %v2021 = vlaneseq
    %v2022 = vshrl.u32 %v2021, 7
    %v2023 = vsub.s32 6, %v2022
    %v2024 = vrot.slane %v1734, %v2023
    %v2025 = vlaneseq
    %v2026 = vshrl.u32 %v2025, 7
    %v2027 = vsub.s32 7, %v2026
    %v2028 = vrot.slane %v1734, %v2027
    %v2029 = vlaneseq
    %v2030 = vshrl.u32 %v2029, 7
    %v2031 = vsub.s32 0, %v2030
    %v2032 = vrot.slane %v1736, %v2031
    %v2033 = vlaneseq
    %v2034 = vshrl.u32 %v2033, 7
    %v2035 = vsub.s32 1, %v2034
    %v2036 = vrot.slane %v1736, %v2035
    %v2037 = vlaneseq
    %v2038 = vshrl.u32 %v2037, 7
    %v2039 = vsub.s32 2, %v2038
    %v2040 = vrot.slane %v1736, %v2039
    %v2041 = vlaneseq
    %v2042 = vshrl.u32 %v2041, 7
    %v2043 = vsub.s32 3, %v2042
    %v2044 = vrot.slane %v1736, %v2043
    %v2045 = vlaneseq
    %v2046 = vshrl.u32 %v2045, 7
    %v2047 = vsub.s32 4, %v2046
    %v2048 = vrot.slane %v1736, %v2047
    %v2049 = vlaneseq
    %v2050 = vshrl.u32 %v2049, 7
    %v2051 = vsub.s32 5, %v2050
    %v2052 = vrot.slane %v1736, %v2051
    %v2053 = vlaneseq
    %v2054 = vshrl.u32 %v2053, 7
    %v2055 = vsub.s32 6, %v2054
    %v2056 = vrot.slane %v1736, %v2055
    %v2057 = vlaneseq
    %v2058 = vshrl.u32 %v2057, 7
    %v2059 = vsub.s32 7, %v2058
    %v2060 = vrot.slane %v1736, %v2059
    %v2061 = vlaneseq
    %v2062 = vshrl.u32 %v2061, 7
    %v2063 = vsub.s32 0, %v2062
    %v2064 = vrot.slane %v1738, %v2063
    %v2065 = vlaneseq
    %v2066 = vshrl.u32 %v2065, 7
    %v2067 = vsub.s32 1, %v2066
    %v2068 = vrot.slane %v1738, %v2067
    %v2069 = vlaneseq
    %v2070 = vshrl.u32 %v2069, 7
    %v2071 = vsub.s32 2, %v2070
    %v2072 = vrot.slane %v1738, %v2071
    %v2073 = vlaneseq
    %v2074 = vshrl.u32 %v2073, 7
    %v2075 = vsub.s32 3, %v2074
    %v2076 = vrot.slane %v1738, %v2075
    %v2077 = vlaneseq
    %v2078 = vshrl.u32 %v2077, 7
    %v2079 = vsub.s32 4, %v2078
    %v2080 = vrot.slane %v1738, %v2079
    %v2081 = vlaneseq
    %v2082 = vshrl.u32 %v2081, 7
    %v2083 = vsub.s32 5, %v2082
    %v2084 = vrot.slane %v1738, %v2083
    %v2085 = vlaneseq
    %v2086 = vshrl.u32 %v2085, 7
    %v2087 = vsub.s32 6, %v2086
    %v2088 = vrot.slane %v1738, %v2087
    %v2089 = vlaneseq
    %v2090 = vshrl.u32 %v2089, 7
    %v2091 = vsub.s32 7, %v2090
    %v2092 = vrot.slane %v1738, %v2091
    %v2093 = vlaneseq
    %v2094 = vshrl.u32 %v2093, 7
    %v2095 = vsub.s32 0, %v2094
    %v2096 = vrot.slane %v1740, %v2095
    %v2097 = vlaneseq
    %v2098 = vshrl.u32 %v2097, 7
    %v2099 = vsub.s32 1, %v2098
    %v2100 = vrot.slane %v1740, %v2099
    %v2101 = vlaneseq
    %v2102 = vshrl.u32 %v2101, 7
    %v2103 = vsub.s32 2, %v2102
    %v2104 = vrot.slane %v1740, %v2103
    %v2105 = vlaneseq
    %v2106 = vshrl.u32 %v2105, 7
    %v2107 = vsub.s32 3, %v2106
    %v2108 = vrot.slane %v1740, %v2107
    %v2109 = vlaneseq
    %v2110 = vshrl.u32 %v2109, 7
    %v2111 = vsub.s32 4, %v2110
    %v2112 = vrot.slane %v1740, %v2111
    %v2113 = vlaneseq
    %v2114 = vshrl.u32 %v2113, 7
    %v2115 = vsub.s32 5, %v2114
    %v2116 = vrot.slane %v1740, %v2115
    %v2117 = vlaneseq
    %v2118 = vshrl.u32 %v2117, 7
    %v2119 = vsub.s32 6, %v2118
    %v2120 = vrot.slane %v1740, %v2119
    %v2121 = vlaneseq
    %v2122 = vshrl.u32 %v2121, 7
    %v2123 = vsub.s32 7, %v2122
    %v2124 = vrot.slane %v1740, %v2123
    %v2125 = vlaneseq
    %v2126 = vshrl.u32 %v2125, 7
    %v2127 = vsub.s32 0, %v2126
    %v2128 = vrot.slane %v1742, %v2127
    %v2129 = vlaneseq
    %v2130 = vshrl.u32 %v2129, 7
    %v2131 = vsub.s32 1, %v2130
    %v2132 = vrot.slane %v1742, %v2131
    %v2133 = vlaneseq
    %v2134 = vshrl.u32 %v2133, 7
    %v2135 = vsub.s32 2, %v2134
    %v2136 = vrot.slane %v1742, %v2135
    %v2137 = vlaneseq
    %v2138 = vshrl.u32 %v2137, 7
    %v2139 = vsub.s32 3, %v2138
    %v2140 = vrot.slane %v1742, %v2139
    %v2141 = vlaneseq
    %v2142 = vshrl.u32 %v2141, 7
    %v2143 = vsub.s32 4, %v2142
    %v2144 = vrot.slane %v1742, %v2143
    %v2145 = vlaneseq
    %v2146 = vshrl.u32 %v2145, 7
    %v2147 = vsub.s32 5, %v2146
    %v2148 = vrot.slane %v1742, %v2147
    %v2149 = vlaneseq
    %v2150 = vshrl.u32 %v2149, 7
    %v2151 = vsub.s32 6, %v2150
    %v2152 = vrot.slane %v1742, %v2151
    %v2153 = vlaneseq
    %v2154 = vshrl.u32 %v2153, 7
    %v2155 = vsub.s32 7, %v2154
    %v2156 = vrot.slane %v1742, %v2155
    %v2157 = vlaneseq
    %v2158 = vshrl.u32 %v2157, 7
    %v2159 = vsub.s32 0, %v2158
    %v2160 = vrot.slane %v1744, %v2159
    %v2161 = vlaneseq
    %v2162 = vshrl.u32 %v2161, 7
    %v2163 = vsub.s32 1, %v2162
    %v2164 = vrot.slane %v1744, %v2163
    %v2165 = vlaneseq
    %v2166 = vshrl.u32 %v2165, 7
    %v2167 = vsub.s32 2, %v2166
    %v2168 = vrot.slane %v1744, %v2167
    %v2169 = vlaneseq
    %v2170 = vshrl.u32 %v2169, 7
    %v2171 = vsub.s32 3, %v2170
    %v2172 = vrot.slane %v1744, %v2171
    %v2173 = vlaneseq
    %v2174 = vshrl.u32 %v2173, 7
    %v2175 = vsub.s32 4, %v2174
    %v2176 = vrot.slane %v1744, %v2175
    %v2177 = vlaneseq
    %v2178 = vshrl.u32 %v2177, 7
    %v2179 = vsub.s32 5, %v2178
    %v2180 = vrot.slane %v1744, %v2179
    %v2181 = vlaneseq
    %v2182 = vshrl.u32 %v2181, 7
    %v2183 = vsub.s32 6, %v2182
    %v2184 = vrot.slane %v1744, %v2183
    %v2185 = vlaneseq
    %v2186 = vshrl.u32 %v2185, 7
    %v2187 = vsub.s32 7, %v2186
    %v2188 = vrot.slane %v1744, %v2187
    %v2189 = vlaneseq
    %v2190 = vshrl.u32 %v2189, 7
    %v2191 = vsub.s32 0, %v2190
    %v2192 = vrot.slane %v1746, %v2191
    %v2193 = vlaneseq
    %v2194 = vshrl.u32 %v2193, 7
    %v2195 = vsub.s32 1, %v2194
    %v2196 = vrot.slane %v1746, %v2195
    %v2197 = vlaneseq
    %v2198 = vshrl.u32 %v2197, 7
    %v2199 = vsub.s32 2, %v2198
    %v2200 = vrot.slane %v1746, %v2199
    %v2201 = vlaneseq
    %v2202 = vshrl.u32 %v2201, 7
    %v2203 = vsub.s32 3, %v2202
    %v2204 = vrot.slane %v1746, %v2203
    %v2205 = vlaneseq
    %v2206 = vshrl.u32 %v2205, 7
    %v2207 = vsub.s32 4, %v2206
    %v2208 = vrot.slane %v1746, %v2207
    %v2209 = vlaneseq
    %v2210 = vshrl.u32 %v2209, 7
    %v2211 = vsub.s32 5, %v2210
    %v2212 = vrot.slane %v1746, %v2211
    %v2213 = vlaneseq
    %v2214 = vshrl.u32 %v2213, 7
    %v2215 = vsub.s32 6, %v2214
    %v2216 = vrot.slane %v1746, %v2215
    %v2217 = vlaneseq
    %v2218 = vshrl.u32 %v2217, 7
    %v2219 = vsub.s32 7, %v2218
    %v2220 = vrot.slane %v1746, %v2219
    %v2221 = vlaneseq
    %v2222 = vshrl.u32 %v2221, 7
    %v2223 = vsub.s32 0, %v2222
    %v2224 = vrot.slane %v1748, %v2223
    %v2225 = vlaneseq
    %v2226 = vshrl.u32 %v2225, 7
    %v2227 = vsub.s32 1, %v2226
    %v2228 = vrot.slane %v1748, %v2227
    %v2229 = vlaneseq
    %v2230 = vshrl.u32 %v2229, 7
    %v2231 = vsub.s32 2, %v2230
    %v2232 = vrot.slane %v1748, %v2231
    %v2233 = vlaneseq
    %v2234 = vshrl.u32 %v2233, 7
    %v2235 = vsub.s32 3, %v2234
    %v2236 = vrot.slane %v1748, %v2235
    %v2237 = vlaneseq
    %v2238 = vshrl.u32 %v2237, 7
    %v2239 = vsub.s32 4, %v2238
    %v2240 = vrot.slane %v1748, %v2239
    %v2241 = vlaneseq
    %v2242 = vshrl.u32 %v2241, 7
    %v2243 = vsub.s32 5, %v2242
    %v2244 = vrot.slane %v1748, %v2243
    %v2245 = vlaneseq
    %v2246 = vshrl.u32 %v2245, 7
    %v2247 = vsub.s32 6, %v2246
    %v2248 = vrot.slane %v1748, %v2247
    %v2249 = vlaneseq
    %v2250 = vshrl.u32 %v2249, 7
    %v2251 = vsub.s32 7, %v2250
    %v2252 = vrot.slane %v1748, %v2251
    %v2253 = vlaneseq
    %v2254 = vshrl.u32 %v2253, 7
    %v2255 = vsub.s32 0, %v2254
    %v2256 = vrot.slane %v1750, %v2255
    %v2257 = vlaneseq
    %v2258 = vshrl.u32 %v2257, 7
    %v2259 = vsub.s32 1, %v2258
    %v2260 = vrot.slane %v1750, %v2259
    %v2261 = vlaneseq
    %v2262 = vshrl.u32 %v2261, 7
    %v2263 = vsub.s32 2, %v2262
    %v2264 = vrot.slane %v1750, %v2263
    %v2265 = vlaneseq
    %v2266 = vshrl.u32 %v2265, 7
    %v2267 = vsub.s32 3, %v2266
    %v2268 = vrot.slane %v1750, %v2267
    %v2269 = vlaneseq
    %v2270 = vshrl.u32 %v2269, 7
    %v2271 = vsub.s32 4, %v2270
    %v2272 = vrot.slane %v1750, %v2271
    %v2273 = vlaneseq
    %v2274 = vshrl.u32 %v2273, 7
    %v2275 = vsub.s32 5, %v2274
    %v2276 = vrot.slane %v1750, %v2275
    %v2277 = vlaneseq
    %v2278 = vshrl.u32 %v2277, 7
    %v2279 = vsub.s32 6, %v2278
    %v2280 = vrot.slane %v1750, %v2279
    %v2281 = vlaneseq
    %v2282 = vshrl.u32 %v2281, 7
    %v2283 = vsub.s32 7, %v2282
    %v2284 = vrot.slane %v1750, %v2283
    %v2285 = vlaneseq
    %v2286 = vshrl.u32 %v2285, 7
    %v2287 = vsub.s32 0, %v2286
    %v2288 = vrot.slane %v1752, %v2287
    %v2289 = vlaneseq
    %v2290 = vshrl.u32 %v2289, 7
    %v2291 = vsub.s32 1, %v2290
    %v2292 = vrot.slane %v1752, %v2291
    %v2293 = vlaneseq
    %v2294 = vshrl.u32 %v2293, 7
    %v2295 = vsub.s32 2, %v2294
    %v2296 = vrot.slane %v1752, %v2295
    %v2297 = vlaneseq
    %v2298 = vshrl.u32 %v2297, 7
    %v2299 = vsub.s32 3, %v2298
    %v2300 = vrot.slane %v1752, %v2299
    %v2301 = vlaneseq
    %v2302 = vshrl.u32 %v2301, 7
    %v2303 = vsub.s32 4, %v2302
    %v2304 = vrot.slane %v1752, %v2303
    %v2305 = vlaneseq
    %v2306 = vshrl.u32 %v2305, 7
    %v2307 = vsub.s32 5, %v2306
    %v2308 = vrot.slane %v1752, %v2307
    %v2309 = vlaneseq
    %v2310 = vshrl.u32 %v2309, 7
    %v2311 = vsub.s32 6, %v2310
    %v2312 = vrot.slane %v1752, %v2311
    %v2313 = vlaneseq
    %v2314 = vshrl.u32 %v2313, 7
    %v2315 = vsub.s32 7, %v2314
    %v2316 = vrot.slane %v1752, %v2315
    %v2317 = vlaneseq
    %v2318 = vshrl.u32 %v2317, 7
    %v2319 = vsub.s32 0, %v2318
    %v2320 = vrot.slane %v1754, %v2319
    %v2321 = vlaneseq
    %v2322 = vshrl.u32 %v2321, 7
    %v2323 = vsub.s32 1, %v2322
    %v2324 = vrot.slane %v1754, %v2323
    %v2325 = vlaneseq
    %v2326 = vshrl.u32 %v2325, 7
    %v2327 = vsub.s32 2, %v2326
    %v2328 = vrot.slane %v1754, %v2327
    %v2329 = vlaneseq
    %v2330 = vshrl.u32 %v2329, 7
    %v2331 = vsub.s32 3, %v2330
    %v2332 = vrot.slane %v1754, %v2331
    %v2333 = vlaneseq
    %v2334 = vshrl.u32 %v2333, 7
    %v2335 = vsub.s32 4, %v2334
    %v2336 = vrot.slane %v1754, %v2335
    %v2337 = vlaneseq
    %v2338 = vshrl.u32 %v2337, 7
    %v2339 = vsub.s32 5, %v2338
    %v2340 = vrot.slane %v1754, %v2339
    %v2341 = vlaneseq
    %v2342 = vshrl.u32 %v2341, 7
    %v2343 = vsub.s32 6, %v2342
    %v2344 = vrot.slane %v1754, %v2343
    %v2345 = vlaneseq
    %v2346 = vshrl.u32 %v2345, 7
    %v2347 = vsub.s32 7, %v2346
    %v2348 = vrot.slane %v1754, %v2347
    %v2349 = vlaneseq
    %v2350 = vshrl.u32 %v2349, 7
    %v2351 = vsub.s32 0, %v2350
    %v2352 = vrot.slane %v1756, %v2351
    %v2353 = vlaneseq
    %v2354 = vshrl.u32 %v2353, 7
    %v2355 = vsub.s32 1, %v2354
    %v2356 = vrot.slane %v1756, %v2355
    %v2357 = vlaneseq
    %v2358 = vshrl.u32 %v2357, 7
    %v2359 = vsub.s32 2, %v2358
    %v2360 = vrot.slane %v1756, %v2359
    %v2361 = vlaneseq
    %v2362 = vshrl.u32 %v2361, 7
    %v2363 = vsub.s32 3, %v2362
    %v2364 = vrot.slane %v1756, %v2363
    %v2365 = vlaneseq
    %v2366 = vshrl.u32 %v2365, 7
    %v2367 = vsub.s32 4, %v2366
    %v2368 = vrot.slane %v1756, %v2367
    %v2369 = vlaneseq
    %v2370 = vshrl.u32 %v2369, 7
    %v2371 = vsub.s32 5, %v2370
    %v2372 = vrot.slane %v1756, %v2371
    %v2373 = vlaneseq
    %v2374 = vshrl.u32 %v2373, 7
    %v2375 = vsub.s32 6, %v2374
    %v2376 = vrot.slane %v1756, %v2375
    %v2377 = vlaneseq
    %v2378 = vshrl.u32 %v2377, 7
    %v2379 = vsub.s32 7, %v2378
    %v2380 = vrot.slane %v1756, %v2379
    %v2381 = vlaneseq
    %v2382 = vshrl.u32 %v2381, 7
    %v2383 = vsub.s32 0, %v2382
    %v2384 = vrot.slane %v1758, %v2383
    %v2385 = vlaneseq
    %v2386 = vshrl.u32 %v2385, 7
    %v2387 = vsub.s32 1, %v2386
    %v2388 = vrot.slane %v1758, %v2387
    %v2389 = vlaneseq
    %v2390 = vshrl.u32 %v2389, 7
    %v2391 = vsub.s32 2, %v2390
    %v2392 = vrot.slane %v1758, %v2391
    %v2393 = vlaneseq
    %v2394 = vshrl.u32 %v2393, 7
    %v2395 = vsub.s32 3, %v2394
    %v2396 = vrot.slane %v1758, %v2395
    %v2397 = vlaneseq
    %v2398 = vshrl.u32 %v2397, 7
    %v2399 = vsub.s32 4, %v2398
    %v2400 = vrot.slane %v1758, %v2399
    %v2401 = vlaneseq
    %v2402 = vshrl.u32 %v2401, 7
    %v2403 = vsub.s32 5, %v2402
    %v2404 = vrot.slane %v1758, %v2403
    %v2405 = vlaneseq
    %v2406 = vshrl.u32 %v2405, 7
    %v2407 = vsub.s32 6, %v2406
    %v2408 = vrot.slane %v1758, %v2407
    %v2409 = vlaneseq
    %v2410 = vshrl.u32 %v2409, 7
    %v2411 = vsub.s32 7, %v2410
    %v2412 = vrot.slane %v1758, %v2411
    %v2413 = vlaneseq
    %v2414 = vshrl.u32 %v2413, 7
    %v2415 = vsub.s32 0, %v2414
    %v2416 = vrot.slane %v1760, %v2415
    %v2417 = vlaneseq
    %v2418 = vshrl.u32 %v2417, 7
    %v2419 = vsub.s32 1, %v2418
    %v2420 = vrot.slane %v1760, %v2419
    %v2421 = vlaneseq
    %v2422 = vshrl.u32 %v2421, 7
    %v2423 = vsub.s32 2, %v2422
    %v2424 = vrot.slane %v1760, %v2423
    %v2425 = vlaneseq
    %v2426 = vshrl.u32 %v2425, 7
    %v2427 = vsub.s32 3, %v2426
    %v2428 = vrot.slane %v1760, %v2427
    %v2429 = vlaneseq
    %v2430 = vshrl.u32 %v2429, 7
    %v2431 = vsub.s32 4, %v2430
    %v2432 = vrot.slane %v1760, %v2431
    %v2433 = vlaneseq
    %v2434 = vshrl.u32 %v2433, 7
    %v2435 = vsub.s32 5, %v2434
    %v2436 = vrot.slane %v1760, %v2435
    %v2437 = vlaneseq
    %v2438 = vshrl.u32 %v2437, 7
    %v2439 = vsub.s32 6, %v2438
    %v2440 = vrot.slane %v1760, %v2439
    %v2441 = vlaneseq
    %v2442 = vshrl.u32 %v2441, 7
    %v2443 = vsub.s32 7, %v2442
    %v2444 = vrot.slane %v1760, %v2443
    %v2445 = vlaneseq
    %v2446 = vshrl.u32 %v2445, 7
    %v2447 = vsub.s32 0, %v2446
    %v2448 = vrot.slane %v1762, %v2447
    %v2449 = vlaneseq
    %v2450 = vshrl.u32 %v2449, 7
    %v2451 = vsub.s32 1, %v2450
    %v2452 = vrot.slane %v1762, %v2451
    %v2453 = vlaneseq
    %v2454 = vshrl.u32 %v2453, 7
    %v2455 = vsub.s32 2, %v2454
    %v2456 = vrot.slane %v1762, %v2455
    %v2457 = vlaneseq
    %v2458 = vshrl.u32 %v2457, 7
    %v2459 = vsub.s32 3, %v2458
    %v2460 = vrot.slane %v1762, %v2459
    %v2461 = vlaneseq
    %v2462 = vshrl.u32 %v2461, 7
    %v2463 = vsub.s32 4, %v2462
    %v2464 = vrot.slane %v1762, %v2463
    %v2465 = vlaneseq
    %v2466 = vshrl.u32 %v2465, 7
    %v2467 = vsub.s32 5, %v2466
    %v2468 = vrot.slane %v1762, %v2467
    %v2469 = vlaneseq
    %v2470 = vshrl.u32 %v2469, 7
    %v2471 = vsub.s32 6, %v2470
    %v2472 = vrot.slane %v1762, %v2471
    %v2473 = vlaneseq
    %v2474 = vshrl.u32 %v2473, 7
    %v2475 = vsub.s32 7, %v2474
    %v2476 = vrot.slane %v1762, %v2475
    %v2477 = vlaneseq
    %v2478 = vshrl.u32 %v2477, 7
    %v2479 = vsub.s32 0, %v2478
    %v2480 = vrot.slane %v1764, %v2479
    %v2481 = vlaneseq
    %v2482 = vshrl.u32 %v2481, 7
    %v2483 = vsub.s32 1, %v2482
    %v2484 = vrot.slane %v1764, %v2483
    %v2485 = vlaneseq
    %v2486 = vshrl.u32 %v2485, 7
    %v2487 = vsub.s32 2, %v2486
    %v2488 = vrot.slane %v1764, %v2487
    %v2489 = vlaneseq
    %v2490 = vshrl.u32 %v2489, 7
    %v2491 = vsub.s32 3, %v2490
    %v2492 = vrot.slane %v1764, %v2491
    %v2493 = vlaneseq
    %v2494 = vshrl.u32 %v2493, 7
    %v2495 = vsub.s32 4, %v2494
    %v2496 = vrot.slane %v1764, %v2495
    %v2497 = vlaneseq
    %v2498 = vshrl.u32 %v2497, 7
    %v2499 = vsub.s32 5, %v2498
    %v2500 = vrot.slane %v1764, %v2499
    %v2501 = vlaneseq
    %v2502 = vshrl.u32 %v2501, 7
    %v2503 = vsub.s32 6, %v2502
    %v2504 = vrot.slane %v1764, %v2503
    %v2505 = vlaneseq
    %v2506 = vshrl.u32 %v2505, 7
    %v2507 = vsub.s32 7, %v2506
    %v2508 = vrot.slane %v1764, %v2507
    %v2509 = vlaneseq
    %v2510 = vshrl.u32 %v2509, 7
    %v2511 = vsub.s32 0, %v2510
    %v2512 = vrot.slane %v1766, %v2511
    %v2513 = vlaneseq
    %v2514 = vshrl.u32 %v2513, 7
    %v2515 = vsub.s32 1, %v2514
    %v2516 = vrot.slane %v1766, %v2515
    %v2517 = vlaneseq
    %v2518 = vshrl.u32 %v2517, 7
    %v2519 = vsub.s32 2, %v2518
    %v2520 = vrot.slane %v1766, %v2519
    %v2521 = vlaneseq
    %v2522 = vshrl.u32 %v2521, 7
    %v2523 = vsub.s32 3, %v2522
    %v2524 = vrot.slane %v1766, %v2523
    %v2525 = vlaneseq
    %v2526 = vshrl.u32 %v2525, 7
    %v2527 = vsub.s32 4, %v2526
    %v2528 = vrot.slane %v1766, %v2527
    %v2529 = vlaneseq
    %v2530 = vshrl.u32 %v2529, 7
    %v2531 = vsub.s32 5, %v2530
    %v2532 = vrot.slane %v1766, %v2531
    %v2533 = vlaneseq
    %v2534 = vshrl.u32 %v2533, 7
    %v2535 = vsub.s32 6, %v2534
    %v2536 = vrot.slane %v1766, %v2535
    %v2537 = vlaneseq
    %v2538 = vshrl.u32 %v2537, 7
    %v2539 = vsub.s32 7, %v2538
    %v2540 = vrot.slane %v1766, %v2539
    %v2541 = vlaneseq
    %v2542 = vshrl.u32 %v2541, 7
    %v2543 = vsub.s32 0, %v2542
    %v2544 = vrot.slane %v1768, %v2543
    %v2545 = vlaneseq
    %v2546 = vshrl.u32 %v2545, 7
    %v2547 = vsub.s32 1, %v2546
    %v2548 = vrot.slane %v1768, %v2547
    %v2549 = vlaneseq
    %v2550 = vshrl.u32 %v2549, 7
    %v2551 = vsub.s32 2, %v2550
    %v2552 = vrot.slane %v1768, %v2551
    %v2553 = vlaneseq
    %v2554 = vshrl.u32 %v2553, 7
    %v2555 = vsub.s32 3, %v2554
    %v2556 = vrot.slane %v1768, %v2555
    %v2557 = vlaneseq
    %v2558 = vshrl.u32 %v2557, 7
    %v2559 = vsub.s32 4, %v2558
    %v2560 = vrot.slane %v1768, %v2559
    %v2561 = vlaneseq
    %v2562 = vshrl.u32 %v2561, 7
    %v2563 = vsub.s32 5, %v2562
    %v2564 = vrot.slane %v1768, %v2563
    %v2565 = vlaneseq
    %v2566 = vshrl.u32 %v2565, 7
    %v2567 = vsub.s32 6, %v2566
    %v2568 = vrot.slane %v1768, %v2567
    %v2569 = vlaneseq
    %v2570 = vshrl.u32 %v2569, 7
    %v2571 = vsub.s32 7, %v2570
    %v2572 = vrot.slane %v1768, %v2571
    %v2573 = vlaneseq
    %v2574 = vshrl.u32 %v2573, 7
    %v2575 = vsub.s32 0, %v2574
    %v2576 = vrot.slane %v1770, %v2575
    %v2577 = vlaneseq
    %v2578 = vshrl.u32 %v2577, 7
    %v2579 = vsub.s32 1, %v2578
    %v2580 = vrot.slane %v1770, %v2579
    %v2581 = vlaneseq
    %v2582 = vshrl.u32 %v2581, 7
    %v2583 = vsub.s32 2, %v2582
    %v2584 = vrot.slane %v1770, %v2583
    %v2585 = vlaneseq
    %v2586 = vshrl.u32 %v2585, 7
    %v2587 = vsub.s32 3, %v2586
    %v2588 = vrot.slane %v1770, %v2587
    %v2589 = vlaneseq
    %v2590 = vshrl.u32 %v2589, 7
    %v2591 = vsub.s32 4, %v2590
    %v2592 = vrot.slane %v1770, %v2591
    %v2593 = vlaneseq
    %v2594 = vshrl.u32 %v2593, 7
    %v2595 = vsub.s32 5, %v2594
    %v2596 = vrot.slane %v1770, %v2595
    %v2597 = vlaneseq
    %v2598 = vshrl.u32 %v2597, 7
    %v2599 = vsub.s32 6, %v2598
    %v2600 = vrot.slane %v1770, %v2599
    %v2601 = vlaneseq
    %v2602 = vshrl.u32 %v2601, 7
    %v2603 = vsub.s32 7, %v2602
    %v2604 = vrot.slane %v1770, %v2603
    %v2605 = vlaneseq
    %v2606 = vshrl.u32 %v2605, 7
    %v2607 = vsub.s32 0, %v2606
    %v2608 = vrot.slane %v1772, %v2607
    %v2609 = vlaneseq
    %v2610 = vshrl.u32 %v2609, 7
    %v2611 = vsub.s32 1, %v2610
    %v2612 = vrot.slane %v1772, %v2611
    %v2613 = vlaneseq
    %v2614 = vshrl.u32 %v2613, 7
    %v2615 = vsub.s32 2, %v2614
    %v2616 = vrot.slane %v1772, %v2615
    %v2617 = vlaneseq
    %v2618 = vshrl.u32 %v2617, 7
    %v2619 = vsub.s32 3, %v2618
    %v2620 = vrot.slane %v1772, %v2619
    %v2621 = vlaneseq
    %v2622 = vshrl.u32 %v2621, 7
    %v2623 = vsub.s32 4, %v2622
    %v2624 = vrot.slane %v1772, %v2623
    %v2625 = vlaneseq
    %v2626 = vshrl.u32 %v2625, 7
    %v2627 = vsub.s32 5, %v2626
    %v2628 = vrot.slane %v1772, %v2627
    %v2629 = vlaneseq
    %v2630 = vshrl.u32 %v2629, 7
    %v2631 = vsub.s32 6, %v2630
    %v2632 = vrot.slane %v1772, %v2631
    %v2633 = vlaneseq
    %v2634 = vshrl.u32 %v2633, 7
    %v2635 = vsub.s32 7, %v2634
    %v2636 = vrot.slane %v1772, %v2635
    %v2637 = vlaneseq
    %v2638 = vshrl.u32 %v2637, 7
    %v2639 = vsub.s32 0, %v2638
    %v2640 = vrot.slane %v1774, %v2639
    %v2641 = vlaneseq
    %v2642 = vshrl.u32 %v2641, 7
    %v2643 = vsub.s32 1, %v2642
    %v2644 = vrot.slane %v1774, %v2643
    %v2645 = vlaneseq
    %v2646 = vshrl.u32 %v2645, 7
    %v2647 = vsub.s32 2, %v2646
    %v2648 = vrot.slane %v1774, %v2647
    %v2649 = vlaneseq
    %v2650 = vshrl.u32 %v2649, 7
    %v2651 = vsub.s32 3, %v2650
    %v2652 = vrot.slane %v1774, %v2651
    %v2653 = vlaneseq
    %v2654 = vshrl.u32 %v2653, 7
    %v2655 = vsub.s32 4, %v2654
    %v2656 = vrot.slane %v1774, %v2655
    %v2657 = vlaneseq
    %v2658 = vshrl.u32 %v2657, 7
    %v2659 = vsub.s32 5, %v2658
    %v2660 = vrot.slane %v1774, %v2659
    %v2661 = vlaneseq
    %v2662 = vshrl.u32 %v2661, 7
    %v2663 = vsub.s32 6, %v2662
    %v2664 = vrot.slane %v1774, %v2663
    %v2665 = vlaneseq
    %v2666 = vshrl.u32 %v2665, 7
    %v2667 = vsub.s32 7, %v2666
    %v2668 = vrot.slane %v1774, %v2667
    %v2669 = vlaneseq
    %v2670 = vshrl.u32 %v2669, 7
    %v2671 = vsub.s32 0, %v2670
    %v2672 = vrot.slane %v1776, %v2671
    %v2673 = vlaneseq
    %v2674 = vshrl.u32 %v2673, 7
    %v2675 = vsub.s32 1, %v2674
    %v2676 = vrot.slane %v1776, %v2675
    %v2677 = vlaneseq
    %v2678 = vshrl.u32 %v2677, 7
    %v2679 = vsub.s32 2, %v2678
    %v2680 = vrot.slane %v1776, %v2679
    %v2681 = vlaneseq
    %v2682 = vshrl.u32 %v2681, 7
    %v2683 = vsub.s32 3, %v2682
    %v2684 = vrot.slane %v1776, %v2683
    %v2685 = vlaneseq
    %v2686 = vshrl.u32 %v2685, 7
    %v2687 = vsub.s32 4, %v2686
    %v2688 = vrot.slane %v1776, %v2687
    %v2689 = vlaneseq
    %v2690 = vshrl.u32 %v2689, 7
    %v2691 = vsub.s32 5, %v2690
    %v2692 = vrot.slane %v1776, %v2691
    %v2693 = vlaneseq
    %v2694 = vshrl.u32 %v2693, 7
    %v2695 = vsub.s32 6, %v2694
    %v2696 = vrot.slane %v1776, %v2695
    %v2697 = vlaneseq
    %v2698 = vshrl.u32 %v2697, 7
    %v2699 = vsub.s32 7, %v2698
    %v2700 = vrot.slane %v1776, %v2699
    %v2701 = vlaneseq
    %v2702 = vshrl.u32 %v2701, 7
    %v2703 = vsub.s32 0, %v2702
    %v2704 = vrot.slane %v1778, %v2703
    %v2705 = vlaneseq
    %v2706 = vshrl.u32 %v2705, 7
    %v2707 = vsub.s32 1, %v2706
    %v2708 = vrot.slane %v1778, %v2707
    %v2709 = vlaneseq
    %v2710 = vshrl.u32 %v2709, 7
    %v2711 = vsub.s32 2, %v2710
    %v2712 = vrot.slane %v1778, %v2711
    %v2713 = vlaneseq
    %v2714 = vshrl.u32 %v2713, 7
    %v2715 = vsub.s32 3, %v2714
    %v2716 = vrot.slane %v1778, %v2715
    %v2717 = vlaneseq
    %v2718 = vshrl.u32 %v2717, 7
    %v2719 = vsub.s32 4, %v2718
    %v2720 = vrot.slane %v1778, %v2719
    %v2721 = vlaneseq
    %v2722 = vshrl.u32 %v2721, 7
    %v2723 = vsub.s32 5, %v2722
    %v2724 = vrot.slane %v1778, %v2723
    %v2725 = vlaneseq
    %v2726 = vshrl.u32 %v2725, 7
    %v2727 = vsub.s32 6, %v2726
    %v2728 = vrot.slane %v1778, %v2727
    %v2729 = vlaneseq
    %v2730 = vshrl.u32 %v2729, 7
    %v2731 = vsub.s32 7, %v2730
    %v2732 = vrot.slane %v1778, %v2731
    %v2733 = vlaneseq
    %v2734 = vshrl.u32 %v2733, 7
    %v2735 = vsub.s32 0, %v2734
    %v2736 = vrot.slane %v1780, %v2735
    %v2737 = vlaneseq
    %v2738 = vshrl.u32 %v2737, 7
    %v2739 = vsub.s32 1, %v2738
    %v2740 = vrot.slane %v1780, %v2739
    %v2741 = vlaneseq
    %v2742 = vshrl.u32 %v2741, 7
    %v2743 = vsub.s32 2, %v2742
    %v2744 = vrot.slane %v1780, %v2743
    %v2745 = vlaneseq
    %v2746 = vshrl.u32 %v2745, 7
    %v2747 = vsub.s32 3, %v2746
    %v2748 = vrot.slane %v1780, %v2747
    %v2749 = vlaneseq
    %v2750 = vshrl.u32 %v2749, 7
    %v2751 = vsub.s32 4, %v2750
    %v2752 = vrot.slane %v1780, %v2751
    %v2753 = vlaneseq
    %v2754 = vshrl.u32 %v2753, 7
    %v2755 = vsub.s32 5, %v2754
    %v2756 = vrot.slane %v1780, %v2755
    %v2757 = vlaneseq
    %v2758 = vshrl.u32 %v2757, 7
    %v2759 = vsub.s32 6, %v2758
    %v2760 = vrot.slane %v1780, %v2759
    %v2761 = vlaneseq
    %v2762 = vshrl.u32 %v2761, 7
    %v2763 = vsub.s32 7, %v2762
    %v2764 = vrot.slane %v1780, %v2763
    %v2765 = vlaneseq
    %v2766 = vshrl.u32 %v2765, 7
    %v2767 = vsub.s32 0, %v2766
    %v2768 = vrot.slane %v1782, %v2767
    %v2769 = vlaneseq
    %v2770 = vshrl.u32 %v2769, 7
    %v2771 = vsub.s32 1, %v2770
    %v2772 = vrot.slane %v1782, %v2771
    %v2773 = vlaneseq
    %v2774 = vshrl.u32 %v2773, 7
    %v2775 = vsub.s32 2, %v2774
    %v2776 = vrot.slane %v1782, %v2775
    %v2777 = vlaneseq
    %v2778 = vshrl.u32 %v2777, 7
    %v2779 = vsub.s32 3, %v2778
    %v2780 = vrot.slane %v1782, %v2779
    %v2781 = vlaneseq
    %v2782 = vshrl.u32 %v2781, 7
    %v2783 = vsub.s32 4, %v2782
    %v2784 = vrot.slane %v1782, %v2783
    %v2785 = vlaneseq
    %v2786 = vshrl.u32 %v2785, 7
    %v2787 = vsub.s32 5, %v2786
    %v2788 = vrot.slane %v1782, %v2787
    %v2789 = vlaneseq
    %v2790 = vshrl.u32 %v2789, 7
    %v2791 = vsub.s32 6, %v2790
    %v2792 = vrot.slane %v1782, %v2791
    %v2793 = vlaneseq
    %v2794 = vshrl.u32 %v2793, 7
    %v2795 = vsub.s32 7, %v2794
    %v2796 = vrot.slane %v1782, %v2795
    %v2797 = vlaneseq
    %v2798 = vshrl.u32 %v2797, 7
    %v2799 = vsub.s32 0, %v2798
    %v2800 = vrot.slane %v1784, %v2799
    %v2801 = vlaneseq
    %v2802 = vshrl.u32 %v2801, 7
    %v2803 = vsub.s32 1, %v2802
    %v2804 = vrot.slane %v1784, %v2803
    %v2805 = vlaneseq
    %v2806 = vshrl.u32 %v2805, 7
    %v2807 = vsub.s32 2, %v2806
    %v2808 = vrot.slane %v1784, %v2807
    %v2809 = vlaneseq
    %v2810 = vshrl.u32 %v2809, 7
    %v2811 = vsub.s32 3, %v2810
    %v2812 = vrot.slane %v1784, %v2811
    %v2813 = vlaneseq
    %v2814 = vshrl.u32 %v2813, 7
    %v2815 = vsub.s32 4, %v2814
    %v2816 = vrot.slane %v1784, %v2815
    %v2817 = vlaneseq
    %v2818 = vshrl.u32 %v2817, 7
    %v2819 = vsub.s32 5, %v2818
    %v2820 = vrot.slane %v1784, %v2819
    %v2821 = vlaneseq
    %v2822 = vshrl.u32 %v2821, 7
    %v2823 = vsub.s32 6, %v2822
    %v2824 = vrot.slane %v1784, %v2823
    %v2825 = vlaneseq
    %v2826 = vshrl.u32 %v2825, 7
    %v2827 = vsub.s32 7, %v2826
    %v2828 = vrot.slane %v1784, %v2827
    %v2829 = vlaneseq
    %v2830 = vshrl.u32 %v2829, 7
    %v2831 = vsub.s32 0, %v2830
    %v2832 = vrot.slane %v1786, %v2831
    %v2833 = vlaneseq
    %v2834 = vshrl.u32 %v2833, 7
    %v2835 = vsub.s32 1, %v2834
    %v2836 = vrot.slane %v1786, %v2835
    %v2837 = vlaneseq
    %v2838 = vshrl.u32 %v2837, 7
    %v2839 = vsub.s32 2, %v2838
    %v2840 = vrot.slane %v1786, %v2839
    %v2841 = vlaneseq
    %v2842 = vshrl.u32 %v2841, 7
    %v2843 = vsub.s32 3, %v2842
    %v2844 = vrot.slane %v1786, %v2843
    %v2845 = vlaneseq
    %v2846 = vshrl.u32 %v2845, 7
    %v2847 = vsub.s32 4, %v2846
    %v2848 = vrot.slane %v1786, %v2847
    %v2849 = vlaneseq
    %v2850 = vshrl.u32 %v2849, 7
    %v2851 = vsub.s32 5, %v2850
    %v2852 = vrot.slane %v1786, %v2851
    %v2853 = vlaneseq
    %v2854 = vshrl.u32 %v2853, 7
    %v2855 = vsub.s32 6, %v2854
    %v2856 = vrot.slane %v1786, %v2855
    %v2857 = vlaneseq
    %v2858 = vshrl.u32 %v2857, 7
    %v2859 = vsub.s32 7, %v2858
    %v2860 = vrot.slane %v1786, %v2859
    %v2861 = vlaneseq
    %v2862 = vshrl.u32 %v2861, 7
    %v2863 = vsub.s32 0, %v2862
    %v2864 = vrot.slane %v1788, %v2863
    %v2865 = vlaneseq
    %v2866 = vshrl.u32 %v2865, 7
    %v2867 = vsub.s32 1, %v2866
    %v2868 = vrot.slane %v1788, %v2867
    %v2869 = vlaneseq
    %v2870 = vshrl.u32 %v2869, 7
    %v2871 = vsub.s32 2, %v2870
    %v2872 = vrot.slane %v1788, %v2871
    %v2873 = vlaneseq
    %v2874 = vshrl.u32 %v2873, 7
    %v2875 = vsub.s32 3, %v2874
    %v2876 = vrot.slane %v1788, %v2875
    %v2877 = vlaneseq
    %v2878 = vshrl.u32 %v2877, 7
    %v2879 = vsub.s32 4, %v2878
    %v2880 = vrot.slane %v1788, %v2879
    %v2881 = vlaneseq
    %v2882 = vshrl.u32 %v2881, 7
    %v2883 = vsub.s32 5, %v2882
    %v2884 = vrot.slane %v1788, %v2883
    %v2885 = vlaneseq
    %v2886 = vshrl.u32 %v2885, 7
    %v2887 = vsub.s32 6, %v2886
    %v2888 = vrot.slane %v1788, %v2887
    %v2889 = vlaneseq
    %v2890 = vshrl.u32 %v2889, 7
    %v2891 = vsub.s32 7, %v2890
    %v2892 = vrot.slane %v1788, %v2891
    %v2893 = vlaneseq
    %v2894 = vshrl.u32 %v2893, 7
    %v2895 = vsub.s32 0, %v2894
    %v2896 = vrot.slane %v1790, %v2895
    %v2897 = vlaneseq
    %v2898 = vshrl.u32 %v2897, 7
    %v2899 = vsub.s32 1, %v2898
    %v2900 = vrot.slane %v1790, %v2899
    %v2901 = vlaneseq
    %v2902 = vshrl.u32 %v2901, 7
    %v2903 = vsub.s32 2, %v2902
    %v2904 = vrot.slane %v1790, %v2903
    %v2905 = vlaneseq
    %v2906 = vshrl.u32 %v2905, 7
    %v2907 = vsub.s32 3, %v2906
    %v2908 = vrot.slane %v1790, %v2907
    %v2909 = vlaneseq
    %v2910 = vshrl.u32 %v2909, 7
    %v2911 = vsub.s32 4, %v2910
    %v2912 = vrot.slane %v1790, %v2911
    %v2913 = vlaneseq
    %v2914 = vshrl.u32 %v2913, 7
    %v2915 = vsub.s32 5, %v2914
    %v2916 = vrot.slane %v1790, %v2915
    %v2917 = vlaneseq
    %v2918 = vshrl.u32 %v2917, 7
    %v2919 = vsub.s32 6, %v2918
    %v2920 = vrot.slane %v1790, %v2919
    %v2921 = vlaneseq
    %v2922 = vshrl.u32 %v2921, 7
    %v2923 = vsub.s32 7, %v2922
    %v2924 = vrot.slane %v1790, %v2923
    %v2925 = vlaneseq
    %v2926 = vshrl.u32 %v2925, 7
    %v2927 = vsub.s32 0, %v2926
    %v2928 = vrot.slane %v1792, %v2927
    %v2929 = vlaneseq
    %v2930 = vshrl.u32 %v2929, 7
    %v2931 = vsub.s32 1, %v2930
    %v2932 = vrot.slane %v1792, %v2931
    %v2933 = vlaneseq
    %v2934 = vshrl.u32 %v2933, 7
    %v2935 = vsub.s32 2, %v2934
    %v2936 = vrot.slane %v1792, %v2935
    %v2937 = vlaneseq
    %v2938 = vshrl.u32 %v2937, 7
    %v2939 = vsub.s32 3, %v2938
    %v2940 = vrot.slane %v1792, %v2939
    %v2941 = vlaneseq
    %v2942 = vshrl.u32 %v2941, 7
    %v2943 = vsub.s32 4, %v2942
    %v2944 = vrot.slane %v1792, %v2943
    %v2945 = vlaneseq
    %v2946 = vshrl.u32 %v2945, 7
    %v2947 = vsub.s32 5, %v2946
    %v2948 = vrot.slane %v1792, %v2947
    %v2949 = vlaneseq
    %v2950 = vshrl.u32 %v2949, 7
    %v2951 = vsub.s32 6, %v2950
    %v2952 = vrot.slane %v1792, %v2951
    %v2953 = vlaneseq
    %v2954 = vshrl.u32 %v2953, 7
    %v2955 = vsub.s32 7, %v2954
    %v2956 = vrot.slane %v1792, %v2955
    %v2957 = vlaneseq
    %v2958 = vshrl.u32 %v2957, 7
    %v2959 = vsub.s32 0, %v2958
    %v2960 = vrot.slane %v1794, %v2959
    %v2961 = vlaneseq
    %v2962 = vshrl.u32 %v2961, 7
    %v2963 = vsub.s32 1, %v2962
    %v2964 = vrot.slane %v1794, %v2963
    %v2965 = vlaneseq
    %v2966 = vshrl.u32 %v2965, 7
    %v2967 = vsub.s32 2, %v2966
    %v2968 = vrot.slane %v1794, %v2967
    %v2969 = vlaneseq
    %v2970 = vshrl.u32 %v2969, 7
    %v2971 = vsub.s32 3, %v2970
    %v2972 = vrot.slane %v1794, %v2971
    %v2973 = vlaneseq
    %v2974 = vshrl.u32 %v2973, 7
    %v2975 = vsub.s32 4, %v2974
    %v2976 = vrot.slane %v1794, %v2975
    %v2977 = vlaneseq
    %v2978 = vshrl.u32 %v2977, 7
    %v2979 = vsub.s32 5, %v2978
    %v2980 = vrot.slane %v1794, %v2979
    %v2981 = vlaneseq
    %v2982 = vshrl.u32 %v2981, 7
    %v2983 = vsub.s32 6, %v2982
    %v2984 = vrot.slane %v1794, %v2983
    %v2985 = vlaneseq
    %v2986 = vshrl.u32 %v2985, 7
    %v2987 = vsub.s32 7, %v2986
    %v2988 = vrot.slane %v1794, %v2987
    %v2989 = vlaneseq
    %v2990 = vshrl.u32 %v2989, 7
    %v2991 = vsub.s32 0, %v2990
    %v2992 = vrot.slane %v1796, %v2991
    %v2993 = vlaneseq
    %v2994 = vshrl.u32 %v2993, 7
    %v2995 = vsub.s32 1, %v2994
    %v2996 = vrot.slane %v1796, %v2995
    %v2997 = vlaneseq
    %v2998 = vshrl.u32 %v2997, 7
    %v2999 = vsub.s32 2, %v2998
    %v3000 = vrot.slane %v1796, %v2999
    %v3001 = vlaneseq
    %v3002 = vshrl.u32 %v3001, 7
    %v3003 = vsub.s32 3, %v3002
    %v3004 = vrot.slane %v1796, %v3003
    %v3005 = vlaneseq
    %v3006 = vshrl.u32 %v3005, 7
    %v3007 = vsub.s32 4, %v3006
    %v3008 = vrot.slane %v1796, %v3007
    %v3009 = vlaneseq
    %v3010 = vshrl.u32 %v3009, 7
    %v3011 = vsub.s32 5, %v3010
    %v3012 = vrot.slane %v1796, %v3011
    %v3013 = vlaneseq
    %v3014 = vshrl.u32 %v3013, 7
    %v3015 = vsub.s32 6, %v3014
    %v3016 = vrot.slane %v1796, %v3015
    %v3017 = vlaneseq
    %v3018 = vshrl.u32 %v3017, 7
    %v3019 = vsub.s32 7, %v3018
    %v3020 = vrot.slane %v1796, %v3019
    %v3021 = vlaneseq
    %v3022 = vshrl.u32 %v3021, 7
    %v3023 = vsub.s32 0, %v3022
    %v3024 = vrot.slane %v1798, %v3023
    %v3025 = vlaneseq
    %v3026 = vshrl.u32 %v3025, 7
    %v3027 = vsub.s32 1, %v3026
    %v3028 = vrot.slane %v1798, %v3027
    %v3029 = vlaneseq
    %v3030 = vshrl.u32 %v3029, 7
    %v3031 = vsub.s32 2, %v3030
    %v3032 = vrot.slane %v1798, %v3031
    %v3033 = vlaneseq
    %v3034 = vshrl.u32 %v3033, 7
    %v3035 = vsub.s32 3, %v3034
    %v3036 = vrot.slane %v1798, %v3035
    %v3037 = vlaneseq
    %v3038 = vshrl.u32 %v3037, 7
    %v3039 = vsub.s32 4, %v3038
    %v3040 = vrot.slane %v1798, %v3039
    %v3041 = vlaneseq
    %v3042 = vshrl.u32 %v3041, 7
    %v3043 = vsub.s32 5, %v3042
    %v3044 = vrot.slane %v1798, %v3043
    %v3045 = vlaneseq
    %v3046 = vshrl.u32 %v3045, 7
    %v3047 = vsub.s32 6, %v3046
    %v3048 = vrot.slane %v1798, %v3047
    %v3049 = vlaneseq
    %v3050 = vshrl.u32 %v3049, 7
    %v3051 = vsub.s32 7, %v3050
    %v3052 = vrot.slane %v1798, %v3051
    %v3053 = vlaneseq
    %v3054 = vshrl.u32 %v3053, 7
    %v3055 = vsub.s32 0, %v3054
    %v3056 = vrot.slane %v1800, %v3055
    %v3057 = vlaneseq
    %v3058 = vshrl.u32 %v3057, 7
    %v3059 = vsub.s32 1, %v3058
    %v3060 = vrot.slane %v1800, %v3059
    %v3061 = vlaneseq
    %v3062 = vshrl.u32 %v3061, 7
    %v3063 = vsub.s32 2, %v3062
    %v3064 = vrot.slane %v1800, %v3063
    %v3065 = vlaneseq
    %v3066 = vshrl.u32 %v3065, 7
    %v3067 = vsub.s32 3, %v3066
    %v3068 = vrot.slane %v1800, %v3067
    %v3069 = vlaneseq
    %v3070 = vshrl.u32 %v3069, 7
    %v3071 = vsub.s32 4, %v3070
    %v3072 = vrot.slane %v1800, %v3071
    %v3073 = vlaneseq
    %v3074 = vshrl.u32 %v3073, 7
    %v3075 = vsub.s32 5, %v3074
    %v3076 = vrot.slane %v1800, %v3075
    %v3077 = vlaneseq
    %v3078 = vshrl.u32 %v3077, 7
    %v3079 = vsub.s32 6, %v3078
    %v3080 = vrot.slane %v1800, %v3079
    %v3081 = vlaneseq
    %v3082 = vshrl.u32 %v3081, 7
    %v3083 = vsub.s32 7, %v3082
    %v3084 = vrot.slane %v1800, %v3083
    %v3085 = vlaneseq
    %v3086 = vshrl.u32 %v3085, 7
    %v3087 = vsub.s32 0, %v3086
    %v3088 = vrot.slane %v1802, %v3087
    %v3089 = vlaneseq
    %v3090 = vshrl.u32 %v3089, 7
    %v3091 = vsub.s32 1, %v3090
    %v3092 = vrot.slane %v1802, %v3091
    %v3093 = vlaneseq
    %v3094 = vshrl.u32 %v3093, 7
    %v3095 = vsub.s32 2, %v3094
    %v3096 = vrot.slane %v1802, %v3095
    %v3097 = vlaneseq
    %v3098 = vshrl.u32 %v3097, 7
    %v3099 = vsub.s32 3, %v3098
    %v3100 = vrot.slane %v1802, %v3099
    %v3101 = vlaneseq
    %v3102 = vshrl.u32 %v3101, 7
    %v3103 = vsub.s32 4, %v3102
    %v3104 = vrot.slane %v1802, %v3103
    %v3105 = vlaneseq
    %v3106 = vshrl.u32 %v3105, 7
    %v3107 = vsub.s32 5, %v3106
    %v3108 = vrot.slane %v1802, %v3107
    %v3109 = vlaneseq
    %v3110 = vshrl.u32 %v3109, 7
    %v3111 = vsub.s32 6, %v3110
    %v3112 = vrot.slane %v1802, %v3111
    %v3113 = vlaneseq
    %v3114 = vshrl.u32 %v3113, 7
    %v3115 = vsub.s32 7, %v3114
    %v3116 = vrot.slane %v1802, %v3115
    %v3117 = vlaneseq
    %v3118 = vshrl.u32 %v3117, 7
    %v3119 = vsub.s32 0, %v3118
    %v3120 = vrot.slane %v1804, %v3119
    %v3121 = vlaneseq
    %v3122 = vshrl.u32 %v3121, 7
    %v3123 = vsub.s32 1, %v3122
    %v3124 = vrot.slane %v1804, %v3123
    %v3125 = vlaneseq
    %v3126 = vshrl.u32 %v3125, 7
    %v3127 = vsub.s32 2, %v3126
    %v3128 = vrot.slane %v1804, %v3127
    %v3129 = vlaneseq
    %v3130 = vshrl.u32 %v3129, 7
    %v3131 = vsub.s32 3, %v3130
    %v3132 = vrot.slane %v1804, %v3131
    %v3133 = vlaneseq
    %v3134 = vshrl.u32 %v3133, 7
    %v3135 = vsub.s32 4, %v3134
    %v3136 = vrot.slane %v1804, %v3135
    %v3137 = vlaneseq
    %v3138 = vshrl.u32 %v3137, 7
    %v3139 = vsub.s32 5, %v3138
    %v3140 = vrot.slane %v1804, %v3139
    %v3141 = vlaneseq
    %v3142 = vshrl.u32 %v3141, 7
    %v3143 = vsub.s32 6, %v3142
    %v3144 = vrot.slane %v1804, %v3143
    %v3145 = vlaneseq
    %v3146 = vshrl.u32 %v3145, 7
    %v3147 = vsub.s32 7, %v3146
    %v3148 = vrot.slane %v1804, %v3147
    %v3149 = vlaneseq
    %v3150 = vshrl.u32 %v3149, 7
    %v3151 = vsub.s32 0, %v3150
    %v3152 = vrot.slane %v1806, %v3151
    %v3153 = vlaneseq
    %v3154 = vshrl.u32 %v3153, 7
    %v3155 = vsub.s32 1, %v3154
    %v3156 = vrot.slane %v1806, %v3155
    %v3157 = vlaneseq
    %v3158 = vshrl.u32 %v3157, 7
    %v3159 = vsub.s32 2, %v3158
    %v3160 = vrot.slane %v1806, %v3159
    %v3161 = vlaneseq
    %v3162 = vshrl.u32 %v3161, 7
    %v3163 = vsub.s32 3, %v3162
    %v3164 = vrot.slane %v1806, %v3163
    %v3165 = vlaneseq
    %v3166 = vshrl.u32 %v3165, 7
    %v3167 = vsub.s32 4, %v3166
    %v3168 = vrot.slane %v1806, %v3167
    %v3169 = vlaneseq
    %v3170 = vshrl.u32 %v3169, 7
    %v3171 = vsub.s32 5, %v3170
    %v3172 = vrot.slane %v1806, %v3171
    %v3173 = vlaneseq
    %v3174 = vshrl.u32 %v3173, 7
    %v3175 = vsub.s32 6, %v3174
    %v3176 = vrot.slane %v1806, %v3175
    %v3177 = vlaneseq
    %v3178 = vshrl.u32 %v3177, 7
    %v3179 = vsub.s32 7, %v3178
    %v3180 = vrot.slane %v1806, %v3179
    %v3181 = vlaneseq
    %v3182 = vshrl.u32 %v3181, 7
    %v3183 = vsub.s32 0, %v3182
    %v3184 = vrot.slane %v1808, %v3183
    %v3185 = vlaneseq
    %v3186 = vshrl.u32 %v3185, 7
    %v3187 = vsub.s32 1, %v3186
    %v3188 = vrot.slane %v1808, %v3187
    %v3189 = vlaneseq
    %v3190 = vshrl.u32 %v3189, 7
    %v3191 = vsub.s32 2, %v3190
    %v3192 = vrot.slane %v1808, %v3191
    %v3193 = vlaneseq
    %v3194 = vshrl.u32 %v3193, 7
    %v3195 = vsub.s32 3, %v3194
    %v3196 = vrot.slane %v1808, %v3195
    %v3197 = vlaneseq
    %v3198 = vshrl.u32 %v3197, 7
    %v3199 = vsub.s32 4, %v3198
    %v3200 = vrot.slane %v1808, %v3199
    %v3201 = vlaneseq
    %v3202 = vshrl.u32 %v3201, 7
    %v3203 = vsub.s32 5, %v3202
    %v3204 = vrot.slane %v1808, %v3203
    %v3205 = vlaneseq
    %v3206 = vshrl.u32 %v3205, 7
    %v3207 = vsub.s32 6, %v3206
    %v3208 = vrot.slane %v1808, %v3207
    %v3209 = vlaneseq
    %v3210 = vshrl.u32 %v3209, 7
    %v3211 = vsub.s32 7, %v3210
    %v3212 = vrot.slane %v1808, %v3211
    %v3213 = vlaneseq
    %v3214 = vshrl.u32 %v3213, 7
    %v3215 = vsub.s32 0, %v3214
    %v3216 = vrot.slane %v1810, %v3215
    %v3217 = vlaneseq
    %v3218 = vshrl.u32 %v3217, 7
    %v3219 = vsub.s32 1, %v3218
    %v3220 = vrot.slane %v1810, %v3219
    %v3221 = vlaneseq
    %v3222 = vshrl.u32 %v3221, 7
    %v3223 = vsub.s32 2, %v3222
    %v3224 = vrot.slane %v1810, %v3223
    %v3225 = vlaneseq
    %v3226 = vshrl.u32 %v3225, 7
    %v3227 = vsub.s32 3, %v3226
    %v3228 = vrot.slane %v1810, %v3227
    %v3229 = vlaneseq
    %v3230 = vshrl.u32 %v3229, 7
    %v3231 = vsub.s32 4, %v3230
    %v3232 = vrot.slane %v1810, %v3231
    %v3233 = vlaneseq
    %v3234 = vshrl.u32 %v3233, 7
    %v3235 = vsub.s32 5, %v3234
    %v3236 = vrot.slane %v1810, %v3235
    %v3237 = vlaneseq
    %v3238 = vshrl.u32 %v3237, 7
    %v3239 = vsub.s32 6, %v3238
    %v3240 = vrot.slane %v1810, %v3239
    %v3241 = vlaneseq
    %v3242 = vshrl.u32 %v3241, 7
    %v3243 = vsub.s32 7, %v3242
    %v3244 = vrot.slane %v1810, %v3243
    %v3245 = vlaneseq
    %v3246 = vshrl.u32 %v3245, 7
    %v3247 = vsub.s32 0, %v3246
    %v3248 = vrot.slane %v1812, %v3247
    %v3249 = vlaneseq
    %v3250 = vshrl.u32 %v3249, 7
    %v3251 = vsub.s32 1, %v3250
    %v3252 = vrot.slane %v1812, %v3251
    %v3253 = vlaneseq
    %v3254 = vshrl.u32 %v3253, 7
    %v3255 = vsub.s32 2, %v3254
    %v3256 = vrot.slane %v1812, %v3255
    %v3257 = vlaneseq
    %v3258 = vshrl.u32 %v3257, 7
    %v3259 = vsub.s32 3, %v3258
    %v3260 = vrot.slane %v1812, %v3259
    %v3261 = vlaneseq
    %v3262 = vshrl.u32 %v3261, 7
    %v3263 = vsub.s32 4, %v3262
    %v3264 = vrot.slane %v1812, %v3263
    %v3265 = vlaneseq
    %v3266 = vshrl.u32 %v3265, 7
    %v3267 = vsub.s32 5, %v3266
    %v3268 = vrot.slane %v1812, %v3267
    %v3269 = vlaneseq
    %v3270 = vshrl.u32 %v3269, 7
    %v3271 = vsub.s32 6, %v3270
    %v3272 = vrot.slane %v1812, %v3271
    %v3273 = vlaneseq
    %v3274 = vshrl.u32 %v3273, 7
    %v3275 = vsub.s32 7, %v3274
    %v3276 = vrot.slane %v1812, %v3275
    %v3277 = vlaneseq
    %v3278 = vshrl.u32 %v3277, 7
    %v3279 = vsub.s32 0, %v3278
    %v3280 = vrot.slane %v1814, %v3279
    %v3281 = vlaneseq
    %v3282 = vshrl.u32 %v3281, 7
    %v3283 = vsub.s32 1, %v3282
    %v3284 = vrot.slane %v1814, %v3283
    %v3285 = vlaneseq
    %v3286 = vshrl.u32 %v3285, 7
    %v3287 = vsub.s32 2, %v3286
    %v3288 = vrot.slane %v1814, %v3287
    %v3289 = vlaneseq
    %v3290 = vshrl.u32 %v3289, 7
    %v3291 = vsub.s32 3, %v3290
    %v3292 = vrot.slane %v1814, %v3291
    %v3293 = vlaneseq
    %v3294 = vshrl.u32 %v3293, 7
    %v3295 = vsub.s32 4, %v3294
    %v3296 = vrot.slane %v1814, %v3295
    %v3297 = vlaneseq
    %v3298 = vshrl.u32 %v3297, 7
    %v3299 = vsub.s32 5, %v3298
    %v3300 = vrot.slane %v1814, %v3299
    %v3301 = vlaneseq
    %v3302 = vshrl.u32 %v3301, 7
    %v3303 = vsub.s32 6, %v3302
    %v3304 = vrot.slane %v1814, %v3303
    %v3305 = vlaneseq
    %v3306 = vshrl.u32 %v3305, 7
    %v3307 = vsub.s32 7, %v3306
    %v3308 = vrot.slane %v1814, %v3307
    %v3309 = vlaneseq
    %v3310 = vshrl.u32 %v3309, 7
    %v3311 = vsub.s32 0, %v3310
    %v3312 = vrot.slane %v1816, %v3311
    %v3313 = vlaneseq
    %v3314 = vshrl.u32 %v3313, 7
    %v3315 = vsub.s32 1, %v3314
    %v3316 = vrot.slane %v1816, %v3315
    %v3317 = vlaneseq
    %v3318 = vshrl.u32 %v3317, 7
    %v3319 = vsub.s32 2, %v3318
    %v3320 = vrot.slane %v1816, %v3319
    %v3321 = vlaneseq
    %v3322 = vshrl.u32 %v3321, 7
    %v3323 = vsub.s32 3, %v3322
    %v3324 = vrot.slane %v1816, %v3323
    %v3325 = vlaneseq
    %v3326 = vshrl.u32 %v3325, 7
    %v3327 = vsub.s32 4, %v3326
    %v3328 = vrot.slane %v1816, %v3327
    %v3329 = vlaneseq
    %v3330 = vshrl.u32 %v3329, 7
    %v3331 = vsub.s32 5, %v3330
    %v3332 = vrot.slane %v1816, %v3331
    %v3333 = vlaneseq
    %v3334 = vshrl.u32 %v3333, 7
    %v3335 = vsub.s32 6, %v3334
    %v3336 = vrot.slane %v1816, %v3335
    %v3337 = vlaneseq
    %v3338 = vshrl.u32 %v3337, 7
    %v3339 = vsub.s32 7, %v3338
    %v3340 = vrot.slane %v1816, %v3339
    %v3341 = vlaneseq
    %v3342 = vshrl.u32 %v3341, 7
    %v3343 = vsub.s32 0, %v3342
    %v3344 = vrot.slane %v1818, %v3343
    %v3345 = vlaneseq
    %v3346 = vshrl.u32 %v3345, 7
    %v3347 = vsub.s32 1, %v3346
    %v3348 = vrot.slane %v1818, %v3347
    %v3349 = vlaneseq
    %v3350 = vshrl.u32 %v3349, 7
    %v3351 = vsub.s32 2, %v3350
    %v3352 = vrot.slane %v1818, %v3351
    %v3353 = vlaneseq
    %v3354 = vshrl.u32 %v3353, 7
    %v3355 = vsub.s32 3, %v3354
    %v3356 = vrot.slane %v1818, %v3355
    %v3357 = vlaneseq
    %v3358 = vshrl.u32 %v3357, 7
    %v3359 = vsub.s32 4, %v3358
    %v3360 = vrot.slane %v1818, %v3359
    %v3361 = vlaneseq
    %v3362 = vshrl.u32 %v3361, 7
    %v3363 = vsub.s32 5, %v3362
    %v3364 = vrot.slane %v1818, %v3363
    %v3365 = vlaneseq
    %v3366 = vshrl.u32 %v3365, 7
    %v3367 = vsub.s32 6, %v3366
    %v3368 = vrot.slane %v1818, %v3367
    %v3369 = vlaneseq
    %v3370 = vshrl.u32 %v3369, 7
    %v3371 = vsub.s32 7, %v3370
    %v3372 = vrot.slane %v1818, %v3371
    %v3373 = vlaneseq
    %v3374 = vshrl.u32 %v3373, 7
    %v3375 = vsub.s32 0, %v3374
    %v3376 = vrot.slane %v1820, %v3375
    %v3377 = vlaneseq
    %v3378 = vshrl.u32 %v3377, 7
    %v3379 = vsub.s32 1, %v3378
    %v3380 = vrot.slane %v1820, %v3379
    %v3381 = vlaneseq
    %v3382 = vshrl.u32 %v3381, 7
    %v3383 = vsub.s32 2, %v3382
    %v3384 = vrot.slane %v1820, %v3383
    %v3385 = vlaneseq
    %v3386 = vshrl.u32 %v3385, 7
    %v3387 = vsub.s32 3, %v3386
    %v3388 = vrot.slane %v1820, %v3387
    %v3389 = vlaneseq
    %v3390 = vshrl.u32 %v3389, 7
    %v3391 = vsub.s32 4, %v3390
    %v3392 = vrot.slane %v1820, %v3391
    %v3393 = vlaneseq
    %v3394 = vshrl.u32 %v3393, 7
    %v3395 = vsub.s32 5, %v3394
    %v3396 = vrot.slane %v1820, %v3395
    %v3397 = vlaneseq
    %v3398 = vshrl.u32 %v3397, 7
    %v3399 = vsub.s32 6, %v3398
    %v3400 = vrot.slane %v1820, %v3399
    %v3401 = vlaneseq
    %v3402 = vshrl.u32 %v3401, 7
    %v3403 = vsub.s32 7, %v3402
    %v3404 = vrot.slane %v1820, %v3403
    %v3405 = vcombine.low %v1872, %v1876
    %v3406 = vcombine.low %v1880, %v1884
    %v3407 = vcombine.low %v1888, %v1892
    %v3408 = vcombine.low %v1896, %v1900
    %v3410 = vunpack.c.l.s4 1966171168
    %v3411 = vunpack.c.0.s8 %v3410
    %v3412 = vlaneseq
    %v3413 = vshrl.u32 %v3412, 7
    %v3414 = vsub.s32 %v3411, %v3413
    %v3415 = vrot.slane %v3405, %v3414
    %v3417 = vunpack.c.l.s4 1966171168
    %v3418 = vunpack.c.0.s8 %v3417
    %v3419 = vlaneseq
    %v3420 = vshrl.u32 %v3419, 7
    %v3421 = vsub.s32 %v3418, %v3420
    %v3422 = vrot.slane %v3406, %v3421
    %v3424 = vunpack.c.l.s4 1966171168
    %v3425 = vunpack.c.0.s8 %v3424
    %v3426 = vlaneseq
    %v3427 = vshrl.u32 %v3426, 7
    %v3428 = vsub.s32 %v3425, %v3427
    %v3429 = vrot.slane %v3407, %v3428
    %v3431 = vunpack.c.l.s4 1966171168
    %v3432 = vunpack.c.0.s8 %v3431
    %v3433 = vlaneseq
    %v3434 = vshrl.u32 %v3433, 7
    %v3435 = vsub.s32 %v3432, %v3434
    %v3436 = vrot.slane %v3408, %v3435
    %v3437 = vcombine.low %v3415, %v3422
    %v3438 = vcombine.low %v3429, %v3436
    %v3440 = vunpack.c.l.s4 1966171168
    %v3441 = vunpack.c.0.s8 %v3440
    %v3442 = vlaneseq
    %v3443 = vshrl.u32 %v3442, 7
    %v3444 = vsub.s32 %v3441, %v3443
    %v3445 = vrot.slane %v3437, %v3444
    %v3447 = vunpack.c.l.s4 1966171168
    %v3448 = vunpack.c.0.s8 %v3447
    %v3449 = vlaneseq
    %v3450 = vshrl.u32 %v3449, 7
    %v3451 = vsub.s32 %v3448, %v3450
    %v3452 = vrot.slane %v3438, %v3451
    %v3453 = vcombine.low %v3445, %v3452
    %v3454 = vcombine.low %v1904, %v1908
    %v3455 = vcombine.low %v1912, %v1916
    %v3456 = vcombine.low %v1920, %v1924
    %v3457 = vcombine.low %v1928, %v1932
    %v3459 = vunpack.c.l.s4 1966171168
    %v3460 = vunpack.c.0.s8 %v3459
    %v3461 = vlaneseq
    %v3462 = vshrl.u32 %v3461, 7
    %v3463 = vsub.s32 %v3460, %v3462
    %v3464 = vrot.slane %v3454, %v3463
    %v3466 = vunpack.c.l.s4 1966171168
    %v3467 = vunpack.c.0.s8 %v3466
    %v3468 = vlaneseq
    %v3469 = vshrl.u32 %v3468, 7
    %v3470 = vsub.s32 %v3467, %v3469
    %v3471 = vrot.slane %v3455, %v3470
    %v3473 = vunpack.c.l.s4 1966171168
    %v3474 = vunpack.c.0.s8 %v3473
    %v3475 = vlaneseq
    %v3476 = vshrl.u32 %v3475, 7
    %v3477 = vsub.s32 %v3474, %v3476
    %v3478 = vrot.slane %v3456, %v3477
    %v3480 = vunpack.c.l.s4 1966171168
    %v3481 = vunpack.c.0.s8 %v3480
    %v3482 = vlaneseq
    %v3483 = vshrl.u32 %v3482, 7
    %v3484 = vsub.s32 %v3481, %v3483
    %v3485 = vrot.slane %v3457, %v3484
    %v3486 = vcombine.low %v3464, %v3471
    %v3487 = vcombine.low %v3478, %v3485
    %v3489 = vunpack.c.l.s4 1966171168
    %v3490 = vunpack.c.0.s8 %v3489
    %v3491 = vlaneseq
    %v3492 = vshrl.u32 %v3491, 7
    %v3493 = vsub.s32 %v3490, %v3492
    %v3494 = vrot.slane %v3486, %v3493
    %v3496 = vunpack.c.l.s4 1966171168
    %v3497 = vunpack.c.0.s8 %v3496
    %v3498 = vlaneseq
    %v3499 = vshrl.u32 %v3498, 7
    %v3500 = vsub.s32 %v3497, %v3499
    %v3501 = vrot.slane %v3487, %v3500
    %v3502 = vcombine.low %v3494, %v3501
    %v3503 = vcombine.low %v1936, %v1940
    %v3504 = vcombine.low %v1944, %v1948
    %v3505 = vcombine.low %v1952, %v1956
    %v3506 = vcombine.low %v1960, %v1964
    %v3508 = vunpack.c.l.s4 1966171168
    %v3509 = vunpack.c.0.s8 %v3508
    %v3510 = vlaneseq
    %v3511 = vshrl.u32 %v3510, 7
    %v3512 = vsub.s32 %v3509, %v3511
    %v3513 = vrot.slane %v3503, %v3512
    %v3515 = vunpack.c.l.s4 1966171168
    %v3516 = vunpack.c.0.s8 %v3515
    %v3517 = vlaneseq
    %v3518 = vshrl.u32 %v3517, 7
    %v3519 = vsub.s32 %v3516, %v3518
    %v3520 = vrot.slane %v3504, %v3519
    %v3522 = vunpack.c.l.s4 1966171168
    %v3523 = vunpack.c.0.s8 %v3522
    %v3524 = vlaneseq
    %v3525 = vshrl.u32 %v3524, 7
    %v3526 = vsub.s32 %v3523, %v3525
    %v3527 = vrot.slane %v3505, %v3526
    %v3529 = vunpack.c.l.s4 1966171168
    %v3530 = vunpack.c.0.s8 %v3529
    %v3531 = vlaneseq
    %v3532 = vshrl.u32 %v3531, 7
    %v3533 = vsub.s32 %v3530, %v3532
    %v3534 = vrot.slane %v3506, %v3533
    %v3535 = vcombine.low %v3513, %v3520
    %v3536 = vcombine.low %v3527, %v3534
    %v3538 = vunpack.c.l.s4 1966171168
    %v3539 = vunpack.c.0.s8 %v3538
    %v3540 = vlaneseq
    %v3541 = vshrl.u32 %v3540, 7
    %v3542 = vsub.s32 %v3539, %v3541
    %v3543 = vrot.slane %v3535, %v3542
    %v3545 = vunpack.c.l.s4 1966171168
    %v3546 = vunpack.c.0.s8 %v3545
    %v3547 = vlaneseq
    %v3548 = vshrl.u32 %v3547, 7
    %v3549 = vsub.s32 %v3546, %v3548
    %v3550 = vrot.slane %v3536, %v3549
    %v3551 = vcombine.low %v3543, %v3550
    %v3552 = vcombine.low %v1968, %v1972
    %v3553 = vcombine.low %v1976, %v1980
    %v3554 = vcombine.low %v1984, %v1988
    %v3555 = vcombine.low %v1992, %v1996
    %v3557 = vunpack.c.l.s4 1966171168
    %v3558 = vunpack.c.0.s8 %v3557
    %v3559 = vlaneseq
    %v3560 = vshrl.u32 %v3559, 7
    %v3561 = vsub.s32 %v3558, %v3560
    %v3562 = vrot.slane %v3552, %v3561
    %v3564 = vunpack.c.l.s4 1966171168
    %v3565 = vunpack.c.0.s8 %v3564
    %v3566 = vlaneseq
    %v3567 = vshrl.u32 %v3566, 7
    %v3568 = vsub.s32 %v3565, %v3567
    %v3569 = vrot.slane %v3553, %v3568
    %v3571 = vunpack.c.l.s4 1966171168
    %v3572 = vunpack.c.0.s8 %v3571
    %v3573 = vlaneseq
    %v3574 = vshrl.u32 %v3573, 7
    %v3575 = vsub.s32 %v3572, %v3574
    %v3576 = vrot.slane %v3554, %v3575
    %v3578 = vunpack.c.l.s4 1966171168
    %v3579 = vunpack.c.0.s8 %v3578
    %v3580 = vlaneseq
    %v3581 = vshrl.u32 %v3580, 7
    %v3582 = vsub.s32 %v3579, %v3581
    %v3583 = vrot.slane %v3555, %v3582
    %v3584 = vcombine.low %v3562, %v3569
    %v3585 = vcombine.low %v3576, %v3583
    %v3587 = vunpack.c.l.s4 1966171168
    %v3588 = vunpack.c.0.s8 %v3587
    %v3589 = vlaneseq
    %v3590 = vshrl.u32 %v3589, 7
    %v3591 = vsub.s32 %v3588, %v3590
    %v3592 = vrot.slane %v3584, %v3591
    %v3594 = vunpack.c.l.s4 1966171168
    %v3595 = vunpack.c.0.s8 %v3594
    %v3596 = vlaneseq
    %v3597 = vshrl.u32 %v3596, 7
    %v3598 = vsub.s32 %v3595, %v3597
    %v3599 = vrot.slane %v3585, %v3598
    %v3600 = vcombine.low %v3592, %v3599
    %v3601 = vcombine.low %v2000, %v2004
    %v3602 = vcombine.low %v2008, %v2012
    %v3603 = vcombine.low %v2016, %v2020
    %v3604 = vcombine.low %v2024, %v2028
    %v3606 = vunpack.c.l.s4 1966171168
    %v3607 = vunpack.c.0.s8 %v3606
    %v3608 = vlaneseq
    %v3609 = vshrl.u32 %v3608, 7
    %v3610 = vsub.s32 %v3607, %v3609
    %v3611 = vrot.slane %v3601, %v3610
    %v3613 = vunpack.c.l.s4 1966171168
    %v3614 = vunpack.c.0.s8 %v3613
    %v3615 = vlaneseq
    %v3616 = vshrl.u32 %v3615, 7
    %v3617 = vsub.s32 %v3614, %v3616
    %v3618 = vrot.slane %v3602, %v3617
    %v3620 = vunpack.c.l.s4 1966171168
    %v3621 = vunpack.c.0.s8 %v3620
    %v3622 = vlaneseq
    %v3623 = vshrl.u32 %v3622, 7
    %v3624 = vsub.s32 %v3621, %v3623
    %v3625 = vrot.slane %v3603, %v3624
    %v3627 = vunpack.c.l.s4 1966171168
    %v3628 = vunpack.c.0.s8 %v3627
    %v3629 = vlaneseq
    %v3630 = vshrl.u32 %v3629, 7
    %v3631 = vsub.s32 %v3628, %v3630
    %v3632 = vrot.slane %v3604, %v3631
    %v3633 = vcombine.low %v3611, %v3618
    %v3634 = vcombine.low %v3625, %v3632
    %v3636 = vunpack.c.l.s4 1966171168
    %v3637 = vunpack.c.0.s8 %v3636
    %v3638 = vlaneseq
    %v3639 = vshrl.u32 %v3638, 7
    %v3640 = vsub.s32 %v3637, %v3639
    %v3641 = vrot.slane %v3633, %v3640
    %v3643 = vunpack.c.l.s4 1966171168
    %v3644 = vunpack.c.0.s8 %v3643
    %v3645 = vlaneseq
    %v3646 = vshrl.u32 %v3645, 7
    %v3647 = vsub.s32 %v3644, %v3646
    %v3648 = vrot.slane %v3634, %v3647
    %v3649 = vcombine.low %v3641, %v3648
    %v3650 = vcombine.low %v2032, %v2036
    %v3651 = vcombine.low %v2040, %v2044
    %v3652 = vcombine.low %v2048, %v2052
    %v3653 = vcombine.low %v2056, %v2060
    %v3655 = vunpack.c.l.s4 1966171168
    %v3656 = vunpack.c.0.s8 %v3655
    %v3657 = vlaneseq
    %v3658 = vshrl.u32 %v3657, 7
    %v3659 = vsub.s32 %v3656, %v3658
    %v3660 = vrot.slane %v3650, %v3659
    %v3662 = vunpack.c.l.s4 1966171168
    %v3663 = vunpack.c.0.s8 %v3662
    %v3664 = vlaneseq
    %v3665 = vshrl.u32 %v3664, 7
    %v3666 = vsub.s32 %v3663, %v3665
    %v3667 = vrot.slane %v3651, %v3666
    %v3669 = vunpack.c.l.s4 1966171168
    %v3670 = vunpack.c.0.s8 %v3669
    %v3671 = vlaneseq
    %v3672 = vshrl.u32 %v3671, 7
    %v3673 = vsub.s32 %v3670, %v3672
    %v3674 = vrot.slane %v3652, %v3673
    %v3676 = vunpack.c.l.s4 1966171168
    %v3677 = vunpack.c.0.s8 %v3676
    %v3678 = vlaneseq
    %v3679 = vshrl.u32 %v3678, 7
    %v3680 = vsub.s32 %v3677, %v3679
    %v3681 = vrot.slane %v3653, %v3680
    %v3682 = vcombine.low %v3660, %v3667
    %v3683 = vcombine.low %v3674, %v3681
    %v3685 = vunpack.c.l.s4 1966171168
    %v3686 = vunpack.c.0.s8 %v3685
    %v3687 = vlaneseq
    %v3688 = vshrl.u32 %v3687, 7
    %v3689 = vsub.s32 %v3686, %v3688
    %v3690 = vrot.slane %v3682, %v3689
    %v3692 = vunpack.c.l.s4 1966171168
    %v3693 = vunpack.c.0.s8 %v3692
    %v3694 = vlaneseq
    %v3695 = vshrl.u32 %v3694, 7
    %v3696 = vsub.s32 %v3693, %v3695
    %v3697 = vrot.slane %v3683, %v3696
    %v3698 = vcombine.low %v3690, %v3697
    %v3699 = vcombine.low %v2064, %v2068
    %v3700 = vcombine.low %v2072, %v2076
    %v3701 = vcombine.low %v2080, %v2084
    %v3702 = vcombine.low %v2088, %v2092
    %v3704 = vunpack.c.l.s4 1966171168
    %v3705 = vunpack.c.0.s8 %v3704
    %v3706 = vlaneseq
    %v3707 = vshrl.u32 %v3706, 7
    %v3708 = vsub.s32 %v3705, %v3707
    %v3709 = vrot.slane %v3699, %v3708
    %v3711 = vunpack.c.l.s4 1966171168
    %v3712 = vunpack.c.0.s8 %v3711
    %v3713 = vlaneseq
    %v3714 = vshrl.u32 %v3713, 7
    %v3715 = vsub.s32 %v3712, %v3714
    %v3716 = vrot.slane %v3700, %v3715
    %v3718 = vunpack.c.l.s4 1966171168
    %v3719 = vunpack.c.0.s8 %v3718
    %v3720 = vlaneseq
    %v3721 = vshrl.u32 %v3720, 7
    %v3722 = vsub.s32 %v3719, %v3721
    %v3723 = vrot.slane %v3701, %v3722
    %v3725 = vunpack.c.l.s4 1966171168
    %v3726 = vunpack.c.0.s8 %v3725
    %v3727 = vlaneseq
    %v3728 = vshrl.u32 %v3727, 7
    %v3729 = vsub.s32 %v3726, %v3728
    %v3730 = vrot.slane %v3702, %v3729
    %v3731 = vcombine.low %v3709, %v3716
    %v3732 = vcombine.low %v3723, %v3730
    %v3734 = vunpack.c.l.s4 1966171168
    %v3735 = vunpack.c.0.s8 %v3734
    %v3736 = vlaneseq
    %v3737 = vshrl.u32 %v3736, 7
    %v3738 = vsub.s32 %v3735, %v3737
    %v3739 = vrot.slane %v3731, %v3738
    %v3741 = vunpack.c.l.s4 1966171168
    %v3742 = vunpack.c.0.s8 %v3741
    %v3743 = vlaneseq
    %v3744 = vshrl.u32 %v3743, 7
    %v3745 = vsub.s32 %v3742, %v3744
    %v3746 = vrot.slane %v3732, %v3745
    %v3747 = vcombine.low %v3739, %v3746
    %v3748 = vcombine.low %v2096, %v2100
    %v3749 = vcombine.low %v2104, %v2108
    %v3750 = vcombine.low %v2112, %v2116
    %v3751 = vcombine.low %v2120, %v2124
    %v3753 = vunpack.c.l.s4 1966171168
    %v3754 = vunpack.c.0.s8 %v3753
    %v3755 = vlaneseq
    %v3756 = vshrl.u32 %v3755, 7
    %v3757 = vsub.s32 %v3754, %v3756
    %v3758 = vrot.slane %v3748, %v3757
    %v3760 = vunpack.c.l.s4 1966171168
    %v3761 = vunpack.c.0.s8 %v3760
    %v3762 = vlaneseq
    %v3763 = vshrl.u32 %v3762, 7
    %v3764 = vsub.s32 %v3761, %v3763
    %v3765 = vrot.slane %v3749, %v3764
    %v3767 = vunpack.c.l.s4 1966171168
    %v3768 = vunpack.c.0.s8 %v3767
    %v3769 = vlaneseq
    %v3770 = vshrl.u32 %v3769, 7
    %v3771 = vsub.s32 %v3768, %v3770
    %v3772 = vrot.slane %v3750, %v3771
    %v3774 = vunpack.c.l.s4 1966171168
    %v3775 = vunpack.c.0.s8 %v3774
    %v3776 = vlaneseq
    %v3777 = vshrl.u32 %v3776, 7
    %v3778 = vsub.s32 %v3775, %v3777
    %v3779 = vrot.slane %v3751, %v3778
    %v3780 = vcombine.low %v3758, %v3765
    %v3781 = vcombine.low %v3772, %v3779
    %v3783 = vunpack.c.l.s4 1966171168
    %v3784 = vunpack.c.0.s8 %v3783
    %v3785 = vlaneseq
    %v3786 = vshrl.u32 %v3785, 7
    %v3787 = vsub.s32 %v3784, %v3786
    %v3788 = vrot.slane %v3780, %v3787
    %v3790 = vunpack.c.l.s4 1966171168
    %v3791 = vunpack.c.0.s8 %v3790
    %v3792 = vlaneseq
    %v3793 = vshrl.u32 %v3792, 7
    %v3794 = vsub.s32 %v3791, %v3793
    %v3795 = vrot.slane %v3781, %v3794
    %v3796 = vcombine.low %v3788, %v3795
    %v3797 = vcombine.low %v2128, %v2132
    %v3798 = vcombine.low %v2136, %v2140
    %v3799 = vcombine.low %v2144, %v2148
    %v3800 = vcombine.low %v2152, %v2156
    %v3802 = vunpack.c.l.s4 1966171168
    %v3803 = vunpack.c.0.s8 %v3802
    %v3804 = vlaneseq
    %v3805 = vshrl.u32 %v3804, 7
    %v3806 = vsub.s32 %v3803, %v3805
    %v3807 = vrot.slane %v3797, %v3806
    %v3809 = vunpack.c.l.s4 1966171168
    %v3810 = vunpack.c.0.s8 %v3809
    %v3811 = vlaneseq
    %v3812 = vshrl.u32 %v3811, 7
    %v3813 = vsub.s32 %v3810, %v3812
    %v3814 = vrot.slane %v3798, %v3813
    %v3816 = vunpack.c.l.s4 1966171168
    %v3817 = vunpack.c.0.s8 %v3816
    %v3818 = vlaneseq
    %v3819 = vshrl.u32 %v3818, 7
    %v3820 = vsub.s32 %v3817, %v3819
    %v3821 = vrot.slane %v3799, %v3820
    %v3823 = vunpack.c.l.s4 1966171168
    %v3824 = vunpack.c.0.s8 %v3823
    %v3825 = vlaneseq
    %v3826 = vshrl.u32 %v3825, 7
    %v3827 = vsub.s32 %v3824, %v3826
    %v3828 = vrot.slane %v3800, %v3827
    %v3829 = vcombine.low %v3807, %v3814
    %v3830 = vcombine.low %v3821, %v3828
    %v3832 = vunpack.c.l.s4 1966171168
    %v3833 = vunpack.c.0.s8 %v3832
    %v3834 = vlaneseq
    %v3835 = vshrl.u32 %v3834, 7
    %v3836 = vsub.s32 %v3833, %v3835
    %v3837 = vrot.slane %v3829, %v3836
    %v3839 = vunpack.c.l.s4 1966171168
    %v3840 = vunpack.c.0.s8 %v3839
    %v3841 = vlaneseq
    %v3842 = vshrl.u32 %v3841, 7
    %v3843 = vsub.s32 %v3840, %v3842
    %v3844 = vrot.slane %v3830, %v3843
    %v3845 = vcombine.low %v3837, %v3844
    %v3846 = vcombine.low %v2160, %v2164
    %v3847 = vcombine.low %v2168, %v2172
    %v3848 = vcombine.low %v2176, %v2180
    %v3849 = vcombine.low %v2184, %v2188
    %v3851 = vunpack.c.l.s4 1966171168
    %v3852 = vunpack.c.0.s8 %v3851
    %v3853 = vlaneseq
    %v3854 = vshrl.u32 %v3853, 7
    %v3855 = vsub.s32 %v3852, %v3854
    %v3856 = vrot.slane %v3846, %v3855
    %v3858 = vunpack.c.l.s4 1966171168
    %v3859 = vunpack.c.0.s8 %v3858
    %v3860 = vlaneseq
    %v3861 = vshrl.u32 %v3860, 7
    %v3862 = vsub.s32 %v3859, %v3861
    %v3863 = vrot.slane %v3847, %v3862
    %v3865 = vunpack.c.l.s4 1966171168
    %v3866 = vunpack.c.0.s8 %v3865
    %v3867 = vlaneseq
    %v3868 = vshrl.u32 %v3867, 7
    %v3869 = vsub.s32 %v3866, %v3868
    %v3870 = vrot.slane %v3848, %v3869
    %v3872 = vunpack.c.l.s4 1966171168
    %v3873 = vunpack.c.0.s8 %v3872
    %v3874 = vlaneseq
    %v3875 = vshrl.u32 %v3874, 7
    %v3876 = vsub.s32 %v3873, %v3875
    %v3877 = vrot.slane %v3849, %v3876
    %v3878 = vcombine.low %v3856, %v3863
    %v3879 = vcombine.low %v3870, %v3877
    %v3881 = vunpack.c.l.s4 1966171168
    %v3882 = vunpack.c.0.s8 %v3881
    %v3883 = vlaneseq
    %v3884 = vshrl.u32 %v3883, 7
    %v3885 = vsub.s32 %v3882, %v3884
    %v3886 = vrot.slane %v3878, %v3885
    %v3888 = vunpack.c.l.s4 1966171168
    %v3889 = vunpack.c.0.s8 %v3888
    %v3890 = vlaneseq
    %v3891 = vshrl.u32 %v3890, 7
    %v3892 = vsub.s32 %v3889, %v3891
    %v3893 = vrot.slane %v3879, %v3892
    %v3894 = vcombine.low %v3886, %v3893
    %v3895 = vcombine.low %v2192, %v2196
    %v3896 = vcombine.low %v2200, %v2204
    %v3897 = vcombine.low %v2208, %v2212
    %v3898 = vcombine.low %v2216, %v2220
    %v3900 = vunpack.c.l.s4 1966171168
    %v3901 = vunpack.c.0.s8 %v3900
    %v3902 = vlaneseq
    %v3903 = vshrl.u32 %v3902, 7
    %v3904 = vsub.s32 %v3901, %v3903
    %v3905 = vrot.slane %v3895, %v3904
    %v3907 = vunpack.c.l.s4 1966171168
    %v3908 = vunpack.c.0.s8 %v3907
    %v3909 = vlaneseq
    %v3910 = vshrl.u32 %v3909, 7
    %v3911 = vsub.s32 %v3908, %v3910
    %v3912 = vrot.slane %v3896, %v3911
    %v3914 = vunpack.c.l.s4 1966171168
    %v3915 = vunpack.c.0.s8 %v3914
    %v3916 = vlaneseq
    %v3917 = vshrl.u32 %v3916, 7
    %v3918 = vsub.s32 %v3915, %v3917
    %v3919 = vrot.slane %v3897, %v3918
    %v3921 = vunpack.c.l.s4 1966171168
    %v3922 = vunpack.c.0.s8 %v3921
    %v3923 = vlaneseq
    %v3924 = vshrl.u32 %v3923, 7
    %v3925 = vsub.s32 %v3922, %v3924
    %v3926 = vrot.slane %v3898, %v3925
    %v3927 = vcombine.low %v3905, %v3912
    %v3928 = vcombine.low %v3919, %v3926
    %v3930 = vunpack.c.l.s4 1966171168
    %v3931 = vunpack.c.0.s8 %v3930
    %v3932 = vlaneseq
    %v3933 = vshrl.u32 %v3932, 7
    %v3934 = vsub.s32 %v3931, %v3933
    %v3935 = vrot.slane %v3927, %v3934
    %v3937 = vunpack.c.l.s4 1966171168
    %v3938 = vunpack.c.0.s8 %v3937
    %v3939 = vlaneseq
    %v3940 = vshrl.u32 %v3939, 7
    %v3941 = vsub.s32 %v3938, %v3940
    %v3942 = vrot.slane %v3928, %v3941
    %v3943 = vcombine.low %v3935, %v3942
    %v3944 = vcombine.low %v2224, %v2228
    %v3945 = vcombine.low %v2232, %v2236
    %v3946 = vcombine.low %v2240, %v2244
    %v3947 = vcombine.low %v2248, %v2252
    %v3949 = vunpack.c.l.s4 1966171168
    %v3950 = vunpack.c.0.s8 %v3949
    %v3951 = vlaneseq
    %v3952 = vshrl.u32 %v3951, 7
    %v3953 = vsub.s32 %v3950, %v3952
    %v3954 = vrot.slane %v3944, %v3953
    %v3956 = vunpack.c.l.s4 1966171168
    %v3957 = vunpack.c.0.s8 %v3956
    %v3958 = vlaneseq
    %v3959 = vshrl.u32 %v3958, 7
    %v3960 = vsub.s32 %v3957, %v3959
    %v3961 = vrot.slane %v3945, %v3960
    %v3963 = vunpack.c.l.s4 1966171168
    %v3964 = vunpack.c.0.s8 %v3963
    %v3965 = vlaneseq
    %v3966 = vshrl.u32 %v3965, 7
    %v3967 = vsub.s32 %v3964, %v3966
    %v3968 = vrot.slane %v3946, %v3967
    %v3970 = vunpack.c.l.s4 1966171168
    %v3971 = vunpack.c.0.s8 %v3970
    %v3972 = vlaneseq
    %v3973 = vshrl.u32 %v3972, 7
    %v3974 = vsub.s32 %v3971, %v3973
    %v3975 = vrot.slane %v3947, %v3974
    %v3976 = vcombine.low %v3954, %v3961
    %v3977 = vcombine.low %v3968, %v3975
    %v3979 = vunpack.c.l.s4 1966171168
    %v3980 = vunpack.c.0.s8 %v3979
    %v3981 = vlaneseq
    %v3982 = vshrl.u32 %v3981, 7
    %v3983 = vsub.s32 %v3980, %v3982
    %v3984 = vrot.slane %v3976, %v3983
    %v3986 = vunpack.c.l.s4 1966171168
    %v3987 = vunpack.c.0.s8 %v3986
    %v3988 = vlaneseq
    %v3989 = vshrl.u32 %v3988, 7
    %v3990 = vsub.s32 %v3987, %v3989
    %v3991 = vrot.slane %v3977, %v3990
    %v3992 = vcombine.low %v3984, %v3991
    %v3993 = vcombine.low %v2256, %v2260
    %v3994 = vcombine.low %v2264, %v2268
    %v3995 = vcombine.low %v2272, %v2276
    %v3996 = vcombine.low %v2280, %v2284
    %v3998 = vunpack.c.l.s4 1966171168
    %v3999 = vunpack.c.0.s8 %v3998
    %v4000 = vlaneseq
    %v4001 = vshrl.u32 %v4000, 7
    %v4002 = vsub.s32 %v3999, %v4001
    %v4003 = vrot.slane %v3993, %v4002
    %v4005 = vunpack.c.l.s4 1966171168
    %v4006 = vunpack.c.0.s8 %v4005
    %v4007 = vlaneseq
    %v4008 = vshrl.u32 %v4007, 7
    %v4009 = vsub.s32 %v4006, %v4008
    %v4010 = vrot.slane %v3994, %v4009
    %v4012 = vunpack.c.l.s4 1966171168
    %v4013 = vunpack.c.0.s8 %v4012
    %v4014 = vlaneseq
    %v4015 = vshrl.u32 %v4014, 7
    %v4016 = vsub.s32 %v4013, %v4015
    %v4017 = vrot.slane %v3995, %v4016
    %v4019 = vunpack.c.l.s4 1966171168
    %v4020 = vunpack.c.0.s8 %v4019
    %v4021 = vlaneseq
    %v4022 = vshrl.u32 %v4021, 7
    %v4023 = vsub.s32 %v4020, %v4022
    %v4024 = vrot.slane %v3996, %v4023
    %v4025 = vcombine.low %v4003, %v4010
    %v4026 = vcombine.low %v4017, %v4024
    %v4028 = vunpack.c.l.s4 1966171168
    %v4029 = vunpack.c.0.s8 %v4028
    %v4030 = vlaneseq
    %v4031 = vshrl.u32 %v4030, 7
    %v4032 = vsub.s32 %v4029, %v4031
    %v4033 = vrot.slane %v4025, %v4032
    %v4035 = vunpack.c.l.s4 1966171168
    %v4036 = vunpack.c.0.s8 %v4035
    %v4037 = vlaneseq
    %v4038 = vshrl.u32 %v4037, 7
    %v4039 = vsub.s32 %v4036, %v4038
    %v4040 = vrot.slane %v4026, %v4039
    %v4041 = vcombine.low %v4033, %v4040
    %v4042 = vcombine.low %v2288, %v2292
    %v4043 = vcombine.low %v2296, %v2300
    %v4044 = vcombine.low %v2304, %v2308
    %v4045 = vcombine.low %v2312, %v2316
    %v4047 = vunpack.c.l.s4 1966171168
    %v4048 = vunpack.c.0.s8 %v4047
    %v4049 = vlaneseq
    %v4050 = vshrl.u32 %v4049, 7
    %v4051 = vsub.s32 %v4048, %v4050
    %v4052 = vrot.slane %v4042, %v4051
    %v4054 = vunpack.c.l.s4 1966171168
    %v4055 = vunpack.c.0.s8 %v4054
    %v4056 = vlaneseq
    %v4057 = vshrl.u32 %v4056, 7
    %v4058 = vsub.s32 %v4055, %v4057
    %v4059 = vrot.slane %v4043, %v4058
    %v4061 = vunpack.c.l.s4 1966171168
    %v4062 = vunpack.c.0.s8 %v4061
    %v4063 = vlaneseq
    %v4064 = vshrl.u32 %v4063, 7
    %v4065 = vsub.s32 %v4062, %v4064
    %v4066 = vrot.slane %v4044, %v4065
    %v4068 = vunpack.c.l.s4 1966171168
    %v4069 = vunpack.c.0.s8 %v4068
    %v4070 = vlaneseq
    %v4071 = vshrl.u32 %v4070, 7
    %v4072 = vsub.s32 %v4069, %v4071
    %v4073 = vrot.slane %v4045, %v4072
    %v4074 = vcombine.low %v4052, %v4059
    %v4075 = vcombine.low %v4066, %v4073
    %v4077 = vunpack.c.l.s4 1966171168
    %v4078 = vunpack.c.0.s8 %v4077
    %v4079 = vlaneseq
    %v4080 = vshrl.u32 %v4079, 7
    %v4081 = vsub.s32 %v4078, %v4080
    %v4082 = vrot.slane %v4074, %v4081
    %v4084 = vunpack.c.l.s4 1966171168
    %v4085 = vunpack.c.0.s8 %v4084
    %v4086 = vlaneseq
    %v4087 = vshrl.u32 %v4086, 7
    %v4088 = vsub.s32 %v4085, %v4087
    %v4089 = vrot.slane %v4075, %v4088
    %v4090 = vcombine.low %v4082, %v4089
    %v4091 = vcombine.low %v2320, %v2324
    %v4092 = vcombine.low %v2328, %v2332
    %v4093 = vcombine.low %v2336, %v2340
    %v4094 = vcombine.low %v2344, %v2348
    %v4096 = vunpack.c.l.s4 1966171168
    %v4097 = vunpack.c.0.s8 %v4096
    %v4098 = vlaneseq
    %v4099 = vshrl.u32 %v4098, 7
    %v4100 = vsub.s32 %v4097, %v4099
    %v4101 = vrot.slane %v4091, %v4100
    %v4103 = vunpack.c.l.s4 1966171168
    %v4104 = vunpack.c.0.s8 %v4103
    %v4105 = vlaneseq
    %v4106 = vshrl.u32 %v4105, 7
    %v4107 = vsub.s32 %v4104, %v4106
    %v4108 = vrot.slane %v4092, %v4107
    %v4110 = vunpack.c.l.s4 1966171168
    %v4111 = vunpack.c.0.s8 %v4110
    %v4112 = vlaneseq
    %v4113 = vshrl.u32 %v4112, 7
    %v4114 = vsub.s32 %v4111, %v4113
    %v4115 = vrot.slane %v4093, %v4114
    %v4117 = vunpack.c.l.s4 1966171168
    %v4118 = vunpack.c.0.s8 %v4117
    %v4119 = vlaneseq
    %v4120 = vshrl.u32 %v4119, 7
    %v4121 = vsub.s32 %v4118, %v4120
    %v4122 = vrot.slane %v4094, %v4121
    %v4123 = vcombine.low %v4101, %v4108
    %v4124 = vcombine.low %v4115, %v4122
    %v4126 = vunpack.c.l.s4 1966171168
    %v4127 = vunpack.c.0.s8 %v4126
    %v4128 = vlaneseq
    %v4129 = vshrl.u32 %v4128, 7
    %v4130 = vsub.s32 %v4127, %v4129
    %v4131 = vrot.slane %v4123, %v4130
    %v4133 = vunpack.c.l.s4 1966171168
    %v4134 = vunpack.c.0.s8 %v4133
    %v4135 = vlaneseq
    %v4136 = vshrl.u32 %v4135, 7
    %v4137 = vsub.s32 %v4134, %v4136
    %v4138 = vrot.slane %v4124, %v4137
    %v4139 = vcombine.low %v4131, %v4138
    %v4140 = vcombine.low %v2352, %v2356
    %v4141 = vcombine.low %v2360, %v2364
    %v4142 = vcombine.low %v2368, %v2372
    %v4143 = vcombine.low %v2376, %v2380
    %v4145 = vunpack.c.l.s4 1966171168
    %v4146 = vunpack.c.0.s8 %v4145
    %v4147 = vlaneseq
    %v4148 = vshrl.u32 %v4147, 7
    %v4149 = vsub.s32 %v4146, %v4148
    %v4150 = vrot.slane %v4140, %v4149
    %v4152 = vunpack.c.l.s4 1966171168
    %v4153 = vunpack.c.0.s8 %v4152
    %v4154 = vlaneseq
    %v4155 = vshrl.u32 %v4154, 7
    %v4156 = vsub.s32 %v4153, %v4155
    %v4157 = vrot.slane %v4141, %v4156
    %v4159 = vunpack.c.l.s4 1966171168
    %v4160 = vunpack.c.0.s8 %v4159
    %v4161 = vlaneseq
    %v4162 = vshrl.u32 %v4161, 7
    %v4163 = vsub.s32 %v4160, %v4162
    %v4164 = vrot.slane %v4142, %v4163
    %v4166 = vunpack.c.l.s4 1966171168
    %v4167 = vunpack.c.0.s8 %v4166
    %v4168 = vlaneseq
    %v4169 = vshrl.u32 %v4168, 7
    %v4170 = vsub.s32 %v4167, %v4169
    %v4171 = vrot.slane %v4143, %v4170
    %v4172 = vcombine.low %v4150, %v4157
    %v4173 = vcombine.low %v4164, %v4171
    %v4175 = vunpack.c.l.s4 1966171168
    %v4176 = vunpack.c.0.s8 %v4175
    %v4177 = vlaneseq
    %v4178 = vshrl.u32 %v4177, 7
    %v4179 = vsub.s32 %v4176, %v4178
    %v4180 = vrot.slane %v4172, %v4179
    %v4182 = vunpack.c.l.s4 1966171168
    %v4183 = vunpack.c.0.s8 %v4182
    %v4184 = vlaneseq
    %v4185 = vshrl.u32 %v4184, 7
    %v4186 = vsub.s32 %v4183, %v4185
    %v4187 = vrot.slane %v4173, %v4186
    %v4188 = vcombine.low %v4180, %v4187
    %v4189 = vcombine.low %v2384, %v2388
    %v4190 = vcombine.low %v2392, %v2396
    %v4191 = vcombine.low %v2400, %v2404
    %v4192 = vcombine.low %v2408, %v2412
    %v4194 = vunpack.c.l.s4 1966171168
    %v4195 = vunpack.c.0.s8 %v4194
    %v4196 = vlaneseq
    %v4197 = vshrl.u32 %v4196, 7
    %v4198 = vsub.s32 %v4195, %v4197
    %v4199 = vrot.slane %v4189, %v4198
    %v4201 = vunpack.c.l.s4 1966171168
    %v4202 = vunpack.c.0.s8 %v4201
    %v4203 = vlaneseq
    %v4204 = vshrl.u32 %v4203, 7
    %v4205 = vsub.s32 %v4202, %v4204
    %v4206 = vrot.slane %v4190, %v4205
    %v4208 = vunpack.c.l.s4 1966171168
    %v4209 = vunpack.c.0.s8 %v4208
    %v4210 = vlaneseq
    %v4211 = vshrl.u32 %v4210, 7
    %v4212 = vsub.s32 %v4209, %v4211
    %v4213 = vrot.slane %v4191, %v4212
    %v4215 = vunpack.c.l.s4 1966171168
    %v4216 = vunpack.c.0.s8 %v4215
    %v4217 = vlaneseq
    %v4218 = vshrl.u32 %v4217, 7
    %v4219 = vsub.s32 %v4216, %v4218
    %v4220 = vrot.slane %v4192, %v4219
    %v4221 = vcombine.low %v4199, %v4206
    %v4222 = vcombine.low %v4213, %v4220
    %v4224 = vunpack.c.l.s4 1966171168
    %v4225 = vunpack.c.0.s8 %v4224
    %v4226 = vlaneseq
    %v4227 = vshrl.u32 %v4226, 7
    %v4228 = vsub.s32 %v4225, %v4227
    %v4229 = vrot.slane %v4221, %v4228
    %v4231 = vunpack.c.l.s4 1966171168
    %v4232 = vunpack.c.0.s8 %v4231
    %v4233 = vlaneseq
    %v4234 = vshrl.u32 %v4233, 7
    %v4235 = vsub.s32 %v4232, %v4234
    %v4236 = vrot.slane %v4222, %v4235
    %v4237 = vcombine.low %v4229, %v4236
    %v4238 = vcombine.low %v2416, %v2420
    %v4239 = vcombine.low %v2424, %v2428
    %v4240 = vcombine.low %v2432, %v2436
    %v4241 = vcombine.low %v2440, %v2444
    %v4243 = vunpack.c.l.s4 1966171168
    %v4244 = vunpack.c.0.s8 %v4243
    %v4245 = vlaneseq
    %v4246 = vshrl.u32 %v4245, 7
    %v4247 = vsub.s32 %v4244, %v4246
    %v4248 = vrot.slane %v4238, %v4247
    %v4250 = vunpack.c.l.s4 1966171168
    %v4251 = vunpack.c.0.s8 %v4250
    %v4252 = vlaneseq
    %v4253 = vshrl.u32 %v4252, 7
    %v4254 = vsub.s32 %v4251, %v4253
    %v4255 = vrot.slane %v4239, %v4254
    %v4257 = vunpack.c.l.s4 1966171168
    %v4258 = vunpack.c.0.s8 %v4257
    %v4259 = vlaneseq
    %v4260 = vshrl.u32 %v4259, 7
    %v4261 = vsub.s32 %v4258, %v4260
    %v4262 = vrot.slane %v4240, %v4261
    %v4264 = vunpack.c.l.s4 1966171168
    %v4265 = vunpack.c.0.s8 %v4264
    %v4266 = vlaneseq
    %v4267 = vshrl.u32 %v4266, 7
    %v4268 = vsub.s32 %v4265, %v4267
    %v4269 = vrot.slane %v4241, %v4268
    %v4270 = vcombine.low %v4248, %v4255
    %v4271 = vcombine.low %v4262, %v4269
    %v4273 = vunpack.c.l.s4 1966171168
    %v4274 = vunpack.c.0.s8 %v4273
    %v4275 = vlaneseq
    %v4276 = vshrl.u32 %v4275, 7
    %v4277 = vsub.s32 %v4274, %v4276
    %v4278 = vrot.slane %v4270, %v4277
    %v4280 = vunpack.c.l.s4 1966171168
    %v4281 = vunpack.c.0.s8 %v4280
    %v4282 = vlaneseq
    %v4283 = vshrl.u32 %v4282, 7
    %v4284 = vsub.s32 %v4281, %v4283
    %v4285 = vrot.slane %v4271, %v4284
    %v4286 = vcombine.low %v4278, %v4285
    %v4287 = vcombine.low %v2448, %v2452
    %v4288 = vcombine.low %v2456, %v2460
    %v4289 = vcombine.low %v2464, %v2468
    %v4290 = vcombine.low %v2472, %v2476
    %v4292 = vunpack.c.l.s4 1966171168
    %v4293 = vunpack.c.0.s8 %v4292
    %v4294 = vlaneseq
    %v4295 = vshrl.u32 %v4294, 7
    %v4296 = vsub.s32 %v4293, %v4295
    %v4297 = vrot.slane %v4287, %v4296
    %v4299 = vunpack.c.l.s4 1966171168
    %v4300 = vunpack.c.0.s8 %v4299
    %v4301 = vlaneseq
    %v4302 = vshrl.u32 %v4301, 7
    %v4303 = vsub.s32 %v4300, %v4302
    %v4304 = vrot.slane %v4288, %v4303
    %v4306 = vunpack.c.l.s4 1966171168
    %v4307 = vunpack.c.0.s8 %v4306
    %v4308 = vlaneseq
    %v4309 = vshrl.u32 %v4308, 7
    %v4310 = vsub.s32 %v4307, %v4309
    %v4311 = vrot.slane %v4289, %v4310
    %v4313 = vunpack.c.l.s4 1966171168
    %v4314 = vunpack.c.0.s8 %v4313
    %v4315 = vlaneseq
    %v4316 = vshrl.u32 %v4315, 7
    %v4317 = vsub.s32 %v4314, %v4316
    %v4318 = vrot.slane %v4290, %v4317
    %v4319 = vcombine.low %v4297, %v4304
    %v4320 = vcombine.low %v4311, %v4318
    %v4322 = vunpack.c.l.s4 1966171168
    %v4323 = vunpack.c.0.s8 %v4322
    %v4324 = vlaneseq
    %v4325 = vshrl.u32 %v4324, 7
    %v4326 = vsub.s32 %v4323, %v4325
    %v4327 = vrot.slane %v4319, %v4326
    %v4329 = vunpack.c.l.s4 1966171168
    %v4330 = vunpack.c.0.s8 %v4329
    %v4331 = vlaneseq
    %v4332 = vshrl.u32 %v4331, 7
    %v4333 = vsub.s32 %v4330, %v4332
    %v4334 = vrot.slane %v4320, %v4333
    %v4335 = vcombine.low %v4327, %v4334
    %v4336 = vcombine.low %v2480, %v2484
    %v4337 = vcombine.low %v2488, %v2492
    %v4338 = vcombine.low %v2496, %v2500
    %v4339 = vcombine.low %v2504, %v2508
    %v4341 = vunpack.c.l.s4 1966171168
    %v4342 = vunpack.c.0.s8 %v4341
    %v4343 = vlaneseq
    %v4344 = vshrl.u32 %v4343, 7
    %v4345 = vsub.s32 %v4342, %v4344
    %v4346 = vrot.slane %v4336, %v4345
    %v4348 = vunpack.c.l.s4 1966171168
    %v4349 = vunpack.c.0.s8 %v4348
    %v4350 = vlaneseq
    %v4351 = vshrl.u32 %v4350, 7
    %v4352 = vsub.s32 %v4349, %v4351
    %v4353 = vrot.slane %v4337, %v4352
    %v4355 = vunpack.c.l.s4 1966171168
    %v4356 = vunpack.c.0.s8 %v4355
    %v4357 = vlaneseq
    %v4358 = vshrl.u32 %v4357, 7
    %v4359 = vsub.s32 %v4356, %v4358
    %v4360 = vrot.slane %v4338, %v4359
    %v4362 = vunpack.c.l.s4 1966171168
    %v4363 = vunpack.c.0.s8 %v4362
    %v4364 = vlaneseq
    %v4365 = vshrl.u32 %v4364, 7
    %v4366 = vsub.s32 %v4363, %v4365
    %v4367 = vrot.slane %v4339, %v4366
    %v4368 = vcombine.low %v4346, %v4353
    %v4369 = vcombine.low %v4360, %v4367
    %v4371 = vunpack.c.l.s4 1966171168
    %v4372 = vunpack.c.0.s8 %v4371
    %v4373 = vlaneseq
    %v4374 = vshrl.u32 %v4373, 7
    %v4375 = vsub.s32 %v4372, %v4374
    %v4376 = vrot.slane %v4368, %v4375
    %v4378 = vunpack.c.l.s4 1966171168
    %v4379 = vunpack.c.0.s8 %v4378
    %v4380 = vlaneseq
    %v4381 = vshrl.u32 %v4380, 7
    %v4382 = vsub.s32 %v4379, %v4381
    %v4383 = vrot.slane %v4369, %v4382
    %v4384 = vcombine.low %v4376, %v4383
    %v4385 = vcombine.low %v2512, %v2516
    %v4386 = vcombine.low %v2520, %v2524
    %v4387 = vcombine.low %v2528, %v2532
    %v4388 = vcombine.low %v2536, %v2540
    %v4390 = vunpack.c.l.s4 1966171168
    %v4391 = vunpack.c.0.s8 %v4390
    %v4392 = vlaneseq
    %v4393 = vshrl.u32 %v4392, 7
    %v4394 = vsub.s32 %v4391, %v4393
    %v4395 = vrot.slane %v4385, %v4394
    %v4397 = vunpack.c.l.s4 1966171168
    %v4398 = vunpack.c.0.s8 %v4397
    %v4399 = vlaneseq
    %v4400 = vshrl.u32 %v4399, 7
    %v4401 = vsub.s32 %v4398, %v4400
    %v4402 = vrot.slane %v4386, %v4401
    %v4404 = vunpack.c.l.s4 1966171168
    %v4405 = vunpack.c.0.s8 %v4404
    %v4406 = vlaneseq
    %v4407 = vshrl.u32 %v4406, 7
    %v4408 = vsub.s32 %v4405, %v4407
    %v4409 = vrot.slane %v4387, %v4408
    %v4411 = vunpack.c.l.s4 1966171168
    %v4412 = vunpack.c.0.s8 %v4411
    %v4413 = vlaneseq
    %v4414 = vshrl.u32 %v4413, 7
    %v4415 = vsub.s32 %v4412, %v4414
    %v4416 = vrot.slane %v4388, %v4415
    %v4417 = vcombine.low %v4395, %v4402
    %v4418 = vcombine.low %v4409, %v4416
    %v4420 = vunpack.c.l.s4 1966171168
    %v4421 = vunpack.c.0.s8 %v4420
    %v4422 = vlaneseq
    %v4423 = vshrl.u32 %v4422, 7
    %v4424 = vsub.s32 %v4421, %v4423
    %v4425 = vrot.slane %v4417, %v4424
    %v4427 = vunpack.c.l.s4 1966171168
    %v4428 = vunpack.c.0.s8 %v4427
    %v4429 = vlaneseq
    %v4430 = vshrl.u32 %v4429, 7
    %v4431 = vsub.s32 %v4428, %v4430
    %v4432 = vrot.slane %v4418, %v4431
    %v4433 = vcombine.low %v4425, %v4432
    %v4434 = vcombine.low %v2544, %v2548
    %v4435 = vcombine.low %v2552, %v2556
    %v4436 = vcombine.low %v2560, %v2564
    %v4437 = vcombine.low %v2568, %v2572
    %v4439 = vunpack.c.l.s4 1966171168
    %v4440 = vunpack.c.0.s8 %v4439
    %v4441 = vlaneseq
    %v4442 = vshrl.u32 %v4441, 7
    %v4443 = vsub.s32 %v4440, %v4442
    %v4444 = vrot.slane %v4434, %v4443
    %v4446 = vunpack.c.l.s4 1966171168
    %v4447 = vunpack.c.0.s8 %v4446
    %v4448 = vlaneseq
    %v4449 = vshrl.u32 %v4448, 7
    %v4450 = vsub.s32 %v4447, %v4449
    %v4451 = vrot.slane %v4435, %v4450
    %v4453 = vunpack.c.l.s4 1966171168
    %v4454 = vunpack.c.0.s8 %v4453
    %v4455 = vlaneseq
    %v4456 = vshrl.u32 %v4455, 7
    %v4457 = vsub.s32 %v4454, %v4456
    %v4458 = vrot.slane %v4436, %v4457
    %v4460 = vunpack.c.l.s4 1966171168
    %v4461 = vunpack.c.0.s8 %v4460
    %v4462 = vlaneseq
    %v4463 = vshrl.u32 %v4462, 7
    %v4464 = vsub.s32 %v4461, %v4463
    %v4465 = vrot.slane %v4437, %v4464
    %v4466 = vcombine.low %v4444, %v4451
    %v4467 = vcombine.low %v4458, %v4465
    %v4469 = vunpack.c.l.s4 1966171168
    %v4470 = vunpack.c.0.s8 %v4469
    %v4471 = vlaneseq
    %v4472 = vshrl.u32 %v4471, 7
    %v4473 = vsub.s32 %v4470, %v4472
    %v4474 = vrot.slane %v4466, %v4473
    %v4476 = vunpack.c.l.s4 1966171168
    %v4477 = vunpack.c.0.s8 %v4476
    %v4478 = vlaneseq
    %v4479 = vshrl.u32 %v4478, 7
    %v4480 = vsub.s32 %v4477, %v4479
    %v4481 = vrot.slane %v4467, %v4480
    %v4482 = vcombine.low %v4474, %v4481
    %v4483 = vcombine.low %v2576, %v2580
    %v4484 = vcombine.low %v2584, %v2588
    %v4485 = vcombine.low %v2592, %v2596
    %v4486 = vcombine.low %v2600, %v2604
    %v4488 = vunpack.c.l.s4 1966171168
    %v4489 = vunpack.c.0.s8 %v4488
    %v4490 = vlaneseq
    %v4491 = vshrl.u32 %v4490, 7
    %v4492 = vsub.s32 %v4489, %v4491
    %v4493 = vrot.slane %v4483, %v4492
    %v4495 = vunpack.c.l.s4 1966171168
    %v4496 = vunpack.c.0.s8 %v4495
    %v4497 = vlaneseq
    %v4498 = vshrl.u32 %v4497, 7
    %v4499 = vsub.s32 %v4496, %v4498
    %v4500 = vrot.slane %v4484, %v4499
    %v4502 = vunpack.c.l.s4 1966171168
    %v4503 = vunpack.c.0.s8 %v4502
    %v4504 = vlaneseq
    %v4505 = vshrl.u32 %v4504, 7
    %v4506 = vsub.s32 %v4503, %v4505
    %v4507 = vrot.slane %v4485, %v4506
    %v4509 = vunpack.c.l.s4 1966171168
    %v4510 = vunpack.c.0.s8 %v4509
    %v4511 = vlaneseq
    %v4512 = vshrl.u32 %v4511, 7
    %v4513 = vsub.s32 %v4510, %v4512
    %v4514 = vrot.slane %v4486, %v4513
    %v4515 = vcombine.low %v4493, %v4500
    %v4516 = vcombine.low %v4507, %v4514
    %v4518 = vunpack.c.l.s4 1966171168
    %v4519 = vunpack.c.0.s8 %v4518
    %v4520 = vlaneseq
    %v4521 = vshrl.u32 %v4520, 7
    %v4522 = vsub.s32 %v4519, %v4521
    %v4523 = vrot.slane %v4515, %v4522
    %v4525 = vunpack.c.l.s4 1966171168
    %v4526 = vunpack.c.0.s8 %v4525
    %v4527 = vlaneseq
    %v4528 = vshrl.u32 %v4527, 7
    %v4529 = vsub.s32 %v4526, %v4528
    %v4530 = vrot.slane %v4516, %v4529
    %v4531 = vcombine.low %v4523, %v4530
    %v4532 = vcombine.low %v2608, %v2612
    %v4533 = vcombine.low %v2616, %v2620
    %v4534 = vcombine.low %v2624, %v2628
    %v4535 = vcombine.low %v2632, %v2636
    %v4537 = vunpack.c.l.s4 1966171168
    %v4538 = vunpack.c.0.s8 %v4537
    %v4539 = vlaneseq
    %v4540 = vshrl.u32 %v4539, 7
    %v4541 = vsub.s32 %v4538, %v4540
    %v4542 = vrot.slane %v4532, %v4541
    %v4544 = vunpack.c.l.s4 1966171168
    %v4545 = vunpack.c.0.s8 %v4544
    %v4546 = vlaneseq
    %v4547 = vshrl.u32 %v4546, 7
    %v4548 = vsub.s32 %v4545, %v4547
    %v4549 = vrot.slane %v4533, %v4548
    %v4551 = vunpack.c.l.s4 1966171168
    %v4552 = vunpack.c.0.s8 %v4551
    %v4553 = vlaneseq
    %v4554 = vshrl.u32 %v4553, 7
    %v4555 = vsub.s32 %v4552, %v4554
    %v4556 = vrot.slane %v4534, %v4555
    %v4558 = vunpack.c.l.s4 1966171168
    %v4559 = vunpack.c.0.s8 %v4558
    %v4560 = vlaneseq
    %v4561 = vshrl.u32 %v4560, 7
    %v4562 = vsub.s32 %v4559, %v4561
    %v4563 = vrot.slane %v4535, %v4562
    %v4564 = vcombine.low %v4542, %v4549
    %v4565 = vcombine.low %v4556, %v4563
    %v4567 = vunpack.c.l.s4 1966171168
    %v4568 = vunpack.c.0.s8 %v4567
    %v4569 = vlaneseq
    %v4570 = vshrl.u32 %v4569, 7
    %v4571 = vsub.s32 %v4568, %v4570
    %v4572 = vrot.slane %v4564, %v4571
    %v4574 = vunpack.c.l.s4 1966171168
    %v4575 = vunpack.c.0.s8 %v4574
    %v4576 = vlaneseq
    %v4577 = vshrl.u32 %v4576, 7
    %v4578 = vsub.s32 %v4575, %v4577
    %v4579 = vrot.slane %v4565, %v4578
    %v4580 = vcombine.low %v4572, %v4579
    %v4581 = vcombine.low %v2640, %v2644
    %v4582 = vcombine.low %v2648, %v2652
    %v4583 = vcombine.low %v2656, %v2660
    %v4584 = vcombine.low %v2664, %v2668
    %v4586 = vunpack.c.l.s4 1966171168
    %v4587 = vunpack.c.0.s8 %v4586
    %v4588 = vlaneseq
    %v4589 = vshrl.u32 %v4588, 7
    %v4590 = vsub.s32 %v4587, %v4589
    %v4591 = vrot.slane %v4581, %v4590
    %v4593 = vunpack.c.l.s4 1966171168
    %v4594 = vunpack.c.0.s8 %v4593
    %v4595 = vlaneseq
    %v4596 = vshrl.u32 %v4595, 7
    %v4597 = vsub.s32 %v4594, %v4596
    %v4598 = vrot.slane %v4582, %v4597
    %v4600 = vunpack.c.l.s4 1966171168
    %v4601 = vunpack.c.0.s8 %v4600
    %v4602 = vlaneseq
    %v4603 = vshrl.u32 %v4602, 7
    %v4604 = vsub.s32 %v4601, %v4603
    %v4605 = vrot.slane %v4583, %v4604
    %v4607 = vunpack.c.l.s4 1966171168
    %v4608 = vunpack.c.0.s8 %v4607
    %v4609 = vlaneseq
    %v4610 = vshrl.u32 %v4609, 7
    %v4611 = vsub.s32 %v4608, %v4610
    %v4612 = vrot.slane %v4584, %v4611
    %v4613 = vcombine.low %v4591, %v4598
    %v4614 = vcombine.low %v4605, %v4612
    %v4616 = vunpack.c.l.s4 1966171168
    %v4617 = vunpack.c.0.s8 %v4616
    %v4618 = vlaneseq
    %v4619 = vshrl.u32 %v4618, 7
    %v4620 = vsub.s32 %v4617, %v4619
    %v4621 = vrot.slane %v4613, %v4620
    %v4623 = vunpack.c.l.s4 1966171168
    %v4624 = vunpack.c.0.s8 %v4623
    %v4625 = vlaneseq
    %v4626 = vshrl.u32 %v4625, 7
    %v4627 = vsub.s32 %v4624, %v4626
    %v4628 = vrot.slane %v4614, %v4627
    %v4629 = vcombine.low %v4621, %v4628
    %v4630 = vcombine.low %v2672, %v2676
    %v4631 = vcombine.low %v2680, %v2684
    %v4632 = vcombine.low %v2688, %v2692
    %v4633 = vcombine.low %v2696, %v2700
    %v4635 = vunpack.c.l.s4 1966171168
    %v4636 = vunpack.c.0.s8 %v4635
    %v4637 = vlaneseq
    %v4638 = vshrl.u32 %v4637, 7
    %v4639 = vsub.s32 %v4636, %v4638
    %v4640 = vrot.slane %v4630, %v4639
    %v4642 = vunpack.c.l.s4 1966171168
    %v4643 = vunpack.c.0.s8 %v4642
    %v4644 = vlaneseq
    %v4645 = vshrl.u32 %v4644, 7
    %v4646 = vsub.s32 %v4643, %v4645
    %v4647 = vrot.slane %v4631, %v4646
    %v4649 = vunpack.c.l.s4 1966171168
    %v4650 = vunpack.c.0.s8 %v4649
    %v4651 = vlaneseq
    %v4652 = vshrl.u32 %v4651, 7
    %v4653 = vsub.s32 %v4650, %v4652
    %v4654 = vrot.slane %v4632, %v4653
    %v4656 = vunpack.c.l.s4 1966171168
    %v4657 = vunpack.c.0.s8 %v4656
    %v4658 = vlaneseq
    %v4659 = vshrl.u32 %v4658, 7
    %v4660 = vsub.s32 %v4657, %v4659
    %v4661 = vrot.slane %v4633, %v4660
    %v4662 = vcombine.low %v4640, %v4647
    %v4663 = vcombine.low %v4654, %v4661
    %v4665 = vunpack.c.l.s4 1966171168
    %v4666 = vunpack.c.0.s8 %v4665
    %v4667 = vlaneseq
    %v4668 = vshrl.u32 %v4667, 7
    %v4669 = vsub.s32 %v4666, %v4668
    %v4670 = vrot.slane %v4662, %v4669
    %v4672 = vunpack.c.l.s4 1966171168
    %v4673 = vunpack.c.0.s8 %v4672
    %v4674 = vlaneseq
    %v4675 = vshrl.u32 %v4674, 7
    %v4676 = vsub.s32 %v4673, %v4675
    %v4677 = vrot.slane %v4663, %v4676
    %v4678 = vcombine.low %v4670, %v4677
    %v4679 = vcombine.low %v2704, %v2708
    %v4680 = vcombine.low %v2712, %v2716
    %v4681 = vcombine.low %v2720, %v2724
    %v4682 = vcombine.low %v2728, %v2732
    %v4684 = vunpack.c.l.s4 1966171168
    %v4685 = vunpack.c.0.s8 %v4684
    %v4686 = vlaneseq
    %v4687 = vshrl.u32 %v4686, 7
    %v4688 = vsub.s32 %v4685, %v4687
    %v4689 = vrot.slane %v4679, %v4688
    %v4691 = vunpack.c.l.s4 1966171168
    %v4692 = vunpack.c.0.s8 %v4691
    %v4693 = vlaneseq
    %v4694 = vshrl.u32 %v4693, 7
    %v4695 = vsub.s32 %v4692, %v4694
    %v4696 = vrot.slane %v4680, %v4695
    %v4698 = vunpack.c.l.s4 1966171168
    %v4699 = vunpack.c.0.s8 %v4698
    %v4700 = vlaneseq
    %v4701 = vshrl.u32 %v4700, 7
    %v4702 = vsub.s32 %v4699, %v4701
    %v4703 = vrot.slane %v4681, %v4702
    %v4705 = vunpack.c.l.s4 1966171168
    %v4706 = vunpack.c.0.s8 %v4705
    %v4707 = vlaneseq
    %v4708 = vshrl.u32 %v4707, 7
    %v4709 = vsub.s32 %v4706, %v4708
    %v4710 = vrot.slane %v4682, %v4709
    %v4711 = vcombine.low %v4689, %v4696
    %v4712 = vcombine.low %v4703, %v4710
    %v4714 = vunpack.c.l.s4 1966171168
    %v4715 = vunpack.c.0.s8 %v4714
    %v4716 = vlaneseq
    %v4717 = vshrl.u32 %v4716, 7
    %v4718 = vsub.s32 %v4715, %v4717
    %v4719 = vrot.slane %v4711, %v4718
    %v4721 = vunpack.c.l.s4 1966171168
    %v4722 = vunpack.c.0.s8 %v4721
    %v4723 = vlaneseq
    %v4724 = vshrl.u32 %v4723, 7
    %v4725 = vsub.s32 %v4722, %v4724
    %v4726 = vrot.slane %v4712, %v4725
    %v4727 = vcombine.low %v4719, %v4726
    %v4728 = vcombine.low %v2736, %v2740
    %v4729 = vcombine.low %v2744, %v2748
    %v4730 = vcombine.low %v2752, %v2756
    %v4731 = vcombine.low %v2760, %v2764
    %v4733 = vunpack.c.l.s4 1966171168
    %v4734 = vunpack.c.0.s8 %v4733
    %v4735 = vlaneseq
    %v4736 = vshrl.u32 %v4735, 7
    %v4737 = vsub.s32 %v4734, %v4736
    %v4738 = vrot.slane %v4728, %v4737
    %v4740 = vunpack.c.l.s4 1966171168
    %v4741 = vunpack.c.0.s8 %v4740
    %v4742 = vlaneseq
    %v4743 = vshrl.u32 %v4742, 7
    %v4744 = vsub.s32 %v4741, %v4743
    %v4745 = vrot.slane %v4729, %v4744
    %v4747 = vunpack.c.l.s4 1966171168
    %v4748 = vunpack.c.0.s8 %v4747
    %v4749 = vlaneseq
    %v4750 = vshrl.u32 %v4749, 7
    %v4751 = vsub.s32 %v4748, %v4750
    %v4752 = vrot.slane %v4730, %v4751
    %v4754 = vunpack.c.l.s4 1966171168
    %v4755 = vunpack.c.0.s8 %v4754
    %v4756 = vlaneseq
    %v4757 = vshrl.u32 %v4756, 7
    %v4758 = vsub.s32 %v4755, %v4757
    %v4759 = vrot.slane %v4731, %v4758
    %v4760 = vcombine.low %v4738, %v4745
    %v4761 = vcombine.low %v4752, %v4759
    %v4763 = vunpack.c.l.s4 1966171168
    %v4764 = vunpack.c.0.s8 %v4763
    %v4765 = vlaneseq
    %v4766 = vshrl.u32 %v4765, 7
    %v4767 = vsub.s32 %v4764, %v4766
    %v4768 = vrot.slane %v4760, %v4767
    %v4770 = vunpack.c.l.s4 1966171168
    %v4771 = vunpack.c.0.s8 %v4770
    %v4772 = vlaneseq
    %v4773 = vshrl.u32 %v4772, 7
    %v4774 = vsub.s32 %v4771, %v4773
    %v4775 = vrot.slane %v4761, %v4774
    %v4776 = vcombine.low %v4768, %v4775
    %v4777 = vcombine.low %v2768, %v2772
    %v4778 = vcombine.low %v2776, %v2780
    %v4779 = vcombine.low %v2784, %v2788
    %v4780 = vcombine.low %v2792, %v2796
    %v4782 = vunpack.c.l.s4 1966171168
    %v4783 = vunpack.c.0.s8 %v4782
    %v4784 = vlaneseq
    %v4785 = vshrl.u32 %v4784, 7
    %v4786 = vsub.s32 %v4783, %v4785
    %v4787 = vrot.slane %v4777, %v4786
    %v4789 = vunpack.c.l.s4 1966171168
    %v4790 = vunpack.c.0.s8 %v4789
    %v4791 = vlaneseq
    %v4792 = vshrl.u32 %v4791, 7
    %v4793 = vsub.s32 %v4790, %v4792
    %v4794 = vrot.slane %v4778, %v4793
    %v4796 = vunpack.c.l.s4 1966171168
    %v4797 = vunpack.c.0.s8 %v4796
    %v4798 = vlaneseq
    %v4799 = vshrl.u32 %v4798, 7
    %v4800 = vsub.s32 %v4797, %v4799
    %v4801 = vrot.slane %v4779, %v4800
    %v4803 = vunpack.c.l.s4 1966171168
    %v4804 = vunpack.c.0.s8 %v4803
    %v4805 = vlaneseq
    %v4806 = vshrl.u32 %v4805, 7
    %v4807 = vsub.s32 %v4804, %v4806
    %v4808 = vrot.slane %v4780, %v4807
    %v4809 = vcombine.low %v4787, %v4794
    %v4810 = vcombine.low %v4801, %v4808
    %v4812 = vunpack.c.l.s4 1966171168
    %v4813 = vunpack.c.0.s8 %v4812
    %v4814 = vlaneseq
    %v4815 = vshrl.u32 %v4814, 7
    %v4816 = vsub.s32 %v4813, %v4815
    %v4817 = vrot.slane %v4809, %v4816
    %v4819 = vunpack.c.l.s4 1966171168
    %v4820 = vunpack.c.0.s8 %v4819
    %v4821 = vlaneseq
    %v4822 = vshrl.u32 %v4821, 7
    %v4823 = vsub.s32 %v4820, %v4822
    %v4824 = vrot.slane %v4810, %v4823
    %v4825 = vcombine.low %v4817, %v4824
    %v4826 = vcombine.low %v2800, %v2804
    %v4827 = vcombine.low %v2808, %v2812
    %v4828 = vcombine.low %v2816, %v2820
    %v4829 = vcombine.low %v2824, %v2828
    %v4831 = vunpack.c.l.s4 1966171168
    %v4832 = vunpack.c.0.s8 %v4831
    %v4833 = vlaneseq
    %v4834 = vshrl.u32 %v4833, 7
    %v4835 = vsub.s32 %v4832, %v4834
    %v4836 = vrot.slane %v4826, %v4835
    %v4838 = vunpack.c.l.s4 1966171168
    %v4839 = vunpack.c.0.s8 %v4838
    %v4840 = vlaneseq
    %v4841 = vshrl.u32 %v4840, 7
    %v4842 = vsub.s32 %v4839, %v4841
    %v4843 = vrot.slane %v4827, %v4842
    %v4845 = vunpack.c.l.s4 1966171168
    %v4846 = vunpack.c.0.s8 %v4845
    %v4847 = vlaneseq
    %v4848 = vshrl.u32 %v4847, 7
    %v4849 = vsub.s32 %v4846, %v4848
    %v4850 = vrot.slane %v4828, %v4849
    %v4852 = vunpack.c.l.s4 1966171168
    %v4853 = vunpack.c.0.s8 %v4852
    %v4854 = vlaneseq
    %v4855 = vshrl.u32 %v4854, 7
    %v4856 = vsub.s32 %v4853, %v4855
    %v4857 = vrot.slane %v4829, %v4856
    %v4858 = vcombine.low %v4836, %v4843
    %v4859 = vcombine.low %v4850, %v4857
    %v4861 = vunpack.c.l.s4 1966171168
    %v4862 = vunpack.c.0.s8 %v4861
    %v4863 = vlaneseq
    %v4864 = vshrl.u32 %v4863, 7
    %v4865 = vsub.s32 %v4862, %v4864
    %v4866 = vrot.slane %v4858, %v4865
    %v4868 = vunpack.c.l.s4 1966171168
    %v4869 = vunpack.c.0.s8 %v4868
    %v4870 = vlaneseq
    %v4871 = vshrl.u32 %v4870, 7
    %v4872 = vsub.s32 %v4869, %v4871
    %v4873 = vrot.slane %v4859, %v4872
    %v4874 = vcombine.low %v4866, %v4873
    %v4875 = vcombine.low %v2832, %v2836
    %v4876 = vcombine.low %v2840, %v2844
    %v4877 = vcombine.low %v2848, %v2852
    %v4878 = vcombine.low %v2856, %v2860
    %v4880 = vunpack.c.l.s4 1966171168
    %v4881 = vunpack.c.0.s8 %v4880
    %v4882 = vlaneseq
    %v4883 = vshrl.u32 %v4882, 7
    %v4884 = vsub.s32 %v4881, %v4883
    %v4885 = vrot.slane %v4875, %v4884
    %v4887 = vunpack.c.l.s4 1966171168
    %v4888 = vunpack.c.0.s8 %v4887
    %v4889 = vlaneseq
    %v4890 = vshrl.u32 %v4889, 7
    %v4891 = vsub.s32 %v4888, %v4890
    %v4892 = vrot.slane %v4876, %v4891
    %v4894 = vunpack.c.l.s4 1966171168
    %v4895 = vunpack.c.0.s8 %v4894
    %v4896 = vlaneseq
    %v4897 = vshrl.u32 %v4896, 7
    %v4898 = vsub.s32 %v4895, %v4897
    %v4899 = vrot.slane %v4877, %v4898
    %v4901 = vunpack.c.l.s4 1966171168
    %v4902 = vunpack.c.0.s8 %v4901
    %v4903 = vlaneseq
    %v4904 = vshrl.u32 %v4903, 7
    %v4905 = vsub.s32 %v4902, %v4904
    %v4906 = vrot.slane %v4878, %v4905
    %v4907 = vcombine.low %v4885, %v4892
    %v4908 = vcombine.low %v4899, %v4906
    %v4910 = vunpack.c.l.s4 1966171168
    %v4911 = vunpack.c.0.s8 %v4910
    %v4912 = vlaneseq
    %v4913 = vshrl.u32 %v4912, 7
    %v4914 = vsub.s32 %v4911, %v4913
    %v4915 = vrot.slane %v4907, %v4914
    %v4917 = vunpack.c.l.s4 1966171168
    %v4918 = vunpack.c.0.s8 %v4917
    %v4919 = vlaneseq
    %v4920 = vshrl.u32 %v4919, 7
    %v4921 = vsub.s32 %v4918, %v4920
    %v4922 = vrot.slane %v4908, %v4921
    %v4923 = vcombine.low %v4915, %v4922
    %v4924 = vcombine.low %v2864, %v2868
    %v4925 = vcombine.low %v2872, %v2876
    %v4926 = vcombine.low %v2880, %v2884
    %v4927 = vcombine.low %v2888, %v2892
    %v4929 = vunpack.c.l.s4 1966171168
    %v4930 = vunpack.c.0.s8 %v4929
    %v4931 = vlaneseq
    %v4932 = vshrl.u32 %v4931, 7
    %v4933 = vsub.s32 %v4930, %v4932
    %v4934 = vrot.slane %v4924, %v4933
    %v4936 = vunpack.c.l.s4 1966171168
    %v4937 = vunpack.c.0.s8 %v4936
    %v4938 = vlaneseq
    %v4939 = vshrl.u32 %v4938, 7
    %v4940 = vsub.s32 %v4937, %v4939
    %v4941 = vrot.slane %v4925, %v4940
    %v4943 = vunpack.c.l.s4 1966171168
    %v4944 = vunpack.c.0.s8 %v4943
    %v4945 = vlaneseq
    %v4946 = vshrl.u32 %v4945, 7
    %v4947 = vsub.s32 %v4944, %v4946
    %v4948 = vrot.slane %v4926, %v4947
    %v4950 = vunpack.c.l.s4 1966171168
    %v4951 = vunpack.c.0.s8 %v4950
    %v4952 = vlaneseq
    %v4953 = vshrl.u32 %v4952, 7
    %v4954 = vsub.s32 %v4951, %v4953
    %v4955 = vrot.slane %v4927, %v4954
    %v4956 = vcombine.low %v4934, %v4941
    %v4957 = vcombine.low %v4948, %v4955
    %v4959 = vunpack.c.l.s4 1966171168
    %v4960 = vunpack.c.0.s8 %v4959
    %v4961 = vlaneseq
    %v4962 = vshrl.u32 %v4961, 7
    %v4963 = vsub.s32 %v4960, %v4962
    %v4964 = vrot.slane %v4956, %v4963
    %v4966 = vunpack.c.l.s4 1966171168
    %v4967 = vunpack.c.0.s8 %v4966
    %v4968 = vlaneseq
    %v4969 = vshrl.u32 %v4968, 7
    %v4970 = vsub.s32 %v4967, %v4969
    %v4971 = vrot.slane %v4957, %v4970
    %v4972 = vcombine.low %v4964, %v4971
    %v4973 = vcombine.low %v2896, %v2900
    %v4974 = vcombine.low %v2904, %v2908
    %v4975 = vcombine.low %v2912, %v2916
    %v4976 = vcombine.low %v2920, %v2924
    %v4978 = vunpack.c.l.s4 1966171168
    %v4979 = vunpack.c.0.s8 %v4978
    %v4980 = vlaneseq
    %v4981 = vshrl.u32 %v4980, 7
    %v4982 = vsub.s32 %v4979, %v4981
    %v4983 = vrot.slane %v4973, %v4982
    %v4985 = vunpack.c.l.s4 1966171168
    %v4986 = vunpack.c.0.s8 %v4985
    %v4987 = vlaneseq
    %v4988 = vshrl.u32 %v4987, 7
    %v4989 = vsub.s32 %v4986, %v4988
    %v4990 = vrot.slane %v4974, %v4989
    %v4992 = vunpack.c.l.s4 1966171168
    %v4993 = vunpack.c.0.s8 %v4992
    %v4994 = vlaneseq
    %v4995 = vshrl.u32 %v4994, 7
    %v4996 = vsub.s32 %v4993, %v4995
    %v4997 = vrot.slane %v4975, %v4996
    %v4999 = vunpack.c.l.s4 1966171168
    %v5000 = vunpack.c.0.s8 %v4999
    %v5001 = vlaneseq
    %v5002 = vshrl.u32 %v5001, 7
    %v5003 = vsub.s32 %v5000, %v5002
    %v5004 = vrot.slane %v4976, %v5003
    %v5005 = vcombine.low %v4983, %v4990
    %v5006 = vcombine.low %v4997, %v5004
    %v5008 = vunpack.c.l.s4 1966171168
    %v5009 = vunpack.c.0.s8 %v5008
    %v5010 = vlaneseq
    %v5011 = vshrl.u32 %v5010, 7
    %v5012 = vsub.s32 %v5009, %v5011
    %v5013 = vrot.slane %v5005, %v5012
    %v5015 = vunpack.c.l.s4 1966171168
    %v5016 = vunpack.c.0.s8 %v5015
    %v5017 = vlaneseq
    %v5018 = vshrl.u32 %v5017, 7
    %v5019 = vsub.s32 %v5016, %v5018
    %v5020 = vrot.slane %v5006, %v5019
    %v5021 = vcombine.low %v5013, %v5020
    %v5022 = vcombine.low %v2928, %v2932
    %v5023 = vcombine.low %v2936, %v2940
    %v5024 = vcombine.low %v2944, %v2948
    %v5025 = vcombine.low %v2952, %v2956
    %v5027 = vunpack.c.l.s4 1966171168
    %v5028 = vunpack.c.0.s8 %v5027
    %v5029 = vlaneseq
    %v5030 = vshrl.u32 %v5029, 7
    %v5031 = vsub.s32 %v5028, %v5030
    %v5032 = vrot.slane %v5022, %v5031
    %v5034 = vunpack.c.l.s4 1966171168
    %v5035 = vunpack.c.0.s8 %v5034
    %v5036 = vlaneseq
    %v5037 = vshrl.u32 %v5036, 7
    %v5038 = vsub.s32 %v5035, %v5037
    %v5039 = vrot.slane %v5023, %v5038
    %v5041 = vunpack.c.l.s4 1966171168
    %v5042 = vunpack.c.0.s8 %v5041
    %v5043 = vlaneseq
    %v5044 = vshrl.u32 %v5043, 7
    %v5045 = vsub.s32 %v5042, %v5044
    %v5046 = vrot.slane %v5024, %v5045
    %v5048 = vunpack.c.l.s4 1966171168
    %v5049 = vunpack.c.0.s8 %v5048
    %v5050 = vlaneseq
    %v5051 = vshrl.u32 %v5050, 7
    %v5052 = vsub.s32 %v5049, %v5051
    %v5053 = vrot.slane %v5025, %v5052
    %v5054 = vcombine.low %v5032, %v5039
    %v5055 = vcombine.low %v5046, %v5053
    %v5057 = vunpack.c.l.s4 1966171168
    %v5058 = vunpack.c.0.s8 %v5057
    %v5059 = vlaneseq
    %v5060 = vshrl.u32 %v5059, 7
    %v5061 = vsub.s32 %v5058, %v5060
    %v5062 = vrot.slane %v5054, %v5061
    %v5064 = vunpack.c.l.s4 1966171168
    %v5065 = vunpack.c.0.s8 %v5064
    %v5066 = vlaneseq
    %v5067 = vshrl.u32 %v5066, 7
    %v5068 = vsub.s32 %v5065, %v5067
    %v5069 = vrot.slane %v5055, %v5068
    %v5070 = vcombine.low %v5062, %v5069
    %v5071 = vcombine.low %v2960, %v2964
    %v5072 = vcombine.low %v2968, %v2972
    %v5073 = vcombine.low %v2976, %v2980
    %v5074 = vcombine.low %v2984, %v2988
    %v5076 = vunpack.c.l.s4 1966171168
    %v5077 = vunpack.c.0.s8 %v5076
    %v5078 = vlaneseq
    %v5079 = vshrl.u32 %v5078, 7
    %v5080 = vsub.s32 %v5077, %v5079
    %v5081 = vrot.slane %v5071, %v5080
    %v5083 = vunpack.c.l.s4 1966171168
    %v5084 = vunpack.c.0.s8 %v5083
    %v5085 = vlaneseq
    %v5086 = vshrl.u32 %v5085, 7
    %v5087 = vsub.s32 %v5084, %v5086
    %v5088 = vrot.slane %v5072, %v5087
    %v5090 = vunpack.c.l.s4 1966171168
    %v5091 = vunpack.c.0.s8 %v5090
    %v5092 = vlaneseq
    %v5093 = vshrl.u32 %v5092, 7
    %v5094 = vsub.s32 %v5091, %v5093
    %v5095 = vrot.slane %v5073, %v5094
    %v5097 = vunpack.c.l.s4 1966171168
    %v5098 = vunpack.c.0.s8 %v5097
    %v5099 = vlaneseq
    %v5100 = vshrl.u32 %v5099, 7
    %v5101 = vsub.s32 %v5098, %v5100
    %v5102 = vrot.slane %v5074, %v5101
    %v5103 = vcombine.low %v5081, %v5088
    %v5104 = vcombine.low %v5095, %v5102
    %v5106 = vunpack.c.l.s4 1966171168
    %v5107 = vunpack.c.0.s8 %v5106
    %v5108 = vlaneseq
    %v5109 = vshrl.u32 %v5108, 7
    %v5110 = vsub.s32 %v5107, %v5109
    %v5111 = vrot.slane %v5103, %v5110
    %v5113 = vunpack.c.l.s4 1966171168
    %v5114 = vunpack.c.0.s8 %v5113
    %v5115 = vlaneseq
    %v5116 = vshrl.u32 %v5115, 7
    %v5117 = vsub.s32 %v5114, %v5116
    %v5118 = vrot.slane %v5104, %v5117
    %v5119 = vcombine.low %v5111, %v5118
    %v5120 = vcombine.low %v2992, %v2996
    %v5121 = vcombine.low %v3000, %v3004
    %v5122 = vcombine.low %v3008, %v3012
    %v5123 = vcombine.low %v3016, %v3020
    %v5125 = vunpack.c.l.s4 1966171168
    %v5126 = vunpack.c.0.s8 %v5125
    %v5127 = vlaneseq
    %v5128 = vshrl.u32 %v5127, 7
    %v5129 = vsub.s32 %v5126, %v5128
    %v5130 = vrot.slane %v5120, %v5129
    %v5132 = vunpack.c.l.s4 1966171168
    %v5133 = vunpack.c.0.s8 %v5132
    %v5134 = vlaneseq
    %v5135 = vshrl.u32 %v5134, 7
    %v5136 = vsub.s32 %v5133, %v5135
    %v5137 = vrot.slane %v5121, %v5136
    %v5139 = vunpack.c.l.s4 1966171168
    %v5140 = vunpack.c.0.s8 %v5139
    %v5141 = vlaneseq
    %v5142 = vshrl.u32 %v5141, 7
    %v5143 = vsub.s32 %v5140, %v5142
    %v5144 = vrot.slane %v5122, %v5143
    %v5146 = vunpack.c.l.s4 1966171168
    %v5147 = vunpack.c.0.s8 %v5146
    %v5148 = vlaneseq
    %v5149 = vshrl.u32 %v5148, 7
    %v5150 = vsub.s32 %v5147, %v5149
    %v5151 = vrot.slane %v5123, %v5150
    %v5152 = vcombine.low %v5130, %v5137
    %v5153 = vcombine.low %v5144, %v5151
    %v5155 = vunpack.c.l.s4 1966171168
    %v5156 = vunpack.c.0.s8 %v5155
    %v5157 = vlaneseq
    %v5158 = vshrl.u32 %v5157, 7
    %v5159 = vsub.s32 %v5156, %v5158
    %v5160 = vrot.slane %v5152, %v5159
    %v5162 = vunpack.c.l.s4 1966171168
    %v5163 = vunpack.c.0.s8 %v5162
    %v5164 = vlaneseq
    %v5165 = vshrl.u32 %v5164, 7
    %v5166 = vsub.s32 %v5163, %v5165
    %v5167 = vrot.slane %v5153, %v5166
    %v5168 = vcombine.low %v5160, %v5167
    %v5169 = vcombine.low %v3024, %v3028
    %v5170 = vcombine.low %v3032, %v3036
    %v5171 = vcombine.low %v3040, %v3044
    %v5172 = vcombine.low %v3048, %v3052
    %v5174 = vunpack.c.l.s4 1966171168
    %v5175 = vunpack.c.0.s8 %v5174
    %v5176 = vlaneseq
    %v5177 = vshrl.u32 %v5176, 7
    %v5178 = vsub.s32 %v5175, %v5177
    %v5179 = vrot.slane %v5169, %v5178
    %v5181 = vunpack.c.l.s4 1966171168
    %v5182 = vunpack.c.0.s8 %v5181
    %v5183 = vlaneseq
    %v5184 = vshrl.u32 %v5183, 7
    %v5185 = vsub.s32 %v5182, %v5184
    %v5186 = vrot.slane %v5170, %v5185
    %v5188 = vunpack.c.l.s4 1966171168
    %v5189 = vunpack.c.0.s8 %v5188
    %v5190 = vlaneseq
    %v5191 = vshrl.u32 %v5190, 7
    %v5192 = vsub.s32 %v5189, %v5191
    %v5193 = vrot.slane %v5171, %v5192
    %v5195 = vunpack.c.l.s4 1966171168
    %v5196 = vunpack.c.0.s8 %v5195
    %v5197 = vlaneseq
    %v5198 = vshrl.u32 %v5197, 7
    %v5199 = vsub.s32 %v5196, %v5198
    %v5200 = vrot.slane %v5172, %v5199
    %v5201 = vcombine.low %v5179, %v5186
    %v5202 = vcombine.low %v5193, %v5200
    %v5204 = vunpack.c.l.s4 1966171168
    %v5205 = vunpack.c.0.s8 %v5204
    %v5206 = vlaneseq
    %v5207 = vshrl.u32 %v5206, 7
    %v5208 = vsub.s32 %v5205, %v5207
    %v5209 = vrot.slane %v5201, %v5208
    %v5211 = vunpack.c.l.s4 1966171168
    %v5212 = vunpack.c.0.s8 %v5211
    %v5213 = vlaneseq
    %v5214 = vshrl.u32 %v5213, 7
    %v5215 = vsub.s32 %v5212, %v5214
    %v5216 = vrot.slane %v5202, %v5215
    %v5217 = vcombine.low %v5209, %v5216
    %v5218 = vcombine.low %v3056, %v3060
    %v5219 = vcombine.low %v3064, %v3068
    %v5220 = vcombine.low %v3072, %v3076
    %v5221 = vcombine.low %v3080, %v3084
    %v5223 = vunpack.c.l.s4 1966171168
    %v5224 = vunpack.c.0.s8 %v5223
    %v5225 = vlaneseq
    %v5226 = vshrl.u32 %v5225, 7
    %v5227 = vsub.s32 %v5224, %v5226
    %v5228 = vrot.slane %v5218, %v5227
    %v5230 = vunpack.c.l.s4 1966171168
    %v5231 = vunpack.c.0.s8 %v5230
    %v5232 = vlaneseq
    %v5233 = vshrl.u32 %v5232, 7
    %v5234 = vsub.s32 %v5231, %v5233
    %v5235 = vrot.slane %v5219, %v5234
    %v5237 = vunpack.c.l.s4 1966171168
    %v5238 = vunpack.c.0.s8 %v5237
    %v5239 = vlaneseq
    %v5240 = vshrl.u32 %v5239, 7
    %v5241 = vsub.s32 %v5238, %v5240
    %v5242 = vrot.slane %v5220, %v5241
    %v5244 = vunpack.c.l.s4 1966171168
    %v5245 = vunpack.c.0.s8 %v5244
    %v5246 = vlaneseq
    %v5247 = vshrl.u32 %v5246, 7
    %v5248 = vsub.s32 %v5245, %v5247
    %v5249 = vrot.slane %v5221, %v5248
    %v5250 = vcombine.low %v5228, %v5235
    %v5251 = vcombine.low %v5242, %v5249
    %v5253 = vunpack.c.l.s4 1966171168
    %v5254 = vunpack.c.0.s8 %v5253
    %v5255 = vlaneseq
    %v5256 = vshrl.u32 %v5255, 7
    %v5257 = vsub.s32 %v5254, %v5256
    %v5258 = vrot.slane %v5250, %v5257
    %v5260 = vunpack.c.l.s4 1966171168
    %v5261 = vunpack.c.0.s8 %v5260
    %v5262 = vlaneseq
    %v5263 = vshrl.u32 %v5262, 7
    %v5264 = vsub.s32 %v5261, %v5263
    %v5265 = vrot.slane %v5251, %v5264
    %v5266 = vcombine.low %v5258, %v5265
    %v5267 = vcombine.low %v3088, %v3092
    %v5268 = vcombine.low %v3096, %v3100
    %v5269 = vcombine.low %v3104, %v3108
    %v5270 = vcombine.low %v3112, %v3116
    %v5272 = vunpack.c.l.s4 1966171168
    %v5273 = vunpack.c.0.s8 %v5272
    %v5274 = vlaneseq
    %v5275 = vshrl.u32 %v5274, 7
    %v5276 = vsub.s32 %v5273, %v5275
    %v5277 = vrot.slane %v5267, %v5276
    %v5279 = vunpack.c.l.s4 1966171168
    %v5280 = vunpack.c.0.s8 %v5279
    %v5281 = vlaneseq
    %v5282 = vshrl.u32 %v5281, 7
    %v5283 = vsub.s32 %v5280, %v5282
    %v5284 = vrot.slane %v5268, %v5283
    %v5286 = vunpack.c.l.s4 1966171168
    %v5287 = vunpack.c.0.s8 %v5286
    %v5288 = vlaneseq
    %v5289 = vshrl.u32 %v5288, 7
    %v5290 = vsub.s32 %v5287, %v5289
    %v5291 = vrot.slane %v5269, %v5290
    %v5293 = vunpack.c.l.s4 1966171168
    %v5294 = vunpack.c.0.s8 %v5293
    %v5295 = vlaneseq
    %v5296 = vshrl.u32 %v5295, 7
    %v5297 = vsub.s32 %v5294, %v5296
    %v5298 = vrot.slane %v5270, %v5297
    %v5299 = vcombine.low %v5277, %v5284
    %v5300 = vcombine.low %v5291, %v5298
    %v5302 = vunpack.c.l.s4 1966171168
    %v5303 = vunpack.c.0.s8 %v5302
    %v5304 = vlaneseq
    %v5305 = vshrl.u32 %v5304, 7
    %v5306 = vsub.s32 %v5303, %v5305
    %v5307 = vrot.slane %v5299, %v5306
    %v5309 = vunpack.c.l.s4 1966171168
    %v5310 = vunpack.c.0.s8 %v5309
    %v5311 = vlaneseq
    %v5312 = vshrl.u32 %v5311, 7
    %v5313 = vsub.s32 %v5310, %v5312
    %v5314 = vrot.slane %v5300, %v5313
    %v5315 = vcombine.low %v5307, %v5314
    %v5316 = vcombine.low %v3120, %v3124
    %v5317 = vcombine.low %v3128, %v3132
    %v5318 = vcombine.low %v3136, %v3140
    %v5319 = vcombine.low %v3144, %v3148
    %v5321 = vunpack.c.l.s4 1966171168
    %v5322 = vunpack.c.0.s8 %v5321
    %v5323 = vlaneseq
    %v5324 = vshrl.u32 %v5323, 7
    %v5325 = vsub.s32 %v5322, %v5324
    %v5326 = vrot.slane %v5316, %v5325
    %v5328 = vunpack.c.l.s4 1966171168
    %v5329 = vunpack.c.0.s8 %v5328
    %v5330 = vlaneseq
    %v5331 = vshrl.u32 %v5330, 7
    %v5332 = vsub.s32 %v5329, %v5331
    %v5333 = vrot.slane %v5317, %v5332
    %v5335 = vunpack.c.l.s4 1966171168
    %v5336 = vunpack.c.0.s8 %v5335
    %v5337 = vlaneseq
    %v5338 = vshrl.u32 %v5337, 7
    %v5339 = vsub.s32 %v5336, %v5338
    %v5340 = vrot.slane %v5318, %v5339
    %v5342 = vunpack.c.l.s4 1966171168
    %v5343 = vunpack.c.0.s8 %v5342
    %v5344 = vlaneseq
    %v5345 = vshrl.u32 %v5344, 7
    %v5346 = vsub.s32 %v5343, %v5345
    %v5347 = vrot.slane %v5319, %v5346
    %v5348 = vcombine.low %v5326, %v5333
    %v5349 = vcombine.low %v5340, %v5347
    %v5351 = vunpack.c.l.s4 1966171168
    %v5352 = vunpack.c.0.s8 %v5351
    %v5353 = vlaneseq
    %v5354 = vshrl.u32 %v5353, 7
    %v5355 = vsub.s32 %v5352, %v5354
    %v5356 = vrot.slane %v5348, %v5355
    %v5358 = vunpack.c.l.s4 1966171168
    %v5359 = vunpack.c.0.s8 %v5358
    %v5360 = vlaneseq
    %v5361 = vshrl.u32 %v5360, 7
    %v5362 = vsub.s32 %v5359, %v5361
    %v5363 = vrot.slane %v5349, %v5362
    %v5364 = vcombine.low %v5356, %v5363
    %v5365 = vcombine.low %v3152, %v3156
    %v5366 = vcombine.low %v3160, %v3164
    %v5367 = vcombine.low %v3168, %v3172
    %v5368 = vcombine.low %v3176, %v3180
    %v5370 = vunpack.c.l.s4 1966171168
    %v5371 = vunpack.c.0.s8 %v5370
    %v5372 = vlaneseq
    %v5373 = vshrl.u32 %v5372, 7
    %v5374 = vsub.s32 %v5371, %v5373
    %v5375 = vrot.slane %v5365, %v5374
    %v5377 = vunpack.c.l.s4 1966171168
    %v5378 = vunpack.c.0.s8 %v5377
    %v5379 = vlaneseq
    %v5380 = vshrl.u32 %v5379, 7
    %v5381 = vsub.s32 %v5378, %v5380
    %v5382 = vrot.slane %v5366, %v5381
    %v5384 = vunpack.c.l.s4 1966171168
    %v5385 = vunpack.c.0.s8 %v5384
    %v5386 = vlaneseq
    %v5387 = vshrl.u32 %v5386, 7
    %v5388 = vsub.s32 %v5385, %v5387
    %v5389 = vrot.slane %v5367, %v5388
    %v5391 = vunpack.c.l.s4 1966171168
    %v5392 = vunpack.c.0.s8 %v5391
    %v5393 = vlaneseq
    %v5394 = vshrl.u32 %v5393, 7
    %v5395 = vsub.s32 %v5392, %v5394
    %v5396 = vrot.slane %v5368, %v5395
    %v5397 = vcombine.low %v5375, %v5382
    %v5398 = vcombine.low %v5389, %v5396
    %v5400 = vunpack.c.l.s4 1966171168
    %v5401 = vunpack.c.0.s8 %v5400
    %v5402 = vlaneseq
    %v5403 = vshrl.u32 %v5402, 7
    %v5404 = vsub.s32 %v5401, %v5403
    %v5405 = vrot.slane %v5397, %v5404
    %v5407 = vunpack.c.l.s4 1966171168
    %v5408 = vunpack.c.0.s8 %v5407
    %v5409 = vlaneseq
    %v5410 = vshrl.u32 %v5409, 7
    %v5411 = vsub.s32 %v5408, %v5410
    %v5412 = vrot.slane %v5398, %v5411
    %v5413 = vcombine.low %v5405, %v5412
    %v5414 = vcombine.low %v3184, %v3188
    %v5415 = vcombine.low %v3192, %v3196
    %v5416 = vcombine.low %v3200, %v3204
    %v5417 = vcombine.low %v3208, %v3212
    %v5419 = vunpack.c.l.s4 1966171168
    %v5420 = vunpack.c.0.s8 %v5419
    %v5421 = vlaneseq
    %v5422 = vshrl.u32 %v5421, 7
    %v5423 = vsub.s32 %v5420, %v5422
    %v5424 = vrot.slane %v5414, %v5423
    %v5426 = vunpack.c.l.s4 1966171168
    %v5427 = vunpack.c.0.s8 %v5426
    %v5428 = vlaneseq
    %v5429 = vshrl.u32 %v5428, 7
    %v5430 = vsub.s32 %v5427, %v5429
    %v5431 = vrot.slane %v5415, %v5430
    %v5433 = vunpack.c.l.s4 1966171168
    %v5434 = vunpack.c.0.s8 %v5433
    %v5435 = vlaneseq
    %v5436 = vshrl.u32 %v5435, 7
    %v5437 = vsub.s32 %v5434, %v5436
    %v5438 = vrot.slane %v5416, %v5437
    %v5440 = vunpack.c.l.s4 1966171168
    %v5441 = vunpack.c.0.s8 %v5440
    %v5442 = vlaneseq
    %v5443 = vshrl.u32 %v5442, 7
    %v5444 = vsub.s32 %v5441, %v5443
    %v5445 = vrot.slane %v5417, %v5444
    %v5446 = vcombine.low %v5424, %v5431
    %v5447 = vcombine.low %v5438, %v5445
    %v5449 = vunpack.c.l.s4 1966171168
    %v5450 = vunpack.c.0.s8 %v5449
    %v5451 = vlaneseq
    %v5452 = vshrl.u32 %v5451, 7
    %v5453 = vsub.s32 %v5450, %v5452
    %v5454 = vrot.slane %v5446, %v5453
    %v5456 = vunpack.c.l.s4 1966171168
    %v5457 = vunpack.c.0.s8 %v5456
    %v5458 = vlaneseq
    %v5459 = vshrl.u32 %v5458, 7
    %v5460 = vsub.s32 %v5457, %v5459
    %v5461 = vrot.slane %v5447, %v5460
    %v5462 = vcombine.low %v5454, %v5461
    %v5463 = vcombine.low %v3216, %v3220
    %v5464 = vcombine.low %v3224, %v3228
    %v5465 = vcombine.low %v3232, %v3236
    %v5466 = vcombine.low %v3240, %v3244
    %v5468 = vunpack.c.l.s4 1966171168
    %v5469 = vunpack.c.0.s8 %v5468
    %v5470 = vlaneseq
    %v5471 = vshrl.u32 %v5470, 7
    %v5472 = vsub.s32 %v5469, %v5471
    %v5473 = vrot.slane %v5463, %v5472
    %v5475 = vunpack.c.l.s4 1966171168
    %v5476 = vunpack.c.0.s8 %v5475
    %v5477 = vlaneseq
    %v5478 = vshrl.u32 %v5477, 7
    %v5479 = vsub.s32 %v5476, %v5478
    %v5480 = vrot.slane %v5464, %v5479
    %v5482 = vunpack.c.l.s4 1966171168
    %v5483 = vunpack.c.0.s8 %v5482
    %v5484 = vlaneseq
    %v5485 = vshrl.u32 %v5484, 7
    %v5486 = vsub.s32 %v5483, %v5485
    %v5487 = vrot.slane %v5465, %v5486
    %v5489 = vunpack.c.l.s4 1966171168
    %v5490 = vunpack.c.0.s8 %v5489
    %v5491 = vlaneseq
    %v5492 = vshrl.u32 %v5491, 7
    %v5493 = vsub.s32 %v5490, %v5492
    %v5494 = vrot.slane %v5466, %v5493
    %v5495 = vcombine.low %v5473, %v5480
    %v5496 = vcombine.low %v5487, %v5494
    %v5498 = vunpack.c.l.s4 1966171168
    %v5499 = vunpack.c.0.s8 %v5498
    %v5500 = vlaneseq
    %v5501 = vshrl.u32 %v5500, 7
    %v5502 = vsub.s32 %v5499, %v5501
    %v5503 = vrot.slane %v5495, %v5502
    %v5505 = vunpack.c.l.s4 1966171168
    %v5506 = vunpack.c.0.s8 %v5505
    %v5507 = vlaneseq
    %v5508 = vshrl.u32 %v5507, 7
    %v5509 = vsub.s32 %v5506, %v5508
    %v5510 = vrot.slane %v5496, %v5509
    %v5511 = vcombine.low %v5503, %v5510
    %v5512 = vcombine.low %v3248, %v3252
    %v5513 = vcombine.low %v3256, %v3260
    %v5514 = vcombine.low %v3264, %v3268
    %v5515 = vcombine.low %v3272, %v3276
    %v5517 = vunpack.c.l.s4 1966171168
    %v5518 = vunpack.c.0.s8 %v5517
    %v5519 = vlaneseq
    %v5520 = vshrl.u32 %v5519, 7
    %v5521 = vsub.s32 %v5518, %v5520
    %v5522 = vrot.slane %v5512, %v5521
    %v5524 = vunpack.c.l.s4 1966171168
    %v5525 = vunpack.c.0.s8 %v5524
    %v5526 = vlaneseq
    %v5527 = vshrl.u32 %v5526, 7
    %v5528 = vsub.s32 %v5525, %v5527
    %v5529 = vrot.slane %v5513, %v5528
    %v5531 = vunpack.c.l.s4 1966171168
    %v5532 = vunpack.c.0.s8 %v5531
    %v5533 = vlaneseq
    %v5534 = vshrl.u32 %v5533, 7
    %v5535 = vsub.s32 %v5532, %v5534
    %v5536 = vrot.slane %v5514, %v5535
    %v5538 = vunpack.c.l.s4 1966171168
    %v5539 = vunpack.c.0.s8 %v5538
    %v5540 = vlaneseq
    %v5541 = vshrl.u32 %v5540, 7
    %v5542 = vsub.s32 %v5539, %v5541
    %v5543 = vrot.slane %v5515, %v5542
    %v5544 = vcombine.low %v5522, %v5529
    %v5545 = vcombine.low %v5536, %v5543
    %v5547 = vunpack.c.l.s4 1966171168
    %v5548 = vunpack.c.0.s8 %v5547
    %v5549 = vlaneseq
    %v5550 = vshrl.u32 %v5549, 7
    %v5551 = vsub.s32 %v5548, %v5550
    %v5552 = vrot.slane %v5544, %v5551
    %v5554 = vunpack.c.l.s4 1966171168
    %v5555 = vunpack.c.0.s8 %v5554
    %v5556 = vlaneseq
    %v5557 = vshrl.u32 %v5556, 7
    %v5558 = vsub.s32 %v5555, %v5557
    %v5559 = vrot.slane %v5545, %v5558
    %v5560 = vcombine.low %v5552, %v5559
    %v5561 = vcombine.low %v3280, %v3284
    %v5562 = vcombine.low %v3288, %v3292
    %v5563 = vcombine.low %v3296, %v3300
    %v5564 = vcombine.low %v3304, %v3308
    %v5566 = vunpack.c.l.s4 1966171168
    %v5567 = vunpack.c.0.s8 %v5566
    %v5568 = vlaneseq
    %v5569 = vshrl.u32 %v5568, 7
    %v5570 = vsub.s32 %v5567, %v5569
    %v5571 = vrot.slane %v5561, %v5570
    %v5573 = vunpack.c.l.s4 1966171168
    %v5574 = vunpack.c.0.s8 %v5573
    %v5575 = vlaneseq
    %v5576 = vshrl.u32 %v5575, 7
    %v5577 = vsub.s32 %v5574, %v5576
    %v5578 = vrot.slane %v5562, %v5577
    %v5580 = vunpack.c.l.s4 1966171168
    %v5581 = vunpack.c.0.s8 %v5580
    %v5582 = vlaneseq
    %v5583 = vshrl.u32 %v5582, 7
    %v5584 = vsub.s32 %v5581, %v5583
    %v5585 = vrot.slane %v5563, %v5584
    %v5587 = vunpack.c.l.s4 1966171168
    %v5588 = vunpack.c.0.s8 %v5587
    %v5589 = vlaneseq
    %v5590 = vshrl.u32 %v5589, 7
    %v5591 = vsub.s32 %v5588, %v5590
    %v5592 = vrot.slane %v5564, %v5591
    %v5593 = vcombine.low %v5571, %v5578
    %v5594 = vcombine.low %v5585, %v5592
    %v5596 = vunpack.c.l.s4 1966171168
    %v5597 = vunpack.c.0.s8 %v5596
    %v5598 = vlaneseq
    %v5599 = vshrl.u32 %v5598, 7
    %v5600 = vsub.s32 %v5597, %v5599
    %v5601 = vrot.slane %v5593, %v5600
    %v5603 = vunpack.c.l.s4 1966171168
    %v5604 = vunpack.c.0.s8 %v5603
    %v5605 = vlaneseq
    %v5606 = vshrl.u32 %v5605, 7
    %v5607 = vsub.s32 %v5604, %v5606
    %v5608 = vrot.slane %v5594, %v5607
    %v5609 = vcombine.low %v5601, %v5608
    %v5610 = vcombine.low %v3312, %v3316
    %v5611 = vcombine.low %v3320, %v3324
    %v5612 = vcombine.low %v3328, %v3332
    %v5613 = vcombine.low %v3336, %v3340
    %v5615 = vunpack.c.l.s4 1966171168
    %v5616 = vunpack.c.0.s8 %v5615
    %v5617 = vlaneseq
    %v5618 = vshrl.u32 %v5617, 7
    %v5619 = vsub.s32 %v5616, %v5618
    %v5620 = vrot.slane %v5610, %v5619
    %v5622 = vunpack.c.l.s4 1966171168
    %v5623 = vunpack.c.0.s8 %v5622
    %v5624 = vlaneseq
    %v5625 = vshrl.u32 %v5624, 7
    %v5626 = vsub.s32 %v5623, %v5625
    %v5627 = vrot.slane %v5611, %v5626
    %v5629 = vunpack.c.l.s4 1966171168
    %v5630 = vunpack.c.0.s8 %v5629
    %v5631 = vlaneseq
    %v5632 = vshrl.u32 %v5631, 7
    %v5633 = vsub.s32 %v5630, %v5632
    %v5634 = vrot.slane %v5612, %v5633
    %v5636 = vunpack.c.l.s4 1966171168
    %v5637 = vunpack.c.0.s8 %v5636
    %v5638 = vlaneseq
    %v5639 = vshrl.u32 %v5638, 7
    %v5640 = vsub.s32 %v5637, %v5639
    %v5641 = vrot.slane %v5613, %v5640
    %v5642 = vcombine.low %v5620, %v5627
    %v5643 = vcombine.low %v5634, %v5641
    %v5645 = vunpack.c.l.s4 1966171168
    %v5646 = vunpack.c.0.s8 %v5645
    %v5647 = vlaneseq
    %v5648 = vshrl.u32 %v5647, 7
    %v5649 = vsub.s32 %v5646, %v5648
    %v5650 = vrot.slane %v5642, %v5649
    %v5652 = vunpack.c.l.s4 1966171168
    %v5653 = vunpack.c.0.s8 %v5652
    %v5654 = vlaneseq
    %v5655 = vshrl.u32 %v5654, 7
    %v5656 = vsub.s32 %v5653, %v5655
    %v5657 = vrot.slane %v5643, %v5656
    %v5658 = vcombine.low %v5650, %v5657
    %v5659 = vcombine.low %v3344, %v3348
    %v5660 = vcombine.low %v3352, %v3356
    %v5661 = vcombine.low %v3360, %v3364
    %v5662 = vcombine.low %v3368, %v3372
    %v5664 = vunpack.c.l.s4 1966171168
    %v5665 = vunpack.c.0.s8 %v5664
    %v5666 = vlaneseq
    %v5667 = vshrl.u32 %v5666, 7
    %v5668 = vsub.s32 %v5665, %v5667
    %v5669 = vrot.slane %v5659, %v5668
    %v5671 = vunpack.c.l.s4 1966171168
    %v5672 = vunpack.c.0.s8 %v5671
    %v5673 = vlaneseq
    %v5674 = vshrl.u32 %v5673, 7
    %v5675 = vsub.s32 %v5672, %v5674
    %v5676 = vrot.slane %v5660, %v5675
    %v5678 = vunpack.c.l.s4 1966171168
    %v5679 = vunpack.c.0.s8 %v5678
    %v5680 = vlaneseq
    %v5681 = vshrl.u32 %v5680, 7
    %v5682 = vsub.s32 %v5679, %v5681
    %v5683 = vrot.slane %v5661, %v5682
    %v5685 = vunpack.c.l.s4 1966171168
    %v5686 = vunpack.c.0.s8 %v5685
    %v5687 = vlaneseq
    %v5688 = vshrl.u32 %v5687, 7
    %v5689 = vsub.s32 %v5686, %v5688
    %v5690 = vrot.slane %v5662, %v5689
    %v5691 = vcombine.low %v5669, %v5676
    %v5692 = vcombine.low %v5683, %v5690
    %v5694 = vunpack.c.l.s4 1966171168
    %v5695 = vunpack.c.0.s8 %v5694
    %v5696 = vlaneseq
    %v5697 = vshrl.u32 %v5696, 7
    %v5698 = vsub.s32 %v5695, %v5697
    %v5699 = vrot.slane %v5691, %v5698
    %v5701 = vunpack.c.l.s4 1966171168
    %v5702 = vunpack.c.0.s8 %v5701
    %v5703 = vlaneseq
    %v5704 = vshrl.u32 %v5703, 7
    %v5705 = vsub.s32 %v5702, %v5704
    %v5706 = vrot.slane %v5692, %v5705
    %v5707 = vcombine.low %v5699, %v5706
    %v5708 = vcombine.low %v3376, %v3380
    %v5709 = vcombine.low %v3384, %v3388
    %v5710 = vcombine.low %v3392, %v3396
    %v5711 = vcombine.low %v3400, %v3404
    %v5713 = vunpack.c.l.s4 1966171168
    %v5714 = vunpack.c.0.s8 %v5713
    %v5715 = vlaneseq
    %v5716 = vshrl.u32 %v5715, 7
    %v5717 = vsub.s32 %v5714, %v5716
    %v5718 = vrot.slane %v5708, %v5717
    %v5720 = vunpack.c.l.s4 1966171168
    %v5721 = vunpack.c.0.s8 %v5720
    %v5722 = vlaneseq
    %v5723 = vshrl.u32 %v5722, 7
    %v5724 = vsub.s32 %v5721, %v5723
    %v5725 = vrot.slane %v5709, %v5724
    %v5727 = vunpack.c.l.s4 1966171168
    %v5728 = vunpack.c.0.s8 %v5727
    %v5729 = vlaneseq
    %v5730 = vshrl.u32 %v5729, 7
    %v5731 = vsub.s32 %v5728, %v5730
    %v5732 = vrot.slane %v5710, %v5731
    %v5734 = vunpack.c.l.s4 1966171168
    %v5735 = vunpack.c.0.s8 %v5734
    %v5736 = vlaneseq
    %v5737 = vshrl.u32 %v5736, 7
    %v5738 = vsub.s32 %v5735, %v5737
    %v5739 = vrot.slane %v5711, %v5738
    %v5740 = vcombine.low %v5718, %v5725
    %v5741 = vcombine.low %v5732, %v5739
    %v5743 = vunpack.c.l.s4 1966171168
    %v5744 = vunpack.c.0.s8 %v5743
    %v5745 = vlaneseq
    %v5746 = vshrl.u32 %v5745, 7
    %v5747 = vsub.s32 %v5744, %v5746
    %v5748 = vrot.slane %v5740, %v5747
    %v5750 = vunpack.c.l.s4 1966171168
    %v5751 = vunpack.c.0.s8 %v5750
    %v5752 = vlaneseq
    %v5753 = vshrl.u32 %v5752, 7
    %v5754 = vsub.s32 %v5751, %v5753
    %v5755 = vrot.slane %v5741, %v5754
    %v5756 = vcombine.low %v5748, %v5755
    %5757 = vset.pattern.permute.xlu0 0
    %5758 = vperm.xlu0 %5757, %v3453
    %v5759 = vpop.permute.xlu0 %5758
    %5760 = vset.pattern.permute.xlu0 0
    %5761 = vperm.xlu0 %5760, %v3502
    %v5762 = vpop.permute.xlu0 %5761
    %5763 = vset.pattern.permute.xlu0 0
    %5764 = vperm.xlu0 %5763, %v3551
    %v5765 = vpop.permute.xlu0 %5764
    %5766 = vset.pattern.permute.xlu0 0
    %5767 = vperm.xlu0 %5766, %v3600
    %v5768 = vpop.permute.xlu0 %5767
    %5769 = vset.pattern.permute.xlu0 0
    %5770 = vperm.xlu0 %5769, %v3649
    %v5771 = vpop.permute.xlu0 %5770
    %5772 = vset.pattern.permute.xlu0 0
    %5773 = vperm.xlu0 %5772, %v3698
    %v5774 = vpop.permute.xlu0 %5773
    %5775 = vset.pattern.permute.xlu0 0
    %5776 = vperm.xlu0 %5775, %v3747
    %v5777 = vpop.permute.xlu0 %5776
    %5778 = vset.pattern.permute.xlu0 0
    %5779 = vperm.xlu0 %5778, %v3796
    %v5780 = vpop.permute.xlu0 %5779
    %5781 = vset.pattern.permute.xlu0 0
    %5782 = vperm.xlu0 %5781, %v3845
    %v5783 = vpop.permute.xlu0 %5782
    %5784 = vset.pattern.permute.xlu0 0
    %5785 = vperm.xlu0 %5784, %v3894
    %v5786 = vpop.permute.xlu0 %5785
    %5787 = vset.pattern.permute.xlu0 0
    %5788 = vperm.xlu0 %5787, %v3943
    %v5789 = vpop.permute.xlu0 %5788
    %5790 = vset.pattern.permute.xlu0 0
    %5791 = vperm.xlu0 %5790, %v3992
    %v5792 = vpop.permute.xlu0 %5791
    %5793 = vset.pattern.permute.xlu0 0
    %5794 = vperm.xlu0 %5793, %v4041
    %v5795 = vpop.permute.xlu0 %5794
    %5796 = vset.pattern.permute.xlu0 0
    %5797 = vperm.xlu0 %5796, %v4090
    %v5798 = vpop.permute.xlu0 %5797
    %5799 = vset.pattern.permute.xlu0 0
    %5800 = vperm.xlu0 %5799, %v4139
    %v5801 = vpop.permute.xlu0 %5800
    %5802 = vset.pattern.permute.xlu0 0
    %5803 = vperm.xlu0 %5802, %v4188
    %v5804 = vpop.permute.xlu0 %5803
    %5805 = vset.pattern.permute.xlu0 0
    %5806 = vperm.xlu0 %5805, %v4237
    %v5807 = vpop.permute.xlu0 %5806
    %5808 = vset.pattern.permute.xlu0 0
    %5809 = vperm.xlu0 %5808, %v4286
    %v5810 = vpop.permute.xlu0 %5809
    %5811 = vset.pattern.permute.xlu0 0
    %5812 = vperm.xlu0 %5811, %v4335
    %v5813 = vpop.permute.xlu0 %5812
    %5814 = vset.pattern.permute.xlu0 0
    %5815 = vperm.xlu0 %5814, %v4384
    %v5816 = vpop.permute.xlu0 %5815
    %5817 = vset.pattern.permute.xlu0 0
    %5818 = vperm.xlu0 %5817, %v4433
    %v5819 = vpop.permute.xlu0 %5818
    %5820 = vset.pattern.permute.xlu0 0
    %5821 = vperm.xlu0 %5820, %v4482
    %v5822 = vpop.permute.xlu0 %5821
    %5823 = vset.pattern.permute.xlu0 0
    %5824 = vperm.xlu0 %5823, %v4531
    %v5825 = vpop.permute.xlu0 %5824
    %5826 = vset.pattern.permute.xlu0 0
    %5827 = vperm.xlu0 %5826, %v4580
    %v5828 = vpop.permute.xlu0 %5827
    %5829 = vset.pattern.permute.xlu0 0
    %5830 = vperm.xlu0 %5829, %v4629
    %v5831 = vpop.permute.xlu0 %5830
    %5832 = vset.pattern.permute.xlu0 0
    %5833 = vperm.xlu0 %5832, %v4678
    %v5834 = vpop.permute.xlu0 %5833
    %5835 = vset.pattern.permute.xlu0 0
    %5836 = vperm.xlu0 %5835, %v4727
    %v5837 = vpop.permute.xlu0 %5836
    %5838 = vset.pattern.permute.xlu0 0
    %5839 = vperm.xlu0 %5838, %v4776
    %v5840 = vpop.permute.xlu0 %5839
    %5841 = vset.pattern.permute.xlu0 0
    %5842 = vperm.xlu0 %5841, %v4825
    %v5843 = vpop.permute.xlu0 %5842
    %5844 = vset.pattern.permute.xlu0 0
    %5845 = vperm.xlu0 %5844, %v4874
    %v5846 = vpop.permute.xlu0 %5845
    %5847 = vset.pattern.permute.xlu0 0
    %5848 = vperm.xlu0 %5847, %v4923
    %v5849 = vpop.permute.xlu0 %5848
    %5850 = vset.pattern.permute.xlu0 0
    %5851 = vperm.xlu0 %5850, %v4972
    %v5852 = vpop.permute.xlu0 %5851
    %5853 = vset.pattern.permute.xlu0 0
    %5854 = vperm.xlu0 %5853, %v5021
    %v5855 = vpop.permute.xlu0 %5854
    %5856 = vset.pattern.permute.xlu0 0
    %5857 = vperm.xlu0 %5856, %v5070
    %v5858 = vpop.permute.xlu0 %5857
    %5859 = vset.pattern.permute.xlu0 0
    %5860 = vperm.xlu0 %5859, %v5119
    %v5861 = vpop.permute.xlu0 %5860
    %5862 = vset.pattern.permute.xlu0 0
    %5863 = vperm.xlu0 %5862, %v5168
    %v5864 = vpop.permute.xlu0 %5863
    %5865 = vset.pattern.permute.xlu0 0
    %5866 = vperm.xlu0 %5865, %v5217
    %v5867 = vpop.permute.xlu0 %5866
    %5868 = vset.pattern.permute.xlu0 0
    %5869 = vperm.xlu0 %5868, %v5266
    %v5870 = vpop.permute.xlu0 %5869
    %5871 = vset.pattern.permute.xlu0 0
    %5872 = vperm.xlu0 %5871, %v5315
    %v5873 = vpop.permute.xlu0 %5872
    %5874 = vset.pattern.permute.xlu0 0
    %5875 = vperm.xlu0 %5874, %v5364
    %v5876 = vpop.permute.xlu0 %5875
    %5877 = vset.pattern.permute.xlu0 0
    %5878 = vperm.xlu0 %5877, %v5413
    %v5879 = vpop.permute.xlu0 %5878
    %5880 = vset.pattern.permute.xlu0 0
    %5881 = vperm.xlu0 %5880, %v5462
    %v5882 = vpop.permute.xlu0 %5881
    %5883 = vset.pattern.permute.xlu0 0
    %5884 = vperm.xlu0 %5883, %v5511
    %v5885 = vpop.permute.xlu0 %5884
    %5886 = vset.pattern.permute.xlu0 0
    %5887 = vperm.xlu0 %5886, %v5560
    %v5888 = vpop.permute.xlu0 %5887
    %5889 = vset.pattern.permute.xlu0 0
    %5890 = vperm.xlu0 %5889, %v5609
    %v5891 = vpop.permute.xlu0 %5890
    %5892 = vset.pattern.permute.xlu0 0
    %5893 = vperm.xlu0 %5892, %v5658
    %v5894 = vpop.permute.xlu0 %5893
    %5895 = vset.pattern.permute.xlu0 0
    %5896 = vperm.xlu0 %5895, %v5707
    %v5897 = vpop.permute.xlu0 %5896
    %5898 = vset.pattern.permute.xlu0 0
    %5899 = vperm.xlu0 %5898, %v5756
    %v5900 = vpop.permute.xlu0 %5899
    %v5901 = vlaneseq
    %v5902 = vand.u32 %v5901, 127
    %v5903 = vlaneseq
    %v5904 = vshrl.u32 %v5903, 7
    %v5905 = vsub.s32 %v5902, %v5904
    %v5906 = vrot.slane %v5759, %v5905
    %v5907 = vadd.s32 %v5902, 4294967288
    %v5908 = vlaneseq
    %v5909 = vshrl.u32 %v5908, 7
    %v5910 = vsub.s32 %v5907, %v5909
    %v5911 = vrot.slane %v5762, %v5910
    %vm5912 = vcmask 130112
    %v5913 = vsel %vm5912, %v5911, %v5906
    %v5914 = vadd.s32 %v5902, 4294967280
    %v5915 = vlaneseq
    %v5916 = vshrl.u32 %v5915, 7
    %v5917 = vsub.s32 %v5914, %v5916
    %v5918 = vrot.slane %v5765, %v5917
    %vm5919 = vcmask 195712
    %v5920 = vsel %vm5919, %v5918, %v5913
    %v5921 = vadd.s32 %v5902, 4294967272
    %v5922 = vlaneseq
    %v5923 = vshrl.u32 %v5922, 7
    %v5924 = vsub.s32 %v5921, %v5923
    %v5925 = vrot.slane %v5768, %v5924
    %vm5926 = vcmask 261312
    %v5927 = vsel %vm5926, %v5925, %v5920
    %v5928 = vadd.s32 %v5902, 4294967264
    %v5929 = vlaneseq
    %v5930 = vshrl.u32 %v5929, 7
    %v5931 = vsub.s32 %v5928, %v5930
    %v5932 = vrot.slane %v5771, %v5931
    %vm5933 = vcmask 326912
    %v5934 = vsel %vm5933, %v5932, %v5927
    %v5935 = vadd.s32 %v5902, 4294967256
    %v5936 = vlaneseq
    %v5937 = vshrl.u32 %v5936, 7
    %v5938 = vsub.s32 %v5935, %v5937
    %v5939 = vrot.slane %v5774, %v5938
    %vm5940 = vcmask 392512
    %v5941 = vsel %vm5940, %v5939, %v5934
    %v5942 = vadd.s32 %v5902, 4294967248
    %v5943 = vlaneseq
    %v5944 = vshrl.u32 %v5943, 7
    %v5945 = vsub.s32 %v5942, %v5944
    %v5946 = vrot.slane %v5777, %v5945
    %vm5947 = vcmask 458112
    %v5948 = vsel %vm5947, %v5946, %v5941
    %v5949 = vadd.s32 %v5902, 4294967240
    %v5950 = vlaneseq
    %v5951 = vshrl.u32 %v5950, 7
    %v5952 = vsub.s32 %v5949, %v5951
    %v5953 = vrot.slane %v5780, %v5952
    %vm5954 = vcmask 523712
    %v5955 = vsel %vm5954, %v5953, %v5948
    %v5956 = vadd.s32 %v5902, 4294967232
    %v5957 = vlaneseq
    %v5958 = vshrl.u32 %v5957, 7
    %v5959 = vsub.s32 %v5956, %v5958
    %v5960 = vrot.slane %v5783, %v5959
    %vm5961 = vcmask 589312
    %v5962 = vsel %vm5961, %v5960, %v5955
    %v5963 = vadd.s32 %v5902, 4294967224
    %v5964 = vlaneseq
    %v5965 = vshrl.u32 %v5964, 7
    %v5966 = vsub.s32 %v5963, %v5965
    %v5967 = vrot.slane %v5786, %v5966
    %vm5968 = vcmask 654912
    %v5969 = vsel %vm5968, %v5967, %v5962
    %v5970 = vadd.s32 %v5902, 4294967216
    %v5971 = vlaneseq
    %v5972 = vshrl.u32 %v5971, 7
    %v5973 = vsub.s32 %v5970, %v5972
    %v5974 = vrot.slane %v5789, %v5973
    %vm5975 = vcmask 720512
    %v5976 = vsel %vm5975, %v5974, %v5969
    %v5977 = vadd.s32 %v5902, 4294967208
    %v5978 = vlaneseq
    %v5979 = vshrl.u32 %v5978, 7
    %v5980 = vsub.s32 %v5977, %v5979
    %v5981 = vrot.slane %v5792, %v5980
    %vm5982 = vcmask 786112
    %v5983 = vsel %vm5982, %v5981, %v5976
    %v5984 = vadd.s32 %v5902, 4294967200
    %v5985 = vlaneseq
    %v5986 = vshrl.u32 %v5985, 7
    %v5987 = vsub.s32 %v5984, %v5986
    %v5988 = vrot.slane %v5795, %v5987
    %vm5989 = vcmask 851712
    %v5990 = vsel %vm5989, %v5988, %v5983
    %v5991 = vadd.s32 %v5902, 4294967192
    %v5992 = vlaneseq
    %v5993 = vshrl.u32 %v5992, 7
    %v5994 = vsub.s32 %v5991, %v5993
    %v5995 = vrot.slane %v5798, %v5994
    %vm5996 = vcmask 917312
    %v5997 = vsel %vm5996, %v5995, %v5990
    %v5998 = vadd.s32 %v5902, 4294967184
    %v5999 = vlaneseq
    %v6000 = vshrl.u32 %v5999, 7
    %v6001 = vsub.s32 %v5998, %v6000
    %v6002 = vrot.slane %v5801, %v6001
    %vm6003 = vcmask 982912
    %v6004 = vsel %vm6003, %v6002, %v5997
    %v6005 = vadd.s32 %v5902, 4294967176
    %v6006 = vlaneseq
    %v6007 = vshrl.u32 %v6006, 7
    %v6008 = vsub.s32 %v6005, %v6007
    %v6009 = vrot.slane %v5804, %v6008
    %vm6010 = vcmask 1048512
    %v6011 = vsel %vm6010, %v6009, %v6004
    %v6012 = vlaneseq
    %v6013 = vshrl.u32 %v6012, 7
    %v6014 = vsub.s32 %v5902, %v6013
    %v6015 = vrot.slane %v5807, %v6014
    %v6016 = vlaneseq
    %v6017 = vshrl.u32 %v6016, 7
    %v6018 = vsub.s32 %v5907, %v6017
    %v6019 = vrot.slane %v5810, %v6018
    %v6020 = vsel %vm5912, %v6019, %v6015
    %v6021 = vlaneseq
    %v6022 = vshrl.u32 %v6021, 7
    %v6023 = vsub.s32 %v5914, %v6022
    %v6024 = vrot.slane %v5813, %v6023
    %v6025 = vsel %vm5919, %v6024, %v6020
    %v6026 = vlaneseq
    %v6027 = vshrl.u32 %v6026, 7
    %v6028 = vsub.s32 %v5921, %v6027
    %v6029 = vrot.slane %v5816, %v6028
    %v6030 = vsel %vm5926, %v6029, %v6025
    %v6031 = vlaneseq
    %v6032 = vshrl.u32 %v6031, 7
    %v6033 = vsub.s32 %v5928, %v6032
    %v6034 = vrot.slane %v5819, %v6033
    %v6035 = vsel %vm5933, %v6034, %v6030
    %v6036 = vlaneseq
    %v6037 = vshrl.u32 %v6036, 7
    %v6038 = vsub.s32 %v5935, %v6037
    %v6039 = vrot.slane %v5822, %v6038
    %v6040 = vsel %vm5940, %v6039, %v6035
    %v6041 = vlaneseq
    %v6042 = vshrl.u32 %v6041, 7
    %v6043 = vsub.s32 %v5942, %v6042
    %v6044 = vrot.slane %v5825, %v6043
    %v6045 = vsel %vm5947, %v6044, %v6040
    %v6046 = vlaneseq
    %v6047 = vshrl.u32 %v6046, 7
    %v6048 = vsub.s32 %v5949, %v6047
    %v6049 = vrot.slane %v5828, %v6048
    %v6050 = vsel %vm5954, %v6049, %v6045
    %v6051 = vlaneseq
    %v6052 = vshrl.u32 %v6051, 7
    %v6053 = vsub.s32 %v5956, %v6052
    %v6054 = vrot.slane %v5831, %v6053
    %v6055 = vsel %vm5961, %v6054, %v6050
    %v6056 = vlaneseq
    %v6057 = vshrl.u32 %v6056, 7
    %v6058 = vsub.s32 %v5963, %v6057
    %v6059 = vrot.slane %v5834, %v6058
    %v6060 = vsel %vm5968, %v6059, %v6055
    %v6061 = vlaneseq
    %v6062 = vshrl.u32 %v6061, 7
    %v6063 = vsub.s32 %v5970, %v6062
    %v6064 = vrot.slane %v5837, %v6063
    %v6065 = vsel %vm5975, %v6064, %v6060
    %v6066 = vlaneseq
    %v6067 = vshrl.u32 %v6066, 7
    %v6068 = vsub.s32 %v5977, %v6067
    %v6069 = vrot.slane %v5840, %v6068
    %v6070 = vsel %vm5982, %v6069, %v6065
    %v6071 = vlaneseq
    %v6072 = vshrl.u32 %v6071, 7
    %v6073 = vsub.s32 %v5984, %v6072
    %v6074 = vrot.slane %v5843, %v6073
    %v6075 = vsel %vm5989, %v6074, %v6070
    %v6076 = vlaneseq
    %v6077 = vshrl.u32 %v6076, 7
    %v6078 = vsub.s32 %v5991, %v6077
    %v6079 = vrot.slane %v5846, %v6078
    %v6080 = vsel %vm5996, %v6079, %v6075
    %v6081 = vlaneseq
    %v6082 = vshrl.u32 %v6081, 7
    %v6083 = vsub.s32 %v5998, %v6082
    %v6084 = vrot.slane %v5849, %v6083
    %v6085 = vsel %vm6003, %v6084, %v6080
    %v6086 = vlaneseq
    %v6087 = vshrl.u32 %v6086, 7
    %v6088 = vsub.s32 %v6005, %v6087
    %v6089 = vrot.slane %v5852, %v6088
    %v6090 = vsel %vm6010, %v6089, %v6085
    %v6091 = vlaneseq
    %v6092 = vshrl.u32 %v6091, 7
    %v6093 = vsub.s32 %v5902, %v6092
    %v6094 = vrot.slane %v5855, %v6093
    %v6095 = vlaneseq
    %v6096 = vshrl.u32 %v6095, 7
    %v6097 = vsub.s32 %v5907, %v6096
    %v6098 = vrot.slane %v5858, %v6097
    %v6099 = vsel %vm5912, %v6098, %v6094
    %v6100 = vlaneseq
    %v6101 = vshrl.u32 %v6100, 7
    %v6102 = vsub.s32 %v5914, %v6101
    %v6103 = vrot.slane %v5861, %v6102
    %v6104 = vsel %vm5919, %v6103, %v6099
    %v6105 = vlaneseq
    %v6106 = vshrl.u32 %v6105, 7
    %v6107 = vsub.s32 %v5921, %v6106
    %v6108 = vrot.slane %v5864, %v6107
    %v6109 = vsel %vm5926, %v6108, %v6104
    %v6110 = vlaneseq
    %v6111 = vshrl.u32 %v6110, 7
    %v6112 = vsub.s32 %v5928, %v6111
    %v6113 = vrot.slane %v5867, %v6112
    %v6114 = vsel %vm5933, %v6113, %v6109
    %v6115 = vlaneseq
    %v6116 = vshrl.u32 %v6115, 7
    %v6117 = vsub.s32 %v5935, %v6116
    %v6118 = vrot.slane %v5870, %v6117
    %v6119 = vsel %vm5940, %v6118, %v6114
    %v6120 = vlaneseq
    %v6121 = vshrl.u32 %v6120, 7
    %v6122 = vsub.s32 %v5942, %v6121
    %v6123 = vrot.slane %v5873, %v6122
    %v6124 = vsel %vm5947, %v6123, %v6119
    %v6125 = vlaneseq
    %v6126 = vshrl.u32 %v6125, 7
    %v6127 = vsub.s32 %v5949, %v6126
    %v6128 = vrot.slane %v5876, %v6127
    %v6129 = vsel %vm5954, %v6128, %v6124
    %v6130 = vlaneseq
    %v6131 = vshrl.u32 %v6130, 7
    %v6132 = vsub.s32 %v5956, %v6131
    %v6133 = vrot.slane %v5879, %v6132
    %v6134 = vsel %vm5961, %v6133, %v6129
    %v6135 = vlaneseq
    %v6136 = vshrl.u32 %v6135, 7
    %v6137 = vsub.s32 %v5963, %v6136
    %v6138 = vrot.slane %v5882, %v6137
    %v6139 = vsel %vm5968, %v6138, %v6134
    %v6140 = vlaneseq
    %v6141 = vshrl.u32 %v6140, 7
    %v6142 = vsub.s32 %v5970, %v6141
    %v6143 = vrot.slane %v5885, %v6142
    %v6144 = vsel %vm5975, %v6143, %v6139
    %v6145 = vlaneseq
    %v6146 = vshrl.u32 %v6145, 7
    %v6147 = vsub.s32 %v5977, %v6146
    %v6148 = vrot.slane %v5888, %v6147
    %v6149 = vsel %vm5982, %v6148, %v6144
    %v6150 = vlaneseq
    %v6151 = vshrl.u32 %v6150, 7
    %v6152 = vsub.s32 %v5984, %v6151
    %v6153 = vrot.slane %v5891, %v6152
    %v6154 = vsel %vm5989, %v6153, %v6149
    %v6155 = vlaneseq
    %v6156 = vshrl.u32 %v6155, 7
    %v6157 = vsub.s32 %v5991, %v6156
    %v6158 = vrot.slane %v5894, %v6157
    %v6159 = vsel %vm5996, %v6158, %v6154
    %v6160 = vlaneseq
    %v6161 = vshrl.u32 %v6160, 7
    %v6162 = vsub.s32 %v5998, %v6161
    %v6163 = vrot.slane %v5897, %v6162
    %v6164 = vsel %vm6003, %v6163, %v6159
    %v6165 = vlaneseq
    %v6166 = vshrl.u32 %v6165, 7
    %v6167 = vsub.s32 %v6005, %v6166
    %v6168 = vrot.slane %v5900, %v6167
    %v6169 = vsel %vm6010, %v6168, %v6164
    %v6170 = vcombine.low %v6011, %v6090
    %v6172 = vunpack.c.l.s4 1966171168
    %v6173 = vunpack.c.0.s8 %v6172
    %v6174 = vlaneseq
    %v6175 = vshrl.u32 %v6174, 7
    %v6176 = vsub.s32 %v6173, %v6175
    %v6177 = vrot.slane %v6170, %v6176
    %v6179 = vunpack.c.l.s4 1966171168
    %v6180 = vunpack.c.0.s8 %v6179
    %v6181 = vlaneseq
    %v6182 = vshrl.u32 %v6181, 7
    %v6183 = vsub.s32 %v6180, %v6182
    %v6184 = vrot.slane %v6169, %v6183
    %v6185 = vcombine.low %v6177, %v6184
    %v6187 = vunpack.c.l.s4 1966171168
    %v6188 = vunpack.c.0.s8 %v6187
    %v6189 = vlaneseq
    %v6190 = vshrl.u32 %v6189, 7
    %v6191 = vsub.s32 %v6188, %v6190
    %v6192 = vrot.slane %v6185, %v6191
    %v6194 = vlaneseq
    %vm6195 = vcmp.ge.s32.totalorder %v6194, 0
    %vm6196 = vcmp.lt.s32.totalorder %v6194, 384
    %vm6197 = vmand %vm6195, %vm6196
    %6198 = vst.msk [vmem:[#allocation3] sm:$0x7] %vm6197, %v6192
    // Predicated region
    $region30: #{tpu_custom_call.1} parent=1 // pred_check
      _
    $region31: #{tpu_custom_call.1} parent=1 // pred_check_branch
      %6200 = sbr.rel (0) target = $region33
    $region32: #{tpu_custom_call.1} parent=1 // pred_region
      %s6202 = ssub.s32 48, 48
      %6203 = vsyncadd [#allocation4], %s6202
      %s6205 = sshll.u32 [#allocation3], 4
      %s6206 = int_to_ptr.vmem [resolvable:$true] %s6205
      %6208 = dma.vmem_to_hbm [thread:$0]  %s6206, 48, %s7, [#allocation4]
    $region33: #{tpu_custom_call.1} parent=1 // pred_fallthru
      _
    // Predicated region
    $region34: #{tpu_custom_call.1} parent=1 // pred_check
      _
    $region35: #{tpu_custom_call.1} parent=1 // pred_check_branch
      %6210 = sbr.rel (0) target = $region37
    $region36: #{tpu_custom_call.1} parent=1 // pred_region
      %6211 = dma.done [#allocation4], 48
    $region37: #{tpu_custom_call.1} parent=1 // pred_fallthru
      _
    %6212 = vsyncpa [#allocation4], 1

</llo_original>
